<compile_context>
chip_gen: v7x
topology: tpu7x:2x2x1
jax: 0.10.0
libtpu: 0.0.40
codegen_flags: <defaults>
</compile_context>

<pallas_src>
import functools

import jax
import jax.numpy as jnp
from jax.experimental import pallas as pl
from jax.experimental.pallas import tpu as pltpu


# ----------------------------------------------------------------------------
# Pallas kernel: fused  relu( BN( patches @ W + b ) )  [+ optional tanh]
# ----------------------------------------------------------------------------
def _conv_bn_relu_kernel(patches_ref, w_ref, bias_ref, gamma_ref, beta_ref,
                         out_ref, *, apply_tanh, eps):
    """Whole layer in one grid step.

    patches_ref : (M, K)     im2col patches, M = N*Ho*Wo, K = 9*Cin
    w_ref       : (K, Cout)  conv weights, (kh, kw, Cin)-major rows
    bias_ref    : (1, Cout)  conv bias
    gamma_ref   : (1, Cout)  BN weight
    beta_ref    : (1, Cout)  BN bias
    out_ref     : (M, Cout)
    """
    # Conv as a single MXU matmul (f32 accumulation).
    y = jnp.dot(patches_ref[...], w_ref[...],
                preferred_element_type=jnp.float32)
    y = y + bias_ref[...]

    # BatchNorm2d (training-mode batch statistics): per-channel stats over the
    # M = N*Ho*Wo axis == reduction over (N, H, W).  Cross-sublane reduce (XLU)
    # + rsqrt (EUP); everything stays in vregs.
    m = y.shape[0]
    mean = jnp.sum(y, axis=0, keepdims=True) * (1.0 / m)
    centered = y - mean
    var = jnp.sum(centered * centered, axis=0, keepdims=True) * (1.0 / m)
    inv_std = jax.lax.rsqrt(var + eps)
    y_norm = centered * inv_std * gamma_ref[...] + beta_ref[...]

    out = jnp.maximum(y_norm, 0.0)          # ReLU
    if apply_tanh:                          # static flag (F.tanh on conv4)
        out = jnp.tanh(out)

    out_ref[...] = out.astype(out_ref.dtype)


def _fused_conv_bn_relu(patches, w_mat, bias, gamma, beta, *, apply_tanh):
    """One BasicBlock = one pallas_call, grid=(1,), full-array VMEM blocks."""
    M, K = patches.shape
    Cout = w_mat.shape[1]
    kernel = functools.partial(_conv_bn_relu_kernel,
                               apply_tanh=apply_tanh, eps=1e-5)
    return pl.pallas_call(
        kernel,
        out_shape=jax.ShapeDtypeStruct((M, Cout), patches.dtype),
        grid_spec=pltpu.PrefetchScalarGridSpec(
            num_scalar_prefetch=0,
            grid=(1,),  # whole layer fits VMEM at these sizes -> one grid step
            in_specs=[
                pl.BlockSpec((M, K), lambda i: (0, 0)),        # patches
                pl.BlockSpec((K, Cout), lambda i: (0, 0)),     # weights
                pl.BlockSpec((1, Cout), lambda i: (0, 0)),     # conv bias
                pl.BlockSpec((1, Cout), lambda i: (0, 0)),     # BN gamma
                pl.BlockSpec((1, Cout), lambda i: (0, 0)),     # BN beta
            ],
            out_specs=pl.BlockSpec((M, Cout), lambda i: (0, 0)),
        ),
        compiler_params=pltpu.CompilerParams(
            dimension_semantics=("arbitrary",),
        ),
    )(patches, w_mat, bias, gamma, beta)


# ----------------------------------------------------------------------------
# Wrapper glue: layout only (NCHW<->NHWC, padding, im2col, weight reshape)
# ----------------------------------------------------------------------------
def _im2col(x_nhwc, ksize=3, stride=2, pad=1):
    """Extract 3x3 stride-2 patches -> (N*Ho*Wo, ksize*ksize*C)."""
    N, H, W, C = x_nhwc.shape
    Ho = (H + 2 * pad - ksize) // stride + 1
    Wo = (W + 2 * pad - ksize) // stride + 1
    xp = jnp.pad(x_nhwc, ((0, 0), (pad, pad), (pad, pad), (0, 0)))
    cols = []
    for kh in range(ksize):
        for kw in range(ksize):
            sl = jax.lax.slice(
                xp,
                (0, kh, kw, 0),
                (N, kh + (Ho - 1) * stride + 1, kw + (Wo - 1) * stride + 1, C),
                (1, stride, stride, 1))
            cols.append(sl)                       # (N, Ho, Wo, C)
    patches = jnp.concatenate(cols, axis=-1)      # (N, Ho, Wo, 9*C)
    return patches.reshape(N * Ho * Wo, ksize * ksize * C), (N, Ho, Wo)


def image_encoder_fcn_pallas(x_nchw, params, if_tanh=False):
    """Forward pass of ImageEncoderFCN.

    x_nchw : (N, 3, H, W)
    params : list of 4 dicts with 'w' (Cout, Cin, 3, 3), 'b', 'gamma', 'beta'
    returns (conv4, conv1, conv2, conv3, conv4) in NCHW, like the PyTorch module
    """
    x = jnp.transpose(x_nchw, (0, 2, 3, 1))       # NHWC internally
    feats = []
    for li, p in enumerate(params):
        Cin = x.shape[-1]
        Cout = p["w"].shape[0]
        patches, (N, Ho, Wo) = _im2col(x)
        # (Cout, Cin, kh, kw) -> (kh, kw, Cin, Cout) -> (9*Cin, Cout); row order
        # matches the patch layout built in _im2col.
        w_mat = jnp.transpose(p["w"], (2, 3, 1, 0)).reshape(9 * Cin, Cout)
        apply_tanh = bool(if_tanh) and (li == 3)
        out = _fused_conv_bn_relu(
            patches, w_mat,
            p["b"].reshape(1, Cout),
            p["gamma"].reshape(1, Cout),
            p["beta"].reshape(1, Cout),
            apply_tanh=apply_tanh)
        x = out.reshape(N, Ho, Wo, Cout)
        feats.append(x)

    to_nchw = lambda t: jnp.transpose(t, (0, 3, 1, 2))
    c1, c2, c3, c4 = (to_nchw(f) for f in feats)
    return c4, c1, c2, c3, c4


# ----------------------------------------------------------------------------
# Pure-JAX reference (mirrors PyTorch semantics) for correctness checking
# ----------------------------------------------------------------------------
def image_encoder_fcn_reference(x_nchw, params, if_tanh=False):
    def block(x, p):
        y = jax.lax.conv_general_dilated(
            x, p["w"], window_strides=(2, 2), padding=((1, 1), (1, 1)),
            dimension_numbers=("NCHW", "OIHW", "NCHW"))
        y = y + p["b"][None, :, None, None]
        mean = jnp.mean(y, axis=(0, 2, 3), keepdims=True)
        var = jnp.mean((y - mean) ** 2, axis=(0, 2, 3), keepdims=True)
        y = (y - mean) * jax.lax.rsqrt(var + 1e-5)
        y = y * p["gamma"][None, :, None, None] + p["beta"][None, :, None, None]
        return jnp.maximum(y, 0.0)

    c1 = block(x_nchw, params[0])
    c2 = block(c1, params[1])
    c3 = block(c2, params[2])
    c4 = block(c3, params[3])
    if if_tanh:
        c4 = jnp.tanh(c4)
    return c4, c1, c2, c3, c4


def init_params(key):
    """Deterministic init mirroring Conv2d/BatchNorm2d parameter shapes."""
    specs = [(3, 64), (64, 128), (128, 256), (256, 512)]
    params = []
    for cin, cout in specs:
        key, kw, kb, kg, kbe = jax.random.split(key, 5)
        bound = 1.0 / jnp.sqrt(jnp.float32(cin * 9))
        params.append({
            "w": jax.random.uniform(kw, (cout, cin, 3, 3), jnp.float32,
                                    -bound, bound),
            "b": jax.random.uniform(kb, (cout,), jnp.float32, -bound, bound),
            "gamma": jax.random.uniform(kg, (cout,), jnp.float32, 0.5, 1.5),
            "beta": jax.random.uniform(kbe, (cout,), jnp.float32, -0.1, 0.1),
        })
    return params


if __name__ == "__main__":
    # size_image=16 -> feature maps 8, 4, 2, 1; batch=2, 3 input channels.
    root = jax.random.PRNGKey(0)
    k_params, k_x = jax.random.split(root)
    params = init_params(k_params)
    x = jax.random.normal(k_x, (2, 3, 16, 16), dtype=jnp.float32)

    fwd = jax.jit(functools.partial(image_encoder_fcn_pallas, if_tanh=False))
    outs = fwd(x, params)
    outs = jax.block_until_ready(outs)

    refs = image_encoder_fcn_reference(x, params, if_tanh=False)
    expected_shapes = [(2, 512, 1, 1), (2, 64, 8, 8), (2, 128, 4, 4),
                       (2, 256, 2, 2), (2, 512, 1, 1)]
    for o, r, s in zip(outs, refs, expected_shapes):
        assert o.shape == s, (o.shape, s)
        assert jnp.allclose(o, r, atol=1e-2, rtol=1e-2)

    print("KERNEL_OK")
</pallas_src>

<mosaic_0001>
module attributes {stable_mosaic.version = 11 : i64} {
  func.func @_conv_bn_relu_kernel(%arg0: i32, %arg1: memref<128x27xf32, #tpu.memory_space<vmem>>, %arg2: memref<27x64xf32, #tpu.memory_space<vmem>>, %arg3: memref<1x64xf32, #tpu.memory_space<vmem>>, %arg4: memref<1x64xf32, #tpu.memory_space<vmem>>, %arg5: memref<1x64xf32, #tpu.memory_space<vmem>>, %arg6: memref<128x64xf32, #tpu.memory_space<vmem>>) attributes {dimension_semantics = [#tpu.dimension_semantics<arbitrary>], iteration_bounds = array<i64: 1>, scalar_prefetch = 0 : i64, scratch_operands = 0 : i64, tpu.core_type = #tpu.core_type<tc>, window_params = [{pipeline_mode = #tpu.pipeline_mode<synchronous>, transform_indices = @transform_0, window_bounds = array<i64: 128, 27>}, {pipeline_mode = #tpu.pipeline_mode<synchronous>, transform_indices = @transform_1, window_bounds = array<i64: 27, 64>}, {pipeline_mode = #tpu.pipeline_mode<synchronous>, transform_indices = @transform_2, window_bounds = array<i64: 1, 64>}, {pipeline_mode = #tpu.pipeline_mode<synchronous>, transform_indices = @transform_3, window_bounds = array<i64: 1, 64>}, {pipeline_mode = #tpu.pipeline_mode<synchronous>, transform_indices = @transform_4, window_bounds = array<i64: 1, 64>}, {pipeline_mode = #tpu.pipeline_mode<synchronous>, transform_indices = @transform_5, window_bounds = array<i64: 128, 64>}]} {
    %c0 = arith.constant 0 : index
    %c0_0 = arith.constant 0 : index
    %0 = vector.load %arg1[%c0, %c0_0] : memref<128x27xf32, #tpu.memory_space<vmem>>, vector<128x27xf32>
    %c0_1 = arith.constant 0 : index
    %c0_2 = arith.constant 0 : index
    %1 = vector.load %arg2[%c0_1, %c0_2] : memref<27x64xf32, #tpu.memory_space<vmem>>, vector<27x64xf32>
    %cst = arith.constant dense<0.000000e+00> : vector<128x64xf32>
    %2 = tpu.matmul %0, %1, %cst {dimension_numbers = #tpu.dot_dimension_numbers<[1], [0], [0], [1], [0, 0, 1, 1], [], []>} : vector<128x27xf32>, vector<27x64xf32>, vector<128x64xf32> -> vector<128x64xf32>
    %c0_3 = arith.constant 0 : index
    %c0_4 = arith.constant 0 : index
    %3 = vector.load %arg3[%c0_3, %c0_4] : memref<1x64xf32, #tpu.memory_space<vmem>>, vector<1x64xf32>
    %4 = vector.broadcast %3 : vector<1x64xf32> to vector<128x64xf32>
    %5 = arith.addf %2, %4 : vector<128x64xf32>
    %cst_5 = arith.constant dense<0.000000e+00> : vector<64xf32>
    %6 = vector.multi_reduction <add>, %5, %cst_5 [0] : vector<128x64xf32> to vector<64xf32>
    %7 = vector.shape_cast %6 : vector<64xf32> to vector<1x64xf32>
    %cst_6 = arith.constant 7.812500e-03 : f32
    %8 = vector.broadcast %cst_6 : f32 to vector<1x64xf32>
    %9 = arith.mulf %7, %8 : vector<1x64xf32>
    %10 = vector.broadcast %9 : vector<1x64xf32> to vector<128x64xf32>
    %11 = arith.subf %5, %10 : vector<128x64xf32>
    %12 = arith.mulf %11, %11 : vector<128x64xf32>
    %cst_7 = arith.constant dense<0.000000e+00> : vector<64xf32>
    %13 = vector.multi_reduction <add>, %12, %cst_7 [0] : vector<128x64xf32> to vector<64xf32>
    %14 = vector.shape_cast %13 : vector<64xf32> to vector<1x64xf32>
    %cst_8 = arith.constant 7.812500e-03 : f32
    %15 = vector.broadcast %cst_8 : f32 to vector<1x64xf32>
    %16 = arith.mulf %14, %15 : vector<1x64xf32>
    %cst_9 = arith.constant 9.99999974E-6 : f32
    %17 = vector.broadcast %cst_9 : f32 to vector<1x64xf32>
    %18 = arith.addf %16, %17 : vector<1x64xf32>
    %19 = math.rsqrt %18 : vector<1x64xf32>
    %20 = vector.broadcast %19 : vector<1x64xf32> to vector<128x64xf32>
    %21 = arith.mulf %11, %20 : vector<128x64xf32>
    %c0_10 = arith.constant 0 : index
    %c0_11 = arith.constant 0 : index
    %22 = vector.load %arg4[%c0_10, %c0_11] : memref<1x64xf32, #tpu.memory_space<vmem>>, vector<1x64xf32>
    %23 = vector.broadcast %22 : vector<1x64xf32> to vector<128x64xf32>
    %24 = arith.mulf %21, %23 : vector<128x64xf32>
    %c0_12 = arith.constant 0 : index
    %c0_13 = arith.constant 0 : index
    %25 = vector.load %arg5[%c0_12, %c0_13] : memref<1x64xf32, #tpu.memory_space<vmem>>, vector<1x64xf32>
    %26 = vector.broadcast %25 : vector<1x64xf32> to vector<128x64xf32>
    %27 = arith.addf %24, %26 : vector<128x64xf32>
    %cst_14 = arith.constant 0.000000e+00 : f32
    %28 = vector.broadcast %cst_14 : f32 to vector<128x64xf32>
    %29 = arith.maximumf %27, %28 : vector<128x64xf32>
    %c0_15 = arith.constant 0 : index
    %c0_16 = arith.constant 0 : index
    %30 = vector.load %arg6[%c0_15, %c0_16] : memref<128x64xf32, #tpu.memory_space<vmem>>, vector<128x64xf32>
    tpu.vector_store %arg6[%c0_15, %c0_16], %29 {strides = array<i32>} : memref<128x64xf32, #tpu.memory_space<vmem>>, vector<128x64xf32>,
    return
  }
  func.func @transform_0(%arg0: i32) -> (i32, i32) {
    %c0_i32 = arith.constant 0 : i32
    %c0_i32_0 = arith.constant 0 : i32
    %c0_i32_1 = arith.constant 0 : i32
    return %c0_i32, %c0_i32_0 : i32, i32
  }
  func.func @transform_1(%arg0: i32) -> (i32, i32) {
    %c0_i32 = arith.constant 0 : i32
    %c0_i32_0 = arith.constant 0 : i32
    %c0_i32_1 = arith.constant 0 : i32
    return %c0_i32, %c0_i32_0 : i32, i32
  }
  func.func @transform_2(%arg0: i32) -> (i32, i32) {
    %c0_i32 = arith.constant 0 : i32
    %c0_i32_0 = arith.constant 0 : i32
    %c0_i32_1 = arith.constant 0 : i32
    return %c0_i32, %c0_i32_0 : i32, i32
  }
  func.func @transform_3(%arg0: i32) -> (i32, i32) {
    %c0_i32 = arith.constant 0 : i32
    %c0_i32_0 = arith.constant 0 : i32
    %c0_i32_1 = arith.constant 0 : i32
    return %c0_i32, %c0_i32_0 : i32, i32
  }
  func.func @transform_4(%arg0: i32) -> (i32, i32) {
    %c0_i32 = arith.constant 0 : i32
    %c0_i32_0 = arith.constant 0 : i32
    %c0_i32_1 = arith.constant 0 : i32
    return %c0_i32, %c0_i32_0 : i32, i32
  }
  func.func @transform_5(%arg0: i32) -> (i32, i32) {
    %c0_i32 = arith.constant 0 : i32
    %c0_i32_0 = arith.constant 0 : i32
    %c0_i32_1 = arith.constant 0 : i32
    return %c0_i32, %c0_i32_0 : i32, i32
  }
}

module attributes {stable_mosaic.version = 11 : i64} {
  func.func @_conv_bn_relu_kernel(%arg0: i32, %arg1: memref<32x576xf32, #tpu.memory_space<vmem>>, %arg2: memref<576x128xf32, #tpu.memory_space<vmem>>, %arg3: memref<1x128xf32, #tpu.memory_space<vmem>>, %arg4: memref<1x128xf32, #tpu.memory_space<vmem>>, %arg5: memref<1x128xf32, #tpu.memory_space<vmem>>, %arg6: memref<32x128xf32, #tpu.memory_space<vmem>>) attributes {dimension_semantics = [#tpu.dimension_semantics<arbitrary>], iteration_bounds = array<i64: 1>, scalar_prefetch = 0 : i64, scratch_operands = 0 : i64, tpu.core_type = #tpu.core_type<tc>, window_params = [{pipeline_mode = #tpu.pipeline_mode<synchronous>, transform_indices = @transform_0, window_bounds = array<i64: 32, 576>}, {pipeline_mode = #tpu.pipeline_mode<synchronous>, transform_indices = @transform_1, window_bounds = array<i64: 576, 128>}, {pipeline_mode = #tpu.pipeline_mode<synchronous>, transform_indices = @transform_2, window_bounds = array<i64: 1, 128>}, {pipeline_mode = #tpu.pipeline_mode<synchronous>, transform_indices = @transform_3, window_bounds = array<i64: 1, 128>}, {pipeline_mode = #tpu.pipeline_mode<synchronous>, transform_indices = @transform_4, window_bounds = array<i64: 1, 128>}, {pipeline_mode = #tpu.pipeline_mode<synchronous>, transform_indices = @transform_5, window_bounds = array<i64: 32, 128>}]} {
    %c0 = arith.constant 0 : index
    %c0_0 = arith.constant 0 : index
    %0 = vector.load %arg1[%c0, %c0_0] : memref<32x576xf32, #tpu.memory_space<vmem>>, vector<32x576xf32>
    %c0_1 = arith.constant 0 : index
    %c0_2 = arith.constant 0 : index
    %1 = vector.load %arg2[%c0_1, %c0_2] : memref<576x128xf32, #tpu.memory_space<vmem>>, vector<576x128xf32>
    %cst = arith.constant dense<0.000000e+00> : vector<32x128xf32>
    %2 = tpu.matmul %0, %1, %cst {dimension_numbers = #tpu.dot_dimension_numbers<[1], [0], [0], [1], [0, 0, 1, 1], [], []>} : vector<32x576xf32>, vector<576x128xf32>, vector<32x128xf32> -> vector<32x128xf32>
    %c0_3 = arith.constant 0 : index
    %c0_4 = arith.constant 0 : index
    %3 = vector.load %arg3[%c0_3, %c0_4] : memref<1x128xf32, #tpu.memory_space<vmem>>, vector<1x128xf32>
    %4 = vector.broadcast %3 : vector<1x128xf32> to vector<32x128xf32>
    %5 = arith.addf %2, %4 : vector<32x128xf32>
    %cst_5 = arith.constant dense<0.000000e+00> : vector<128xf32>
    %6 = vector.multi_reduction <add>, %5, %cst_5 [0] : vector<32x128xf32> to vector<128xf32>
    %7 = vector.shape_cast %6 : vector<128xf32> to vector<1x128xf32>
    %cst_6 = arith.constant 3.125000e-02 : f32
    %8 = vector.broadcast %cst_6 : f32 to vector<1x128xf32>
    %9 = arith.mulf %7, %8 : vector<1x128xf32>
    %10 = vector.broadcast %9 : vector<1x128xf32> to vector<32x128xf32>
    %11 = arith.subf %5, %10 : vector<32x128xf32>
    %12 = arith.mulf %11, %11 : vector<32x128xf32>
    %cst_7 = arith.constant dense<0.000000e+00> : vector<128xf32>
    %13 = vector.multi_reduction <add>, %12, %cst_7 [0] : vector<32x128xf32> to vector<128xf32>
    %14 = vector.shape_cast %13 : vector<128xf32> to vector<1x128xf32>
    %cst_8 = arith.constant 3.125000e-02 : f32
    %15 = vector.broadcast %cst_8 : f32 to vector<1x128xf32>
    %16 = arith.mulf %14, %15 : vector<1x128xf32>
    %cst_9 = arith.constant 9.99999974E-6 : f32
    %17 = vector.broadcast %cst_9 : f32 to vector<1x128xf32>
    %18 = arith.addf %16, %17 : vector<1x128xf32>
    %19 = math.rsqrt %18 : vector<1x128xf32>
    %20 = vector.broadcast %19 : vector<1x128xf32> to vector<32x128xf32>
    %21 = arith.mulf %11, %20 : vector<32x128xf32>
    %c0_10 = arith.constant 0 : index
    %c0_11 = arith.constant 0 : index
    %22 = vector.load %arg4[%c0_10, %c0_11] : memref<1x128xf32, #tpu.memory_space<vmem>>, vector<1x128xf32>
    %23 = vector.broadcast %22 : vector<1x128xf32> to vector<32x128xf32>
    %24 = arith.mulf %21, %23 : vector<32x128xf32>
    %c0_12 = arith.constant 0 : index
    %c0_13 = arith.constant 0 : index
    %25 = vector.load %arg5[%c0_12, %c0_13] : memref<1x128xf32, #tpu.memory_space<vmem>>, vector<1x128xf32>
    %26 = vector.broadcast %25 : vector<1x128xf32> to vector<32x128xf32>
    %27 = arith.addf %24, %26 : vector<32x128xf32>
    %cst_14 = arith.constant 0.000000e+00 : f32
    %28 = vector.broadcast %cst_14 : f32 to vector<32x128xf32>
    %29 = arith.maximumf %27, %28 : vector<32x128xf32>
    %c0_15 = arith.constant 0 : index
    %c0_16 = arith.constant 0 : index
    %30 = vector.load %arg6[%c0_15, %c0_16] : memref<32x128xf32, #tpu.memory_space<vmem>>, vector<32x128xf32>
    tpu.vector_store %arg6[%c0_15, %c0_16], %29 {strides = array<i32>} : memref<32x128xf32, #tpu.memory_space<vmem>>, vector<32x128xf32>,
    return
  }
  func.func @transform_0(%arg0: i32) -> (i32, i32) {
    %c0_i32 = arith.constant 0 : i32
    %c0_i32_0 = arith.constant 0 : i32
    %c0_i32_1 = arith.constant 0 : i32
    return %c0_i32, %c0_i32_0 : i32, i32
  }
  func.func @transform_1(%arg0: i32) -> (i32, i32) {
    %c0_i32 = arith.constant 0 : i32
    %c0_i32_0 = arith.constant 0 : i32
    %c0_i32_1 = arith.constant 0 : i32
    return %c0_i32, %c0_i32_0 : i32, i32
  }
  func.func @transform_2(%arg0: i32) -> (i32, i32) {
    %c0_i32 = arith.constant 0 : i32
    %c0_i32_0 = arith.constant 0 : i32
    %c0_i32_1 = arith.constant 0 : i32
    return %c0_i32, %c0_i32_0 : i32, i32
  }
  func.func @transform_3(%arg0: i32) -> (i32, i32) {
    %c0_i32 = arith.constant 0 : i32
    %c0_i32_0 = arith.constant 0 : i32
    %c0_i32_1 = arith.constant 0 : i32
    return %c0_i32, %c0_i32_0 : i32, i32
  }
  func.func @transform_4(%arg0: i32) -> (i32, i32) {
    %c0_i32 = arith.constant 0 : i32
    %c0_i32_0 = arith.constant 0 : i32
    %c0_i32_1 = arith.constant 0 : i32
    return %c0_i32, %c0_i32_0 : i32, i32
  }
  func.func @transform_5(%arg0: i32) -> (i32, i32) {
    %c0_i32 = arith.constant 0 : i32
    %c0_i32_0 = arith.constant 0 : i32
    %c0_i32_1 = arith.constant 0 : i32
    return %c0_i32, %c0_i32_0 : i32, i32
  }
}

module attributes {stable_mosaic.version = 11 : i64} {
  func.func @_conv_bn_relu_kernel(%arg0: i32, %arg1: memref<8x1152xf32, #tpu.memory_space<vmem>>, %arg2: memref<1152x256xf32, #tpu.memory_space<vmem>>, %arg3: memref<1x256xf32, #tpu.memory_space<vmem>>, %arg4: memref<1x256xf32, #tpu.memory_space<vmem>>, %arg5: memref<1x256xf32, #tpu.memory_space<vmem>>, %arg6: memref<8x256xf32, #tpu.memory_space<vmem>>) attributes {dimension_semantics = [#tpu.dimension_semantics<arbitrary>], iteration_bounds = array<i64: 1>, scalar_prefetch = 0 : i64, scratch_operands = 0 : i64, tpu.core_type = #tpu.core_type<tc>, window_params = [{pipeline_mode = #tpu.pipeline_mode<synchronous>, transform_indices = @transform_0, window_bounds = array<i64: 8, 1152>}, {pipeline_mode = #tpu.pipeline_mode<synchronous>, transform_indices = @transform_1, window_bounds = array<i64: 1152, 256>}, {pipeline_mode = #tpu.pipeline_mode<synchronous>, transform_indices = @transform_2, window_bounds = array<i64: 1, 256>}, {pipeline_mode = #tpu.pipeline_mode<synchronous>, transform_indices = @transform_3, window_bounds = array<i64: 1, 256>}, {pipeline_mode = #tpu.pipeline_mode<synchronous>, transform_indices = @transform_4, window_bounds = array<i64: 1, 256>}, {pipeline_mode = #tpu.pipeline_mode<synchronous>, transform_indices = @transform_5, window_bounds = array<i64: 8, 256>}]} {
    %c0 = arith.constant 0 : index
    %c0_0 = arith.constant 0 : index
    %0 = vector.load %arg1[%c0, %c0_0] : memref<8x1152xf32, #tpu.memory_space<vmem>>, vector<8x1152xf32>
    %c0_1 = arith.constant 0 : index
    %c0_2 = arith.constant 0 : index
    %1 = vector.load %arg2[%c0_1, %c0_2] : memref<1152x256xf32, #tpu.memory_space<vmem>>, vector<1152x256xf32>
    %cst = arith.constant dense<0.000000e+00> : vector<8x256xf32>
    %2 = tpu.matmul %0, %1, %cst {dimension_numbers = #tpu.dot_dimension_numbers<[1], [0], [0], [1], [0, 0, 1, 1], [], []>} : vector<8x1152xf32>, vector<1152x256xf32>, vector<8x256xf32> -> vector<8x256xf32>
    %c0_3 = arith.constant 0 : index
    %c0_4 = arith.constant 0 : index
    %3 = vector.load %arg3[%c0_3, %c0_4] : memref<1x256xf32, #tpu.memory_space<vmem>>, vector<1x256xf32>
    %4 = vector.broadcast %3 : vector<1x256xf32> to vector<8x256xf32>
    %5 = arith.addf %2, %4 : vector<8x256xf32>
    %cst_5 = arith.constant dense<0.000000e+00> : vector<256xf32>
    %6 = vector.multi_reduction <add>, %5, %cst_5 [0] : vector<8x256xf32> to vector<256xf32>
    %7 = vector.shape_cast %6 : vector<256xf32> to vector<1x256xf32>
    %cst_6 = arith.constant 1.250000e-01 : f32
    %8 = vector.broadcast %cst_6 : f32 to vector<1x256xf32>
    %9 = arith.mulf %7, %8 : vector<1x256xf32>
    %10 = vector.broadcast %9 : vector<1x256xf32> to vector<8x256xf32>
    %11 = arith.subf %5, %10 : vector<8x256xf32>
    %12 = arith.mulf %11, %11 : vector<8x256xf32>
    %cst_7 = arith.constant dense<0.000000e+00> : vector<256xf32>
    %13 = vector.multi_reduction <add>, %12, %cst_7 [0] : vector<8x256xf32> to vector<256xf32>
    %14 = vector.shape_cast %13 : vector<256xf32> to vector<1x256xf32>
    %cst_8 = arith.constant 1.250000e-01 : f32
    %15 = vector.broadcast %cst_8 : f32 to vector<1x256xf32>
    %16 = arith.mulf %14, %15 : vector<1x256xf32>
    %cst_9 = arith.constant 9.99999974E-6 : f32
    %17 = vector.broadcast %cst_9 : f32 to vector<1x256xf32>
    %18 = arith.addf %16, %17 : vector<1x256xf32>
    %19 = math.rsqrt %18 : vector<1x256xf32>
    %20 = vector.broadcast %19 : vector<1x256xf32> to vector<8x256xf32>
    %21 = arith.mulf %11, %20 : vector<8x256xf32>
    %c0_10 = arith.constant 0 : index
    %c0_11 = arith.constant 0 : index
    %22 = vector.load %arg4[%c0_10, %c0_11] : memref<1x256xf32, #tpu.memory_space<vmem>>, vector<1x256xf32>
    %23 = vector.broadcast %22 : vector<1x256xf32> to vector<8x256xf32>
    %24 = arith.mulf %21, %23 : vector<8x256xf32>
    %c0_12 = arith.constant 0 : index
    %c0_13 = arith.constant 0 : index
    %25 = vector.load %arg5[%c0_12, %c0_13] : memref<1x256xf32, #tpu.memory_space<vmem>>, vector<1x256xf32>
    %26 = vector.broadcast %25 : vector<1x256xf32> to vector<8x256xf32>
    %27 = arith.addf %24, %26 : vector<8x256xf32>
    %cst_14 = arith.constant 0.000000e+00 : f32
    %28 = vector.broadcast %cst_14 : f32 to vector<8x256xf32>
    %29 = arith.maximumf %27, %28 : vector<8x256xf32>
    %c0_15 = arith.constant 0 : index
    %c0_16 = arith.constant 0 : index
    %30 = vector.load %arg6[%c0_15, %c0_16] : memref<8x256xf32, #tpu.memory_space<vmem>>, vector<8x256xf32>
    tpu.vector_store %arg6[%c0_15, %c0_16], %29 {strides = array<i32>} : memref<8x256xf32, #tpu.memory_space<vmem>>, vector<8x256xf32>,
    return
  }
  func.func @transform_0(%arg0: i32) -> (i32, i32) {
    %c0_i32 = arith.constant 0 : i32
    %c0_i32_0 = arith.constant 0 : i32
    %c0_i32_1 = arith.constant 0 : i32
    return %c0_i32, %c0_i32_0 : i32, i32
  }
  func.func @transform_1(%arg0: i32) -> (i32, i32) {
    %c0_i32 = arith.constant 0 : i32
    %c0_i32_0 = arith.constant 0 : i32
    %c0_i32_1 = arith.constant 0 : i32
    return %c0_i32, %c0_i32_0 : i32, i32
  }
  func.func @transform_2(%arg0: i32) -> (i32, i32) {
    %c0_i32 = arith.constant 0 : i32
    %c0_i32_0 = arith.constant 0 : i32
    %c0_i32_1 = arith.constant 0 : i32
    return %c0_i32, %c0_i32_0 : i32, i32
  }
  func.func @transform_3(%arg0: i32) -> (i32, i32) {
    %c0_i32 = arith.constant 0 : i32
    %c0_i32_0 = arith.constant 0 : i32
    %c0_i32_1 = arith.constant 0 : i32
    return %c0_i32, %c0_i32_0 : i32, i32
  }
  func.func @transform_4(%arg0: i32) -> (i32, i32) {
    %c0_i32 = arith.constant 0 : i32
    %c0_i32_0 = arith.constant 0 : i32
    %c0_i32_1 = arith.constant 0 : i32
    return %c0_i32, %c0_i32_0 : i32, i32
  }
  func.func @transform_5(%arg0: i32) -> (i32, i32) {
    %c0_i32 = arith.constant 0 : i32
    %c0_i32_0 = arith.constant 0 : i32
    %c0_i32_1 = arith.constant 0 : i32
    return %c0_i32, %c0_i32_0 : i32, i32
  }
}

module attributes {stable_mosaic.version = 11 : i64} {
  func.func @_conv_bn_relu_kernel(%arg0: i32, %arg1: memref<2x2304xf32, #tpu.memory_space<vmem>>, %arg2: memref<2304x512xf32, #tpu.memory_space<vmem>>, %arg3: memref<1x512xf32, #tpu.memory_space<vmem>>, %arg4: memref<1x512xf32, #tpu.memory_space<vmem>>, %arg5: memref<1x512xf32, #tpu.memory_space<vmem>>, %arg6: memref<2x512xf32, #tpu.memory_space<vmem>>) attributes {dimension_semantics = [#tpu.dimension_semantics<arbitrary>], iteration_bounds = array<i64: 1>, scalar_prefetch = 0 : i64, scratch_operands = 0 : i64, tpu.core_type = #tpu.core_type<tc>, window_params = [{pipeline_mode = #tpu.pipeline_mode<synchronous>, transform_indices = @transform_0, window_bounds = array<i64: 2, 2304>}, {pipeline_mode = #tpu.pipeline_mode<synchronous>, transform_indices = @transform_1, window_bounds = array<i64: 2304, 512>}, {pipeline_mode = #tpu.pipeline_mode<synchronous>, transform_indices = @transform_2, window_bounds = array<i64: 1, 512>}, {pipeline_mode = #tpu.pipeline_mode<synchronous>, transform_indices = @transform_3, window_bounds = array<i64: 1, 512>}, {pipeline_mode = #tpu.pipeline_mode<synchronous>, transform_indices = @transform_4, window_bounds = array<i64: 1, 512>}, {pipeline_mode = #tpu.pipeline_mode<synchronous>, transform_indices = @transform_5, window_bounds = array<i64: 2, 512>}]} {
    %c0 = arith.constant 0 : index
    %c0_0 = arith.constant 0 : index
    %0 = vector.load %arg1[%c0, %c0_0] : memref<2x2304xf32, #tpu.memory_space<vmem>>, vector<2x2304xf32>
    %c0_1 = arith.constant 0 : index
    %c0_2 = arith.constant 0 : index
    %1 = vector.load %arg2[%c0_1, %c0_2] : memref<2304x512xf32, #tpu.memory_space<vmem>>, vector<2304x512xf32>
    %cst = arith.constant dense<0.000000e+00> : vector<2x512xf32>
    %2 = tpu.matmul %0, %1, %cst {dimension_numbers = #tpu.dot_dimension_numbers<[1], [0], [0], [1], [0, 0, 1, 1], [], []>} : vector<2x2304xf32>, vector<2304x512xf32>, vector<2x512xf32> -> vector<2x512xf32>
    %c0_3 = arith.constant 0 : index
    %c0_4 = arith.constant 0 : index
    %3 = vector.load %arg3[%c0_3, %c0_4] : memref<1x512xf32, #tpu.memory_space<vmem>>, vector<1x512xf32>
    %4 = vector.broadcast %3 : vector<1x512xf32> to vector<2x512xf32>
    %5 = arith.addf %2, %4 : vector<2x512xf32>
    %cst_5 = arith.constant dense<0.000000e+00> : vector<512xf32>
    %6 = vector.multi_reduction <add>, %5, %cst_5 [0] : vector<2x512xf32> to vector<512xf32>
    %7 = vector.shape_cast %6 : vector<512xf32> to vector<1x512xf32>
    %cst_6 = arith.constant 5.000000e-01 : f32
    %8 = vector.broadcast %cst_6 : f32 to vector<1x512xf32>
    %9 = arith.mulf %7, %8 : vector<1x512xf32>
    %10 = vector.broadcast %9 : vector<1x512xf32> to vector<2x512xf32>
    %11 = arith.subf %5, %10 : vector<2x512xf32>
    %12 = arith.mulf %11, %11 : vector<2x512xf32>
    %cst_7 = arith.constant dense<0.000000e+00> : vector<512xf32>
    %13 = vector.multi_reduction <add>, %12, %cst_7 [0] : vector<2x512xf32> to vector<512xf32>
    %14 = vector.shape_cast %13 : vector<512xf32> to vector<1x512xf32>
    %cst_8 = arith.constant 5.000000e-01 : f32
    %15 = vector.broadcast %cst_8 : f32 to vector<1x512xf32>
    %16 = arith.mulf %14, %15 : vector<1x512xf32>
    %cst_9 = arith.constant 9.99999974E-6 : f32
    %17 = vector.broadcast %cst_9 : f32 to vector<1x512xf32>
    %18 = arith.addf %16, %17 : vector<1x512xf32>
    %19 = math.rsqrt %18 : vector<1x512xf32>
    %20 = vector.broadcast %19 : vector<1x512xf32> to vector<2x512xf32>
    %21 = arith.mulf %11, %20 : vector<2x512xf32>
    %c0_10 = arith.constant 0 : index
    %c0_11 = arith.constant 0 : index
    %22 = vector.load %arg4[%c0_10, %c0_11] : memref<1x512xf32, #tpu.memory_space<vmem>>, vector<1x512xf32>
    %23 = vector.broadcast %22 : vector<1x512xf32> to vector<2x512xf32>
    %24 = arith.mulf %21, %23 : vector<2x512xf32>
    %c0_12 = arith.constant 0 : index
    %c0_13 = arith.constant 0 : index
    %25 = vector.load %arg5[%c0_12, %c0_13] : memref<1x512xf32, #tpu.memory_space<vmem>>, vector<1x512xf32>
    %26 = vector.broadcast %25 : vector<1x512xf32> to vector<2x512xf32>
    %27 = arith.addf %24, %26 : vector<2x512xf32>
    %cst_14 = arith.constant 0.000000e+00 : f32
    %28 = vector.broadcast %cst_14 : f32 to vector<2x512xf32>
    %29 = arith.maximumf %27, %28 : vector<2x512xf32>
    %c0_15 = arith.constant 0 : index
    %c0_16 = arith.constant 0 : index
    %30 = vector.load %arg6[%c0_15, %c0_16] : memref<2x512xf32, #tpu.memory_space<vmem>>, vector<2x512xf32>
    tpu.vector_store %arg6[%c0_15, %c0_16], %29 {strides = array<i32>} : memref<2x512xf32, #tpu.memory_space<vmem>>, vector<2x512xf32>,
    return
  }
  func.func @transform_0(%arg0: i32) -> (i32, i32) {
    %c0_i32 = arith.constant 0 : i32
    %c0_i32_0 = arith.constant 0 : i32
    %c0_i32_1 = arith.constant 0 : i32
    return %c0_i32, %c0_i32_0 : i32, i32
  }
  func.func @transform_1(%arg0: i32) -> (i32, i32) {
    %c0_i32 = arith.constant 0 : i32
    %c0_i32_0 = arith.constant 0 : i32
    %c0_i32_1 = arith.constant 0 : i32
    return %c0_i32, %c0_i32_0 : i32, i32
  }
  func.func @transform_2(%arg0: i32) -> (i32, i32) {
    %c0_i32 = arith.constant 0 : i32
    %c0_i32_0 = arith.constant 0 : i32
    %c0_i32_1 = arith.constant 0 : i32
    return %c0_i32, %c0_i32_0 : i32, i32
  }
  func.func @transform_3(%arg0: i32) -> (i32, i32) {
    %c0_i32 = arith.constant 0 : i32
    %c0_i32_0 = arith.constant 0 : i32
    %c0_i32_1 = arith.constant 0 : i32
    return %c0_i32, %c0_i32_0 : i32, i32
  }
  func.func @transform_4(%arg0: i32) -> (i32, i32) {
    %c0_i32 = arith.constant 0 : i32
    %c0_i32_0 = arith.constant 0 : i32
    %c0_i32_1 = arith.constant 0 : i32
    return %c0_i32, %c0_i32_0 : i32, i32
  }
  func.func @transform_5(%arg0: i32) -> (i32, i32) {
    %c0_i32 = arith.constant 0 : i32
    %c0_i32_0 = arith.constant 0 : i32
    %c0_i32_1 = arith.constant 0 : i32
    return %c0_i32, %c0_i32_0 : i32, i32
  }
}

</mosaic_0001>

<llo_original>
// kernel: image_encoder_fcn_pallas.4
$region0: #{image_encoder_fcn_pallas.4}
  #allocation0 [shape = 'u32[]', space=smem, size = 0x4, offset = 0x4, fixed_abs, tag = 'smem constant byte address 0x4 - core index']
  #allocation1 [shape = 'u32[144,128]{1,0:T(1,128)}', space=vmem, size = 0x12000, scoped, tag = 'internal scratch']
  %s0 = inlined_call_operand.vmem [shape: f32[128,27], index: 0, kind: input, shape index: {}]
  %s1 = inlined_call_operand.vmem [shape: f32[27,64], index: 1, kind: input, shape index: {}]
  %s2 = inlined_call_operand.hbm [shape: f32[1,64], index: 2, kind: input, shape index: {}]
  %s3 = inlined_call_operand.hbm [shape: f32[1,64], index: 3, kind: input, shape index: {}]
  %s4 = inlined_call_operand.hbm [shape: f32[1,64], index: 4, kind: input, shape index: {}]
  %s5 = inlined_call_operand.vmem [shape: f32[128,64], index: 5, kind: output, shape index: {}]
  %s6 = sld [smem:[#allocation0]]
  $region42: #{image_encoder_fcn_pallas.4} parent=0
    _
  %s8 = ssub.s32 1, %s6
  %s9 = scalar_select 0, %s8, %s6
  $region1: #{image_encoder_fcn_pallas.4} parent=0
    #allocation2 [shape = 'u8[512]{0}', space=vmem, size = 0x400, scoped, tag = 'input window, operand 2, single buffered']
    #allocation3 [shape = 's32[1]{0}', space=sflag, size = 0x4, scoped, tag = 'scoped memory for image_encoder_fcn_pallas.4']
    #allocation4 [shape = 'u8[512]{0}', space=vmem, size = 0x400, scoped, tag = 'input window, operand 3, single buffered']
    #allocation5 [shape = 's32[1]{0}', space=sflag, size = 0x4, scoped, tag = 'scoped memory for image_encoder_fcn_pallas.4']
    #allocation6 [shape = 'u8[512]{0}', space=vmem, size = 0x400, scoped, tag = 'input window, operand 4, single buffered']
    %10 = vsyncpa [#allocation3], 0
    %11 = vsyncpa [#allocation5], 0
    // Predicated region
    $region2: #{image_encoder_fcn_pallas.4} parent=1 // pred_check
      _
    $region3: #{image_encoder_fcn_pallas.4} parent=1 // pred_check_branch
      %13 = sbr.rel (0) target = $region5
    $region4: #{image_encoder_fcn_pallas.4} parent=1 // pred_region
      _
    $region5: #{image_encoder_fcn_pallas.4} parent=1 // pred_fallthru
      _
    // Predicated region
    $region6: #{image_encoder_fcn_pallas.4} parent=1 // pred_check
      _
    $region7: #{image_encoder_fcn_pallas.4} parent=1 // pred_check_branch
      %15 = sbr.rel (0) target = $region9
    $region8: #{image_encoder_fcn_pallas.4} parent=1 // pred_region
      _
    $region9: #{image_encoder_fcn_pallas.4} parent=1 // pred_fallthru
      _
    // Predicated region
    $region10: #{image_encoder_fcn_pallas.4} parent=1 // pred_check
      _
    $region11: #{image_encoder_fcn_pallas.4} parent=1 // pred_check_branch
      %17 = sbr.rel (0) target = $region13
    $region12: #{image_encoder_fcn_pallas.4} parent=1 // pred_region
      %s19 = ssub.s32 16, 16
      %20 = vsyncadd [#allocation3], %s19
      %s22 = sshll.u32 [#allocation2], 4
      %s23 = int_to_ptr.vmem [resolvable:$true] %s22
      %25 = dma.hbm_to_vmem [thread:$0]  %s2, 16, %s23, [#allocation3]
    $region13: #{image_encoder_fcn_pallas.4} parent=1 // pred_fallthru
      _
    // Predicated region
    $region14: #{image_encoder_fcn_pallas.4} parent=1 // pred_check
      _
    $region15: #{image_encoder_fcn_pallas.4} parent=1 // pred_check_branch
      %27 = sbr.rel (0) target = $region17
    $region16: #{image_encoder_fcn_pallas.4} parent=1 // pred_region
      %s29 = ssub.s32 16, 16
      %30 = vsyncadd [#allocation5], %s29
      %s32 = sshll.u32 [#allocation4], 4
      %s33 = int_to_ptr.vmem [resolvable:$true] %s32
      %35 = dma.hbm_to_vmem [thread:$0]  %s3, 16, %s33, [#allocation5]
    $region17: #{image_encoder_fcn_pallas.4} parent=1 // pred_fallthru
      _
    // Predicated region
    $region18: #{image_encoder_fcn_pallas.4} parent=1 // pred_check
      _
    $region19: #{image_encoder_fcn_pallas.4} parent=1 // pred_check_branch
      %37 = sbr.rel (0) target = $region21
    $region20: #{image_encoder_fcn_pallas.4} parent=1 // pred_region
      %s39 = ssub.s32 16, 16
      %40 = vsyncadd [#allocation5], %s39
      %s42 = sshll.u32 [#allocation6], 4
      %s43 = int_to_ptr.vmem [resolvable:$true] %s42
      %45 = dma.hbm_to_vmem [thread:$0]  %s4, 16, %s43, [#allocation5]
    $region21: #{image_encoder_fcn_pallas.4} parent=1 // pred_fallthru
      _
    // Predicated region
    $region22: #{image_encoder_fcn_pallas.4} parent=1 // pred_check
      _
    $region23: #{image_encoder_fcn_pallas.4} parent=1 // pred_check_branch
      %47 = sbr.rel (0) target = $region25
    $region24: #{image_encoder_fcn_pallas.4} parent=1 // pred_region
      %48 = dma.done [#allocation3], 16
    $region25: #{image_encoder_fcn_pallas.4} parent=1 // pred_fallthru
      _
    // Predicated region
    $region26: #{image_encoder_fcn_pallas.4} parent=1 // pred_check
      _
    $region27: #{image_encoder_fcn_pallas.4} parent=1 // pred_check_branch
      %50 = sbr.rel (0) target = $region29
    $region28: #{image_encoder_fcn_pallas.4} parent=1 // pred_region
      %51 = dma.done [#allocation5], 16
    $region29: #{image_encoder_fcn_pallas.4} parent=1 // pred_fallthru
      _
    // Predicated region
    $region30: #{image_encoder_fcn_pallas.4} parent=1 // pred_check
      _
    $region31: #{image_encoder_fcn_pallas.4} parent=1 // pred_check_branch
      %53 = sbr.rel (0) target = $region33
    $region32: #{image_encoder_fcn_pallas.4} parent=1 // pred_region
      %54 = dma.done [#allocation5], 16
    $region33: #{image_encoder_fcn_pallas.4} parent=1 // pred_fallthru
      _
    %v55 = vld [vmem:[%s0] sm:$0xff]
    %v56 = vld [vmem:[%s0 + $0x8] sm:$0xff]
    %v57 = vld [vmem:[%s0 + $0x10] sm:$0xff]
    %v58 = vld [vmem:[%s0 + $0x18] sm:$0xff]
    %v59 = vld [vmem:[%s0 + $0x20] sm:$0xff]
    %v60 = vld [vmem:[%s0 + $0x28] sm:$0xff]
    %v61 = vld [vmem:[%s0 + $0x30] sm:$0xff]
    %v62 = vld [vmem:[%s0 + $0x38] sm:$0xff]
    %v63 = vld [vmem:[%s0 + $0x40] sm:$0xff]
    %v64 = vld [vmem:[%s0 + $0x48] sm:$0xff]
    %v65 = vld [vmem:[%s0 + $0x50] sm:$0xff]
    %v66 = vld [vmem:[%s0 + $0x58] sm:$0xff]
    %v67 = vld [vmem:[%s0 + $0x60] sm:$0xff]
    %v68 = vld [vmem:[%s0 + $0x68] sm:$0xff]
    %v69 = vld [vmem:[%s0 + $0x70] sm:$0xff]
    %v70 = vld [vmem:[%s0 + $0x78] sm:$0xff]
    %v71 = vld [vmem:[%s1] sm:$0xff]
    %v72 = vld [vmem:[%s1 + $0x8] sm:$0xff]
    %v73 = vld [vmem:[%s1 + $0x10] sm:$0xff]
    %v74 = vld [vmem:[%s1 + $0x18] sm:$0x7]
    %v75 = vld [vmem:[#allocation2] sm:$0x1]
    %v77 = vlaneseq
    %v78 = vshrl.u32 %v77, 7
    %v79 = vsub.s32 0, %v78
    %v80 = vrot.slane %v75, %v79
    %vm82 = vcmask 220160
    %v84 = vsel %vm82, %v55, 0
    %v87 = vsel %vm82, %v56, 0
    %v90 = vsel %vm82, %v57, 0
    %v93 = vsel %vm82, %v58, 0
    %v96 = vsel %vm82, %v59, 0
    %v99 = vsel %vm82, %v60, 0
    %v102 = vsel %vm82, %v61, 0
    %v105 = vsel %vm82, %v62, 0
    %v108 = vsel %vm82, %v63, 0
    %v111 = vsel %vm82, %v64, 0
    %v114 = vsel %vm82, %v65, 0
    %v117 = vsel %vm82, %v66, 0
    %v120 = vsel %vm82, %v67, 0
    %v123 = vsel %vm82, %v68, 0
    %v126 = vsel %vm82, %v69, 0
    %v129 = vsel %vm82, %v70, 0
    %vm131 = vcmask 1042432
    %v133 = vsel %vm131, %v74, 0
    %135 = vmatprep.subr.mxu0 0.0
    %136 = vmatpush1.msra.mxu0 %v71
    %137 = vmatprep.subr.mxu0 0.0
    %138 = vmatpush1.msra.mxu0 %v72
    %139 = vmatprep.subr.mxu0 0.0
    %140 = vmatpush1.msra.mxu0 %v73
    %141 = vmatprep.subr.mxu0 0.0
    %142 = vmatpush1.msra.mxu0 %v133
    %143 = vmatprep.subr.mxu0 0.0
    %144 = vmatpush1.msra.mxu0 0.0
    %145 = vmatprep.subr.mxu0 0.0
    %146 = vmatpush1.msra.mxu0 0.0
    %147 = vmatprep.subr.mxu0 0.0
    %148 = vmatpush1.msra.mxu0 0.0
    %149 = vmatprep.subr.mxu0 0.0
    %150 = vmatpush1.msra.mxu0 0.0
    %151 = vmatprep.subr.mxu0 0.0
    %152 = vmatpush1.msra.mxu0 0.0
    %153 = vmatprep.subr.mxu0 0.0
    %154 = vmatpush1.msra.mxu0 0.0
    %155 = vmatprep.subr.mxu0 0.0
    %156 = vmatpush1.msra.mxu0 0.0
    %157 = vmatprep.subr.mxu0 0.0
    %158 = vmatpush1.msra.mxu0 0.0
    %159 = vmatprep.subr.mxu0 0.0
    %160 = vmatpush1.msra.mxu0 0.0
    %161 = vmatprep.subr.mxu0 0.0
    %162 = vmatpush1.msra.mxu0 0.0
    %163 = vmatprep.subr.mxu0 0.0
    %164 = vmatpush1.msra.mxu0 0.0
    %165 = vmatprep.subr.mxu0 0.0
    %166 = vmatpush1.msra.mxu0 0.0
    %167 = vmatprep.subr.mxu0 0.0
    %168 = vmatpush1.msra.mxu0 0.0
    %169 = vmatprep.subr.mxu0 0.0
    %170 = vmatpush1.msra.mxu0 0.0
    %171 = vmatprep.subr.mxu0 0.0
    %172 = vmatpush1.msra.mxu0 0.0
    %173 = vmatprep.subr.mxu0 0.0
    %174 = vmatpush1.msra.mxu0 0.0
    %175 = vmatprep.subr.mxu0 0.0
    %176 = vmatpush1.msra.mxu0 0.0
    %177 = vmatprep.subr.mxu0 0.0
    %178 = vmatpush1.msra.mxu0 0.0
    %179 = vmatprep.subr.mxu0 0.0
    %180 = vmatpush1.msra.mxu0 0.0
    %181 = vmatprep.subr.mxu0 0.0
    %182 = vmatpush1.msra.mxu0 0.0
    %183 = vmatprep.subr.mxu0 0.0
    %184 = vmatpush1.msra.mxu0 0.0
    %185 = vmatprep.subr.mxu0 0.0
    %186 = vmatpush1.msra.mxu0 0.0
    %187 = vmatprep.subr.mxu0 0.0
    %188 = vmatpush1.msra.mxu0 0.0
    %189 = vmatprep.subr.mxu0 0.0
    %190 = vmatpush1.msra.mxu0 0.0
    %191 = vmatprep.subr.mxu0 0.0
    %192 = vmatpush1.msra.mxu0 0.0
    %193 = vmatprep.subr.mxu0 0.0
    %194 = vmatpush1.msra.mxu0 0.0
    %195 = vmatprep.subr.mxu0 0.0
    %196 = vmatpush1.msra.mxu0 0.0
    %197 = vmatprep.subr.mxu0 0.0
    %198 = vmatpush1.msra.mxu0 0.0
    %199 = vmatprep.mubr.f32.mxu0 0.0
    %200 = vmatmul.mubr.f32.gmra.mrb[0].mxu0 %v84
    %v201 = vpop.f32.mrb[0].mxu0
    %v202 = vadd.f32 %v80, %v201
    %v203 = vpop.f32.mrb[0].mxu0
    %204 = vmatprep.mubr.f32.mxu0 0.0
    %205 = vmatmul.mubr.f32.gmra.mrb[0].mxu0 %v87
    %v206 = vpop.f32.mrb[0].mxu0
    %v207 = vadd.f32 %v80, %v206
    %v208 = vpop.f32.mrb[0].mxu0
    %209 = vmatprep.mubr.f32.mxu0 0.0
    %210 = vmatmul.mubr.f32.gmra.mrb[0].mxu0 %v90
    %v211 = vpop.f32.mrb[0].mxu0
    %v212 = vadd.f32 %v80, %v211
    %v213 = vpop.f32.mrb[0].mxu0
    %214 = vmatprep.mubr.f32.mxu0 0.0
    %215 = vmatmul.mubr.f32.gmra.mrb[0].mxu0 %v93
    %v216 = vpop.f32.mrb[0].mxu0
    %v217 = vadd.f32 %v80, %v216
    %v218 = vpop.f32.mrb[0].mxu0
    %219 = vmatprep.mubr.f32.mxu0 0.0
    %220 = vmatmul.mubr.f32.gmra.mrb[0].mxu0 %v96
    %v221 = vpop.f32.mrb[0].mxu0
    %v222 = vadd.f32 %v80, %v221
    %v223 = vpop.f32.mrb[0].mxu0
    %224 = vmatprep.mubr.f32.mxu0 0.0
    %225 = vmatmul.mubr.f32.gmra.mrb[0].mxu0 %v99
    %v226 = vpop.f32.mrb[0].mxu0
    %v227 = vadd.f32 %v80, %v226
    %v228 = vpop.f32.mrb[0].mxu0
    %229 = vmatprep.mubr.f32.mxu0 0.0
    %230 = vmatmul.mubr.f32.gmra.mrb[0].mxu0 %v102
    %v231 = vpop.f32.mrb[0].mxu0
    %v232 = vadd.f32 %v80, %v231
    %v233 = vpop.f32.mrb[0].mxu0
    %234 = vmatprep.mubr.f32.mxu0 0.0
    %235 = vmatmul.mubr.f32.gmra.mrb[0].mxu0 %v105
    %v236 = vpop.f32.mrb[0].mxu0
    %v237 = vadd.f32 %v80, %v236
    %v238 = vpop.f32.mrb[0].mxu0
    %239 = vmatprep.mubr.f32.mxu0 0.0
    %240 = vmatmul.mubr.f32.gmra.mrb[0].mxu0 %v108
    %v241 = vpop.f32.mrb[0].mxu0
    %v242 = vadd.f32 %v80, %v241
    %v243 = vpop.f32.mrb[0].mxu0
    %244 = vmatprep.mubr.f32.mxu0 0.0
    %245 = vmatmul.mubr.f32.gmra.mrb[0].mxu0 %v111
    %v246 = vpop.f32.mrb[0].mxu0
    %v247 = vadd.f32 %v80, %v246
    %v248 = vpop.f32.mrb[0].mxu0
    %249 = vmatprep.mubr.f32.mxu0 0.0
    %250 = vmatmul.mubr.f32.gmra.mrb[0].mxu0 %v114
    %v251 = vpop.f32.mrb[0].mxu0
    %v252 = vadd.f32 %v80, %v251
    %v253 = vpop.f32.mrb[0].mxu0
    %254 = vmatprep.mubr.f32.mxu0 0.0
    %255 = vmatmul.mubr.f32.gmra.mrb[0].mxu0 %v117
    %v256 = vpop.f32.mrb[0].mxu0
    %v257 = vadd.f32 %v80, %v256
    %v258 = vpop.f32.mrb[0].mxu0
    %259 = vmatprep.mubr.f32.mxu0 0.0
    %260 = vmatmul.mubr.f32.gmra.mrb[0].mxu0 %v120
    %v261 = vpop.f32.mrb[0].mxu0
    %v262 = vadd.f32 %v80, %v261
    %v263 = vpop.f32.mrb[0].mxu0
    %264 = vmatprep.mubr.f32.mxu0 0.0
    %265 = vmatmul.mubr.f32.gmra.mrb[0].mxu0 %v123
    %v266 = vpop.f32.mrb[0].mxu0
    %v267 = vadd.f32 %v80, %v266
    %v268 = vpop.f32.mrb[0].mxu0
    %269 = vmatprep.mubr.f32.mxu0 0.0
    %270 = vmatmul.mubr.f32.gmra.mrb[0].mxu0 %v126
    %v271 = vpop.f32.mrb[0].mxu0
    %v272 = vadd.f32 %v80, %v271
    %v273 = vpop.f32.mrb[0].mxu0
    %274 = vmatprep.mubr.f32.mxu0 0.0
    %275 = vmatmul.mubr.f32.gmra.mrb[0].mxu0 %v129
    %v276 = vpop.f32.mrb[0].mxu0
    %v277 = vadd.f32 %v80, %v276
    %v278 = vpop.f32.mrb[0].mxu0
    %279 = vdwg.mxu0
    %vm280 = vcmask 523264
    %v281 = vsel %vm280, %v202, 0.0
    %v282 = vsel %vm280, %v207, 0.0
    %v283 = vadd.f32 %v281, %v282
    %v284 = vsel %vm280, %v212, 0.0
    %v285 = vadd.f32 %v283, %v284
    %v286 = vsel %vm280, %v217, 0.0
    %v287 = vadd.f32 %v285, %v286
    %v288 = vsel %vm280, %v222, 0.0
    %v289 = vadd.f32 %v287, %v288
    %v290 = vsel %vm280, %v227, 0.0
    %v291 = vadd.f32 %v289, %v290
    %v292 = vsel %vm280, %v232, 0.0
    %v293 = vadd.f32 %v291, %v292
    %v294 = vsel %vm280, %v237, 0.0
    %v295 = vadd.f32 %v293, %v294
    %v296 = vsel %vm280, %v242, 0.0
    %v297 = vadd.f32 %v295, %v296
    %v298 = vsel %vm280, %v247, 0.0
    %v299 = vadd.f32 %v297, %v298
    %v300 = vsel %vm280, %v252, 0.0
    %v301 = vadd.f32 %v299, %v300
    %v302 = vsel %vm280, %v257, 0.0
    %v303 = vadd.f32 %v301, %v302
    %v304 = vsel %vm280, %v262, 0.0
    %v305 = vadd.f32 %v303, %v304
    %v306 = vsel %vm280, %v267, 0.0
    %v307 = vadd.f32 %v305, %v306
    %v308 = vsel %vm280, %v272, 0.0
    %v309 = vadd.f32 %v307, %v308
    %v310 = vsel %vm280, %v277, 0.0
    %v311 = vadd.f32 %v309, %v310
    %v312 = vrot.slane %v311, 4
    %v313 = vadd.f32 %v311, %v312
    %v314 = vrot.slane %v313, 2
    %v315 = vadd.f32 %v313, %v314
    %v316 = vrot.slane %v315, 1
    %v317 = vadd.f32 %v315, %v316
    %v318 = vmul.f32 %v317, 0.0078125
    %v319 = vsub.f32 %v202, %v318
    %v320 = vsub.f32 %v207, %v318
    %v321 = vsub.f32 %v212, %v318
    %v322 = vsub.f32 %v217, %v318
    %v323 = vsub.f32 %v222, %v318
    %v324 = vsub.f32 %v227, %v318
    %v325 = vsub.f32 %v232, %v318
    %v326 = vsub.f32 %v237, %v318
    %v327 = vsub.f32 %v242, %v318
    %v328 = vsub.f32 %v247, %v318
    %v329 = vsub.f32 %v252, %v318
    %v330 = vsub.f32 %v257, %v318
    %v331 = vsub.f32 %v262, %v318
    %v332 = vsub.f32 %v267, %v318
    %v333 = vsub.f32 %v272, %v318
    %v334 = vsub.f32 %v277, %v318
    %v335 = vmul.f32 %v319, %v319
    %v336 = vmul.f32 %v320, %v320
    %v337 = vmul.f32 %v321, %v321
    %v338 = vmul.f32 %v322, %v322
    %v339 = vmul.f32 %v323, %v323
    %v340 = vmul.f32 %v324, %v324
    %v341 = vmul.f32 %v325, %v325
    %v342 = vmul.f32 %v326, %v326
    %v343 = vmul.f32 %v327, %v327
    %v344 = vmul.f32 %v328, %v328
    %v345 = vmul.f32 %v329, %v329
    %v346 = vmul.f32 %v330, %v330
    %v347 = vmul.f32 %v331, %v331
    %v348 = vmul.f32 %v332, %v332
    %v349 = vmul.f32 %v333, %v333
    %v350 = vmul.f32 %v334, %v334
    %v351 = vsel %vm280, %v335, 0.0
    %v352 = vsel %vm280, %v336, 0.0
    %v353 = vadd.f32 %v351, %v352
    %v354 = vsel %vm280, %v337, 0.0
    %v355 = vadd.f32 %v353, %v354
    %v356 = vsel %vm280, %v338, 0.0
    %v357 = vadd.f32 %v355, %v356
    %v358 = vsel %vm280, %v339, 0.0
    %v359 = vadd.f32 %v357, %v358
    %v360 = vsel %vm280, %v340, 0.0
    %v361 = vadd.f32 %v359, %v360
    %v362 = vsel %vm280, %v341, 0.0
    %v363 = vadd.f32 %v361, %v362
    %v364 = vsel %vm280, %v342, 0.0
    %v365 = vadd.f32 %v363, %v364
    %v366 = vsel %vm280, %v343, 0.0
    %v367 = vadd.f32 %v365, %v366
    %v368 = vsel %vm280, %v344, 0.0
    %v369 = vadd.f32 %v367, %v368
    %v370 = vsel %vm280, %v345, 0.0
    %v371 = vadd.f32 %v369, %v370
    %v372 = vsel %vm280, %v346, 0.0
    %v373 = vadd.f32 %v371, %v372
    %v374 = vsel %vm280, %v347, 0.0
    %v375 = vadd.f32 %v373, %v374
    %v376 = vsel %vm280, %v348, 0.0
    %v377 = vadd.f32 %v375, %v376
    %v378 = vsel %vm280, %v349, 0.0
    %v379 = vadd.f32 %v377, %v378
    %v380 = vsel %vm280, %v350, 0.0
    %v381 = vadd.f32 %v379, %v380
    %v382 = vrot.slane %v381, 4
    %v383 = vadd.f32 %v381, %v382
    %v384 = vrot.slane %v383, 2
    %v385 = vadd.f32 %v383, %v384
    %v386 = vrot.slane %v385, 1
    %v387 = vadd.f32 %v385, %v386
    %v388 = vmul.f32 %v387, 0.0078125
    %v389 = vadd.f32 %v388, 1e-05
    %v390 = vrsqrt.pop %v389
    %v391 = vmul.f32 %v319, %v390
    %v392 = vmul.f32 %v320, %v390
    %v393 = vmul.f32 %v321, %v390
    %v394 = vmul.f32 %v322, %v390
    %v395 = vmul.f32 %v323, %v390
    %v396 = vmul.f32 %v324, %v390
    %v397 = vmul.f32 %v325, %v390
    %v398 = vmul.f32 %v326, %v390
    %v399 = vmul.f32 %v327, %v390
    %v400 = vmul.f32 %v328, %v390
    %v401 = vmul.f32 %v329, %v390
    %v402 = vmul.f32 %v330, %v390
    %v403 = vmul.f32 %v331, %v390
    %v404 = vmul.f32 %v332, %v390
    %v405 = vmul.f32 %v333, %v390
    %v406 = vmul.f32 %v334, %v390
    %v407 = vld [vmem:[#allocation4] sm:$0x1]
    %v409 = vlaneseq
    %v410 = vshrl.u32 %v409, 7
    %v411 = vsub.s32 0, %v410
    %v412 = vrot.slane %v407, %v411
    %v414 = vmul.f32 %v391, %v412
    %v415 = vmul.f32 %v392, %v412
    %v416 = vmul.f32 %v393, %v412
    %v417 = vmul.f32 %v394, %v412
    %v418 = vmul.f32 %v395, %v412
    %v419 = vmul.f32 %v396, %v412
    %v420 = vmul.f32 %v397, %v412
    %v421 = vmul.f32 %v398, %v412
    %v422 = vmul.f32 %v399, %v412
    %v423 = vmul.f32 %v400, %v412
    %v424 = vmul.f32 %v401, %v412
    %v425 = vmul.f32 %v402, %v412
    %v426 = vmul.f32 %v403, %v412
    %v427 = vmul.f32 %v404, %v412
    %v428 = vmul.f32 %v405, %v412
    %v429 = vmul.f32 %v406, %v412
    %v430 = vld [vmem:[#allocation6] sm:$0x1]
    %v432 = vlaneseq
    %v433 = vshrl.u32 %v432, 7
    %v434 = vsub.s32 0, %v433
    %v435 = vrot.slane %v430, %v434
    %v437 = vadd.f32 %v414, %v435
    %v438 = vadd.f32 %v415, %v435
    %v439 = vadd.f32 %v416, %v435
    %v440 = vadd.f32 %v417, %v435
    %v441 = vadd.f32 %v418, %v435
    %v442 = vadd.f32 %v419, %v435
    %v443 = vadd.f32 %v420, %v435
    %v444 = vadd.f32 %v421, %v435
    %v445 = vadd.f32 %v422, %v435
    %v446 = vadd.f32 %v423, %v435
    %v447 = vadd.f32 %v424, %v435
    %v448 = vadd.f32 %v425, %v435
    %v449 = vadd.f32 %v426, %v435
    %v450 = vadd.f32 %v427, %v435
    %v451 = vadd.f32 %v428, %v435
    %v452 = vadd.f32 %v429, %v435
    %v453 = vmax.f32 %v437, 0.0
    %v454 = vmax.f32 %v438, 0.0
    %v455 = vmax.f32 %v439, 0.0
    %v456 = vmax.f32 %v440, 0.0
    %v457 = vmax.f32 %v441, 0.0
    %v458 = vmax.f32 %v442, 0.0
    %v459 = vmax.f32 %v443, 0.0
    %v460 = vmax.f32 %v444, 0.0
    %v461 = vmax.f32 %v445, 0.0
    %v462 = vmax.f32 %v446, 0.0
    %v463 = vmax.f32 %v447, 0.0
    %v464 = vmax.f32 %v448, 0.0
    %v465 = vmax.f32 %v449, 0.0
    %v466 = vmax.f32 %v450, 0.0
    %v467 = vmax.f32 %v451, 0.0
    %v468 = vmax.f32 %v452, 0.0
    %469 = vst.msk [vmem:[%s5] sm:$0xff] %vm280, %v453
    %470 = vst.msk [vmem:[%s5 + $0x8] sm:$0xff] %vm280, %v454
    %471 = vst.msk [vmem:[%s5 + $0x10] sm:$0xff] %vm280, %v455
    %472 = vst.msk [vmem:[%s5 + $0x18] sm:$0xff] %vm280, %v456
    %473 = vst.msk [vmem:[%s5 + $0x20] sm:$0xff] %vm280, %v457
    %474 = vst.msk [vmem:[%s5 + $0x28] sm:$0xff] %vm280, %v458
    %475 = vst.msk [vmem:[%s5 + $0x30] sm:$0xff] %vm280, %v459
    %476 = vst.msk [vmem:[%s5 + $0x38] sm:$0xff] %vm280, %v460
    %477 = vst.msk [vmem:[%s5 + $0x40] sm:$0xff] %vm280, %v461
    %478 = vst.msk [vmem:[%s5 + $0x48] sm:$0xff] %vm280, %v462
    %479 = vst.msk [vmem:[%s5 + $0x50] sm:$0xff] %vm280, %v463
    %480 = vst.msk [vmem:[%s5 + $0x58] sm:$0xff] %vm280, %v464
    %481 = vst.msk [vmem:[%s5 + $0x60] sm:$0xff] %vm280, %v465
    %482 = vst.msk [vmem:[%s5 + $0x68] sm:$0xff] %vm280, %v466
    %483 = vst.msk [vmem:[%s5 + $0x70] sm:$0xff] %vm280, %v467
    %484 = vst.msk [vmem:[%s5 + $0x78] sm:$0xff] %vm280, %v468
    // Predicated region
    $region34: #{image_encoder_fcn_pallas.4} parent=1 // pred_check
      _
    $region35: #{image_encoder_fcn_pallas.4} parent=1 // pred_check_branch
      %486 = sbr.rel (0) target = $region37
    $region36: #{image_encoder_fcn_pallas.4} parent=1 // pred_region
      _
    $region37: #{image_encoder_fcn_pallas.4} parent=1 // pred_fallthru
      _
    // Predicated region
    $region38: #{image_encoder_fcn_pallas.4} parent=1 // pred_check
      _
    $region39: #{image_encoder_fcn_pallas.4} parent=1 // pred_check_branch
      %488 = sbr.rel (0) target = $region41
    $region40: #{image_encoder_fcn_pallas.4} parent=1 // pred_region
      _
    $region41: #{image_encoder_fcn_pallas.4} parent=1 // pred_fallthru
      _
    %489 = vsyncpa [#allocation3], 1
    %490 = vsyncpa [#allocation5], 1

// kernel: image_encoder_fcn_pallas.5
$region0: #{image_encoder_fcn_pallas.5}
  #allocation0 [shape = 'u32[]', space=smem, size = 0x4, offset = 0x4, fixed_abs, tag = 'smem constant byte address 0x4 - core index']
  #allocation1 [shape = 'u32[144,128]{1,0:T(1,128)}', space=vmem, size = 0x12000, scoped, tag = 'internal scratch']
  %s0 = inlined_call_operand.vmem [shape: f32[32,576], index: 0, kind: input, shape index: {}]
  %s1 = inlined_call_operand.hbm [shape: f32[576,128], index: 1, kind: input, shape index: {}]
  %s2 = inlined_call_operand.hbm [shape: f32[1,128], index: 2, kind: input, shape index: {}]
  %s3 = inlined_call_operand.hbm [shape: f32[1,128], index: 3, kind: input, shape index: {}]
  %s4 = inlined_call_operand.hbm [shape: f32[1,128], index: 4, kind: input, shape index: {}]
  %s5 = inlined_call_operand.vmem [shape: f32[32,128], index: 5, kind: output, shape index: {}]
  %s6 = sld [smem:[#allocation0]]
  $region46: #{image_encoder_fcn_pallas.5} parent=0
    _
  %s8 = ssub.s32 1, %s6
  %s9 = scalar_select 0, %s8, %s6
  $region1: #{image_encoder_fcn_pallas.5} parent=0
    #allocation2 [shape = 'u8[294912]{0}', space=vmem, size = 0x48000, scoped, tag = 'input window, operand 1, single buffered']
    #allocation3 [shape = 's32[1]{0}', space=sflag, size = 0x4, scoped, tag = 'scoped memory for image_encoder_fcn_pallas.5']
    #allocation4 [shape = 'u8[512]{0}', space=vmem, size = 0x400, scoped, tag = 'input window, operand 2, single buffered']
    #allocation5 [shape = 's32[1]{0}', space=sflag, size = 0x4, scoped, tag = 'scoped memory for image_encoder_fcn_pallas.5']
    #allocation6 [shape = 'u8[512]{0}', space=vmem, size = 0x400, scoped, tag = 'input window, operand 3, single buffered']
    #allocation7 [shape = 'u8[512]{0}', space=vmem, size = 0x400, scoped, tag = 'input window, operand 4, single buffered']
    #allocation8 [shape = 's32[1]{0}', space=sflag, size = 0x4, scoped, tag = 'scoped memory for image_encoder_fcn_pallas.5']
    %10 = vsyncpa [#allocation3], 0
    %11 = vsyncpa [#allocation5], 0
    %12 = vsyncpa [#allocation8], 0
    // Predicated region
    $region2: #{image_encoder_fcn_pallas.5} parent=1 // pred_check
      _
    $region3: #{image_encoder_fcn_pallas.5} parent=1 // pred_check_branch
      %14 = sbr.rel (0) target = $region5
    $region4: #{image_encoder_fcn_pallas.5} parent=1 // pred_region
      _
    $region5: #{image_encoder_fcn_pallas.5} parent=1 // pred_fallthru
      _
    // Predicated region
    $region6: #{image_encoder_fcn_pallas.5} parent=1 // pred_check
      _
    $region7: #{image_encoder_fcn_pallas.5} parent=1 // pred_check_branch
      %16 = sbr.rel (0) target = $region9
    $region8: #{image_encoder_fcn_pallas.5} parent=1 // pred_region
      %s18 = ssub.s32 9216, 9216
      %19 = vsyncadd [#allocation3], %s18
      %s20 = sshll.u32 [#allocation2], 4
      %s21 = int_to_ptr.vmem [resolvable:$true] %s20
      %26 = dma.hbm_to_vmem [thread:$0]  %s1, 9216, %s21, [#allocation3], 128, 128, 8
    $region9: #{image_encoder_fcn_pallas.5} parent=1 // pred_fallthru
      _
    // Predicated region
    $region10: #{image_encoder_fcn_pallas.5} parent=1 // pred_check
      _
    $region11: #{image_encoder_fcn_pallas.5} parent=1 // pred_check_branch
      %28 = sbr.rel (0) target = $region13
    $region12: #{image_encoder_fcn_pallas.5} parent=1 // pred_region
      %s30 = ssub.s32 16, 16
      %31 = vsyncadd [#allocation5], %s30
      %s33 = sshll.u32 [#allocation4], 4
      %s34 = int_to_ptr.vmem [resolvable:$true] %s33
      %36 = dma.hbm_to_vmem [thread:$0]  %s2, 16, %s34, [#allocation5]
    $region13: #{image_encoder_fcn_pallas.5} parent=1 // pred_fallthru
      _
    // Predicated region
    $region14: #{image_encoder_fcn_pallas.5} parent=1 // pred_check
      _
    $region15: #{image_encoder_fcn_pallas.5} parent=1 // pred_check_branch
      %38 = sbr.rel (0) target = $region17
    $region16: #{image_encoder_fcn_pallas.5} parent=1 // pred_region
      %s40 = ssub.s32 16, 16
      %41 = vsyncadd [#allocation5], %s40
      %s43 = sshll.u32 [#allocation6], 4
      %s44 = int_to_ptr.vmem [resolvable:$true] %s43
      %46 = dma.hbm_to_vmem [thread:$0]  %s3, 16, %s44, [#allocation5]
    $region17: #{image_encoder_fcn_pallas.5} parent=1 // pred_fallthru
      _
    // Predicated region
    $region18: #{image_encoder_fcn_pallas.5} parent=1 // pred_check
      _
    $region19: #{image_encoder_fcn_pallas.5} parent=1 // pred_check_branch
      %48 = sbr.rel (0) target = $region21
    $region20: #{image_encoder_fcn_pallas.5} parent=1 // pred_region
      %s50 = ssub.s32 16, 16
      %51 = vsyncadd [#allocation8], %s50
      %s53 = sshll.u32 [#allocation7], 4
      %s54 = int_to_ptr.vmem [resolvable:$true] %s53
      %56 = dma.hbm_to_vmem [thread:$0]  %s4, 16, %s54, [#allocation8]
    $region21: #{image_encoder_fcn_pallas.5} parent=1 // pred_fallthru
      _
    // Predicated region
    $region22: #{image_encoder_fcn_pallas.5} parent=1 // pred_check
      _
    $region23: #{image_encoder_fcn_pallas.5} parent=1 // pred_check_branch
      %58 = sbr.rel (0) target = $region25
    $region24: #{image_encoder_fcn_pallas.5} parent=1 // pred_region
      %59 = dma.done [#allocation3], 9216
    $region25: #{image_encoder_fcn_pallas.5} parent=1 // pred_fallthru
      _
    // Predicated region
    $region26: #{image_encoder_fcn_pallas.5} parent=1 // pred_check
      _
    $region27: #{image_encoder_fcn_pallas.5} parent=1 // pred_check_branch
      %61 = sbr.rel (0) target = $region29
    $region28: #{image_encoder_fcn_pallas.5} parent=1 // pred_region
      %62 = dma.done [#allocation5], 16
    $region29: #{image_encoder_fcn_pallas.5} parent=1 // pred_fallthru
      _
    // Predicated region
    $region30: #{image_encoder_fcn_pallas.5} parent=1 // pred_check
      _
    $region31: #{image_encoder_fcn_pallas.5} parent=1 // pred_check_branch
      %64 = sbr.rel (0) target = $region33
    $region32: #{image_encoder_fcn_pallas.5} parent=1 // pred_region
      %65 = dma.done [#allocation5], 16
    $region33: #{image_encoder_fcn_pallas.5} parent=1 // pred_fallthru
      _
    // Predicated region
    $region34: #{image_encoder_fcn_pallas.5} parent=1 // pred_check
      _
    $region35: #{image_encoder_fcn_pallas.5} parent=1 // pred_check_branch
      %67 = sbr.rel (0) target = $region37
    $region36: #{image_encoder_fcn_pallas.5} parent=1 // pred_region
      %68 = dma.done [#allocation8], 16
    $region37: #{image_encoder_fcn_pallas.5} parent=1 // pred_fallthru
      _
    %v69 = vld [vmem:[%s0] sm:$0xff]
    %v70 = vld [vmem:[%s0 + $0x8] sm:$0xff]
    %v71 = vld [vmem:[%s0 + $0x10] sm:$0xff]
    %v72 = vld [vmem:[%s0 + $0x18] sm:$0xff]
    %v73 = vld [vmem:[%s0 + $0x20] sm:$0xff]
    %v74 = vld [vmem:[%s0 + $0x28] sm:$0xff]
    %v75 = vld [vmem:[%s0 + $0x30] sm:$0xff]
    %v76 = vld [vmem:[%s0 + $0x38] sm:$0xff]
    %v77 = vld [vmem:[%s0 + $0x40] sm:$0xff]
    %v78 = vld [vmem:[%s0 + $0x48] sm:$0xff]
    %v79 = vld [vmem:[%s0 + $0x50] sm:$0xff]
    %v80 = vld [vmem:[%s0 + $0x58] sm:$0xff]
    %v81 = vld [vmem:[%s0 + $0x60] sm:$0xff]
    %v82 = vld [vmem:[%s0 + $0x68] sm:$0xff]
    %v83 = vld [vmem:[%s0 + $0x70] sm:$0xff]
    %v84 = vld [vmem:[%s0 + $0x78] sm:$0xff]
    %v85 = vld [vmem:[%s0 + $0x80] sm:$0xff]
    %v86 = vld [vmem:[%s0 + $0x88] sm:$0xff]
    %v87 = vld [vmem:[%s0 + $0x90] sm:$0xff]
    %v88 = vld [vmem:[%s0 + $0x98] sm:$0xff]
    %v89 = vld [vmem:[#allocation2] sm:$0xff]
    %v90 = vld [vmem:[#allocation2 + $0x8] sm:$0xff]
    %v91 = vld [vmem:[#allocation2 + $0x10] sm:$0xff]
    %v92 = vld [vmem:[#allocation2 + $0x18] sm:$0xff]
    %v93 = vld [vmem:[#allocation2 + $0x20] sm:$0xff]
    %v94 = vld [vmem:[#allocation2 + $0x28] sm:$0xff]
    %v95 = vld [vmem:[#allocation2 + $0x30] sm:$0xff]
    %v96 = vld [vmem:[#allocation2 + $0x38] sm:$0xff]
    %v97 = vld [vmem:[#allocation2 + $0x40] sm:$0xff]
    %v98 = vld [vmem:[#allocation2 + $0x48] sm:$0xff]
    %v99 = vld [vmem:[#allocation2 + $0x50] sm:$0xff]
    %v100 = vld [vmem:[#allocation2 + $0x58] sm:$0xff]
    %v101 = vld [vmem:[#allocation2 + $0x60] sm:$0xff]
    %v102 = vld [vmem:[#allocation2 + $0x68] sm:$0xff]
    %v103 = vld [vmem:[#allocation2 + $0x70] sm:$0xff]
    %v104 = vld [vmem:[#allocation2 + $0x78] sm:$0xff]
    %v105 = vld [vmem:[#allocation2 + $0x80] sm:$0xff]
    %v106 = vld [vmem:[#allocation2 + $0x88] sm:$0xff]
    %v107 = vld [vmem:[#allocation2 + $0x90] sm:$0xff]
    %v108 = vld [vmem:[#allocation2 + $0x98] sm:$0xff]
    %v109 = vld [vmem:[#allocation2 + $0xa0] sm:$0xff]
    %v110 = vld [vmem:[#allocation2 + $0xa8] sm:$0xff]
    %v111 = vld [vmem:[#allocation2 + $0xb0] sm:$0xff]
    %v112 = vld [vmem:[#allocation2 + $0xb8] sm:$0xff]
    %v113 = vld [vmem:[#allocation2 + $0xc0] sm:$0xff]
    %v114 = vld [vmem:[#allocation2 + $0xc8] sm:$0xff]
    %v115 = vld [vmem:[#allocation2 + $0xd0] sm:$0xff]
    %v116 = vld [vmem:[#allocation2 + $0xd8] sm:$0xff]
    %v117 = vld [vmem:[#allocation2 + $0xe0] sm:$0xff]
    %v118 = vld [vmem:[#allocation2 + $0xe8] sm:$0xff]
    %v119 = vld [vmem:[#allocation2 + $0xf0] sm:$0xff]
    %v120 = vld [vmem:[#allocation2 + $0xf8] sm:$0xff]
    %v121 = vld [vmem:[#allocation2 + $0x100] sm:$0xff]
    %v122 = vld [vmem:[#allocation2 + $0x108] sm:$0xff]
    %v123 = vld [vmem:[#allocation2 + $0x110] sm:$0xff]
    %v124 = vld [vmem:[#allocation2 + $0x118] sm:$0xff]
    %v125 = vld [vmem:[#allocation2 + $0x120] sm:$0xff]
    %v126 = vld [vmem:[#allocation2 + $0x128] sm:$0xff]
    %v127 = vld [vmem:[#allocation2 + $0x130] sm:$0xff]
    %v128 = vld [vmem:[#allocation2 + $0x138] sm:$0xff]
    %v129 = vld [vmem:[#allocation2 + $0x140] sm:$0xff]
    %v130 = vld [vmem:[#allocation2 + $0x148] sm:$0xff]
    %v131 = vld [vmem:[#allocation2 + $0x150] sm:$0xff]
    %v132 = vld [vmem:[#allocation2 + $0x158] sm:$0xff]
    %v133 = vld [vmem:[#allocation2 + $0x160] sm:$0xff]
    %v134 = vld [vmem:[#allocation2 + $0x168] sm:$0xff]
    %v135 = vld [vmem:[#allocation2 + $0x170] sm:$0xff]
    %v136 = vld [vmem:[#allocation2 + $0x178] sm:$0xff]
    %v137 = vld [vmem:[#allocation2 + $0x180] sm:$0xff]
    %v138 = vld [vmem:[#allocation2 + $0x188] sm:$0xff]
    %v139 = vld [vmem:[#allocation2 + $0x190] sm:$0xff]
    %v140 = vld [vmem:[#allocation2 + $0x198] sm:$0xff]
    %v141 = vld [vmem:[#allocation2 + $0x1a0] sm:$0xff]
    %v142 = vld [vmem:[#allocation2 + $0x1a8] sm:$0xff]
    %v143 = vld [vmem:[#allocation2 + $0x1b0] sm:$0xff]
    %v144 = vld [vmem:[#allocation2 + $0x1b8] sm:$0xff]
    %v145 = vld [vmem:[#allocation2 + $0x1c0] sm:$0xff]
    %v146 = vld [vmem:[#allocation2 + $0x1c8] sm:$0xff]
    %v147 = vld [vmem:[#allocation2 + $0x1d0] sm:$0xff]
    %v148 = vld [vmem:[#allocation2 + $0x1d8] sm:$0xff]
    %v149 = vld [vmem:[#allocation2 + $0x1e0] sm:$0xff]
    %v150 = vld [vmem:[#allocation2 + $0x1e8] sm:$0xff]
    %v151 = vld [vmem:[#allocation2 + $0x1f0] sm:$0xff]
    %v152 = vld [vmem:[#allocation2 + $0x1f8] sm:$0xff]
    %v153 = vld [vmem:[#allocation2 + $0x200] sm:$0xff]
    %v154 = vld [vmem:[#allocation2 + $0x208] sm:$0xff]
    %v155 = vld [vmem:[#allocation2 + $0x210] sm:$0xff]
    %v156 = vld [vmem:[#allocation2 + $0x218] sm:$0xff]
    %v157 = vld [vmem:[#allocation2 + $0x220] sm:$0xff]
    %v158 = vld [vmem:[#allocation2 + $0x228] sm:$0xff]
    %v159 = vld [vmem:[#allocation2 + $0x230] sm:$0xff]
    %v160 = vld [vmem:[#allocation2 + $0x238] sm:$0xff]
    %v161 = vld [vmem:[#allocation4] sm:$0x1]
    %v163 = vlaneseq
    %v164 = vshrl.u32 %v163, 7
    %v165 = vsub.s32 0, %v164
    %v166 = vrot.slane %v161, %v165
    %vm168 = vcmask 523264
    %v170 = vsel %vm168, %v73, 0
    %v173 = vsel %vm168, %v78, 0
    %v176 = vsel %vm168, %v83, 0
    %v179 = vsel %vm168, %v88, 0
    %181 = vmatprep.subr.mxu0 0.0
    %182 = vmatpush1.msra.mxu0 %v89
    %183 = vmatprep.subr.mxu0 0.0
    %184 = vmatpush1.msra.mxu0 %v90
    %185 = vmatprep.subr.mxu0 0.0
    %186 = vmatpush1.msra.mxu0 %v91
    %187 = vmatprep.subr.mxu0 0.0
    %188 = vmatpush1.msra.mxu0 %v92
    %189 = vmatprep.subr.mxu0 0.0
    %190 = vmatpush1.msra.mxu0 %v93
    %191 = vmatprep.subr.mxu0 0.0
    %192 = vmatpush1.msra.mxu0 %v94
    %193 = vmatprep.subr.mxu0 0.0
    %194 = vmatpush1.msra.mxu0 %v95
    %195 = vmatprep.subr.mxu0 0.0
    %196 = vmatpush1.msra.mxu0 %v96
    %197 = vmatprep.subr.mxu0 0.0
    %198 = vmatpush1.msra.mxu0 %v97
    %199 = vmatprep.subr.mxu0 0.0
    %200 = vmatpush1.msra.mxu0 %v98
    %201 = vmatprep.subr.mxu0 0.0
    %202 = vmatpush1.msra.mxu0 %v99
    %203 = vmatprep.subr.mxu0 0.0
    %204 = vmatpush1.msra.mxu0 %v100
    %205 = vmatprep.subr.mxu0 0.0
    %206 = vmatpush1.msra.mxu0 %v101
    %207 = vmatprep.subr.mxu0 0.0
    %208 = vmatpush1.msra.mxu0 %v102
    %209 = vmatprep.subr.mxu0 0.0
    %210 = vmatpush1.msra.mxu0 %v103
    %211 = vmatprep.subr.mxu0 0.0
    %212 = vmatpush1.msra.mxu0 %v104
    %213 = vmatprep.subr.mxu0 0.0
    %214 = vmatpush1.msra.mxu0 %v105
    %215 = vmatprep.subr.mxu0 0.0
    %216 = vmatpush1.msra.mxu0 %v106
    %217 = vmatprep.subr.mxu0 0.0
    %218 = vmatpush1.msra.mxu0 %v107
    %219 = vmatprep.subr.mxu0 0.0
    %220 = vmatpush1.msra.mxu0 %v108
    %221 = vmatprep.subr.mxu0 0.0
    %222 = vmatpush1.msra.mxu0 %v109
    %223 = vmatprep.subr.mxu0 0.0
    %224 = vmatpush1.msra.mxu0 %v110
    %225 = vmatprep.subr.mxu0 0.0
    %226 = vmatpush1.msra.mxu0 %v111
    %227 = vmatprep.subr.mxu0 0.0
    %228 = vmatpush1.msra.mxu0 %v112
    %229 = vmatprep.subr.mxu0 0.0
    %230 = vmatpush1.msra.mxu0 %v113
    %231 = vmatprep.subr.mxu0 0.0
    %232 = vmatpush1.msra.mxu0 %v114
    %233 = vmatprep.subr.mxu0 0.0
    %234 = vmatpush1.msra.mxu0 %v115
    %235 = vmatprep.subr.mxu0 0.0
    %236 = vmatpush1.msra.mxu0 %v116
    %237 = vmatprep.subr.mxu0 0.0
    %238 = vmatpush1.msra.mxu0 %v117
    %239 = vmatprep.subr.mxu0 0.0
    %240 = vmatpush1.msra.mxu0 %v118
    %241 = vmatprep.subr.mxu0 0.0
    %242 = vmatpush1.msra.mxu0 %v119
    %243 = vmatprep.subr.mxu0 0.0
    %244 = vmatpush1.msra.mxu0 %v120
    %245 = vmatprep.mubr.f32.mxu0 %v70
    %246 = vmatmul.mubr.f32.gmra.mrb[0].mxu0 %v69
    %v247 = vpop.f32.mrb[0].mxu0
    %v248 = vadd.f32 %v166, %v247
    %v249 = vpop.f32.mrb[0].mxu0
    %250 = vmatprep.mubr.f32.mxu0 %v75
    %251 = vmatmul.mubr.f32.gmra.mrb[0].mxu0 %v74
    %v252 = vpop.f32.mrb[0].mxu0
    %v253 = vadd.f32 %v166, %v252
    %v254 = vpop.f32.mrb[0].mxu0
    %255 = vmatprep.mubr.f32.mxu0 %v80
    %256 = vmatmul.mubr.f32.gmra.mrb[0].mxu0 %v79
    %v257 = vpop.f32.mrb[0].mxu0
    %v258 = vadd.f32 %v166, %v257
    %v259 = vpop.f32.mrb[0].mxu0
    %260 = vmatprep.mubr.f32.mxu0 %v85
    %261 = vmatmul.mubr.f32.gmra.mrb[0].mxu0 %v84
    %v262 = vpop.f32.mrb[0].mxu0
    %v263 = vadd.f32 %v166, %v262
    %v264 = vpop.f32.mrb[0].mxu0
    %265 = vdwg.mxu0
    %266 = vmatprep.subr.mxu0 0.0
    %267 = vmatpush1.msra.mxu0 %v121
    %268 = vmatprep.subr.mxu0 0.0
    %269 = vmatpush1.msra.mxu0 %v122
    %270 = vmatprep.subr.mxu0 0.0
    %271 = vmatpush1.msra.mxu0 %v123
    %272 = vmatprep.subr.mxu0 0.0
    %273 = vmatpush1.msra.mxu0 %v124
    %274 = vmatprep.subr.mxu0 0.0
    %275 = vmatpush1.msra.mxu0 %v125
    %276 = vmatprep.subr.mxu0 0.0
    %277 = vmatpush1.msra.mxu0 %v126
    %278 = vmatprep.subr.mxu0 0.0
    %279 = vmatpush1.msra.mxu0 %v127
    %280 = vmatprep.subr.mxu0 0.0
    %281 = vmatpush1.msra.mxu0 %v128
    %282 = vmatprep.subr.mxu0 0.0
    %283 = vmatpush1.msra.mxu0 %v129
    %284 = vmatprep.subr.mxu0 0.0
    %285 = vmatpush1.msra.mxu0 %v130
    %286 = vmatprep.subr.mxu0 0.0
    %287 = vmatpush1.msra.mxu0 %v131
    %288 = vmatprep.subr.mxu0 0.0
    %289 = vmatpush1.msra.mxu0 %v132
    %290 = vmatprep.subr.mxu0 0.0
    %291 = vmatpush1.msra.mxu0 %v133
    %292 = vmatprep.subr.mxu0 0.0
    %293 = vmatpush1.msra.mxu0 %v134
    %294 = vmatprep.subr.mxu0 0.0
    %295 = vmatpush1.msra.mxu0 %v135
    %296 = vmatprep.subr.mxu0 0.0
    %297 = vmatpush1.msra.mxu0 %v136
    %298 = vmatprep.subr.mxu0 0.0
    %299 = vmatpush1.msra.mxu0 %v137
    %300 = vmatprep.subr.mxu0 0.0
    %301 = vmatpush1.msra.mxu0 %v138
    %302 = vmatprep.subr.mxu0 0.0
    %303 = vmatpush1.msra.mxu0 %v139
    %304 = vmatprep.subr.mxu0 0.0
    %305 = vmatpush1.msra.mxu0 %v140
    %306 = vmatprep.subr.mxu0 0.0
    %307 = vmatpush1.msra.mxu0 %v141
    %308 = vmatprep.subr.mxu0 0.0
    %309 = vmatpush1.msra.mxu0 %v142
    %310 = vmatprep.subr.mxu0 0.0
    %311 = vmatpush1.msra.mxu0 %v143
    %312 = vmatprep.subr.mxu0 0.0
    %313 = vmatpush1.msra.mxu0 %v144
    %314 = vmatprep.subr.mxu0 0.0
    %315 = vmatpush1.msra.mxu0 %v145
    %316 = vmatprep.subr.mxu0 0.0
    %317 = vmatpush1.msra.mxu0 %v146
    %318 = vmatprep.subr.mxu0 0.0
    %319 = vmatpush1.msra.mxu0 %v147
    %320 = vmatprep.subr.mxu0 0.0
    %321 = vmatpush1.msra.mxu0 %v148
    %322 = vmatprep.subr.mxu0 0.0
    %323 = vmatpush1.msra.mxu0 %v149
    %324 = vmatprep.subr.mxu0 0.0
    %325 = vmatpush1.msra.mxu0 %v150
    %326 = vmatprep.subr.mxu0 0.0
    %327 = vmatpush1.msra.mxu0 %v151
    %328 = vmatprep.subr.mxu0 0.0
    %329 = vmatpush1.msra.mxu0 %v152
    %330 = vmatprep.mubr.f32.mxu0 %v72
    %331 = vmatmul.mubr.f32.gmra.mrb[0].mxu0 %v71
    %v332 = vpop.f32.mrb[0].mxu0
    %v333 = vadd.f32 %v248, %v332
    %v334 = vpop.f32.mrb[0].mxu0
    %335 = vmatprep.mubr.f32.mxu0 %v77
    %336 = vmatmul.mubr.f32.gmra.mrb[0].mxu0 %v76
    %v337 = vpop.f32.mrb[0].mxu0
    %v338 = vadd.f32 %v253, %v337
    %v339 = vpop.f32.mrb[0].mxu0
    %340 = vmatprep.mubr.f32.mxu0 %v82
    %341 = vmatmul.mubr.f32.gmra.mrb[0].mxu0 %v81
    %v342 = vpop.f32.mrb[0].mxu0
    %v343 = vadd.f32 %v258, %v342
    %v344 = vpop.f32.mrb[0].mxu0
    %345 = vmatprep.mubr.f32.mxu0 %v87
    %346 = vmatmul.mubr.f32.gmra.mrb[0].mxu0 %v86
    %v347 = vpop.f32.mrb[0].mxu0
    %v348 = vadd.f32 %v263, %v347
    %v349 = vpop.f32.mrb[0].mxu0
    %350 = vdwg.mxu0
    %351 = vmatprep.subr.mxu0 0.0
    %352 = vmatpush1.msra.mxu0 %v153
    %353 = vmatprep.subr.mxu0 0.0
    %354 = vmatpush1.msra.mxu0 %v154
    %355 = vmatprep.subr.mxu0 0.0
    %356 = vmatpush1.msra.mxu0 %v155
    %357 = vmatprep.subr.mxu0 0.0
    %358 = vmatpush1.msra.mxu0 %v156
    %359 = vmatprep.subr.mxu0 0.0
    %360 = vmatpush1.msra.mxu0 %v157
    %361 = vmatprep.subr.mxu0 0.0
    %362 = vmatpush1.msra.mxu0 %v158
    %363 = vmatprep.subr.mxu0 0.0
    %364 = vmatpush1.msra.mxu0 %v159
    %365 = vmatprep.subr.mxu0 0.0
    %366 = vmatpush1.msra.mxu0 %v160
    %367 = vmatprep.subr.mxu0 0.0
    %368 = vmatpush1.msra.mxu0 0.0
    %369 = vmatprep.subr.mxu0 0.0
    %370 = vmatpush1.msra.mxu0 0.0
    %371 = vmatprep.subr.mxu0 0.0
    %372 = vmatpush1.msra.mxu0 0.0
    %373 = vmatprep.subr.mxu0 0.0
    %374 = vmatpush1.msra.mxu0 0.0
    %375 = vmatprep.subr.mxu0 0.0
    %376 = vmatpush1.msra.mxu0 0.0
    %377 = vmatprep.subr.mxu0 0.0
    %378 = vmatpush1.msra.mxu0 0.0
    %379 = vmatprep.subr.mxu0 0.0
    %380 = vmatpush1.msra.mxu0 0.0
    %381 = vmatprep.subr.mxu0 0.0
    %382 = vmatpush1.msra.mxu0 0.0
    %383 = vmatprep.subr.mxu0 0.0
    %384 = vmatpush1.msra.mxu0 0.0
    %385 = vmatprep.subr.mxu0 0.0
    %386 = vmatpush1.msra.mxu0 0.0
    %387 = vmatprep.subr.mxu0 0.0
    %388 = vmatpush1.msra.mxu0 0.0
    %389 = vmatprep.subr.mxu0 0.0
    %390 = vmatpush1.msra.mxu0 0.0
    %391 = vmatprep.subr.mxu0 0.0
    %392 = vmatpush1.msra.mxu0 0.0
    %393 = vmatprep.subr.mxu0 0.0
    %394 = vmatpush1.msra.mxu0 0.0
    %395 = vmatprep.subr.mxu0 0.0
    %396 = vmatpush1.msra.mxu0 0.0
    %397 = vmatprep.subr.mxu0 0.0
    %398 = vmatpush1.msra.mxu0 0.0
    %399 = vmatprep.subr.mxu0 0.0
    %400 = vmatpush1.msra.mxu0 0.0
    %401 = vmatprep.subr.mxu0 0.0
    %402 = vmatpush1.msra.mxu0 0.0
    %403 = vmatprep.subr.mxu0 0.0
    %404 = vmatpush1.msra.mxu0 0.0
    %405 = vmatprep.subr.mxu0 0.0
    %406 = vmatpush1.msra.mxu0 0.0
    %407 = vmatprep.subr.mxu0 0.0
    %408 = vmatpush1.msra.mxu0 0.0
    %409 = vmatprep.subr.mxu0 0.0
    %410 = vmatpush1.msra.mxu0 0.0
    %411 = vmatprep.subr.mxu0 0.0
    %412 = vmatpush1.msra.mxu0 0.0
    %413 = vmatprep.subr.mxu0 0.0
    %414 = vmatpush1.msra.mxu0 0.0
    %415 = vmatprep.mubr.f32.mxu0 0.0
    %416 = vmatmul.mubr.f32.gmra.mrb[0].mxu0 %v170
    %v417 = vpop.f32.mrb[0].mxu0
    %v418 = vadd.f32 %v333, %v417
    %v419 = vpop.f32.mrb[0].mxu0
    %420 = vmatprep.mubr.f32.mxu0 0.0
    %421 = vmatmul.mubr.f32.gmra.mrb[0].mxu0 %v173
    %v422 = vpop.f32.mrb[0].mxu0
    %v423 = vadd.f32 %v338, %v422
    %v424 = vpop.f32.mrb[0].mxu0
    %425 = vmatprep.mubr.f32.mxu0 0.0
    %426 = vmatmul.mubr.f32.gmra.mrb[0].mxu0 %v176
    %v427 = vpop.f32.mrb[0].mxu0
    %v428 = vadd.f32 %v343, %v427
    %v429 = vpop.f32.mrb[0].mxu0
    %430 = vmatprep.mubr.f32.mxu0 0.0
    %431 = vmatmul.mubr.f32.gmra.mrb[0].mxu0 %v179
    %v432 = vpop.f32.mrb[0].mxu0
    %v433 = vadd.f32 %v348, %v432
    %v434 = vpop.f32.mrb[0].mxu0
    %435 = vdwg.mxu0
    %v436 = vadd.f32 %v418, %v423
    %v437 = vadd.f32 %v436, %v428
    %v438 = vadd.f32 %v437, %v433
    %v439 = vrot.slane %v438, 4
    %v440 = vadd.f32 %v438, %v439
    %v441 = vrot.slane %v440, 2
    %v442 = vadd.f32 %v440, %v441
    %v443 = vrot.slane %v442, 1
    %v444 = vadd.f32 %v442, %v443
    %v445 = vmul.f32 %v444, 0.03125
    %v446 = vsub.f32 %v418, %v445
    %v447 = vsub.f32 %v423, %v445
    %v448 = vsub.f32 %v428, %v445
    %v449 = vsub.f32 %v433, %v445
    %v450 = vmul.f32 %v446, %v446
    %v451 = vmul.f32 %v447, %v447
    %v452 = vmul.f32 %v448, %v448
    %v453 = vmul.f32 %v449, %v449
    %v454 = vadd.f32 %v450, %v451
    %v455 = vadd.f32 %v454, %v452
    %v456 = vadd.f32 %v455, %v453
    %v457 = vrot.slane %v456, 4
    %v458 = vadd.f32 %v456, %v457
    %v459 = vrot.slane %v458, 2
    %v460 = vadd.f32 %v458, %v459
    %v461 = vrot.slane %v460, 1
    %v462 = vadd.f32 %v460, %v461
    %v463 = vmul.f32 %v462, 0.03125
    %v464 = vadd.f32 %v463, 1e-05
    %v465 = vrsqrt.pop %v464
    %v466 = vmul.f32 %v446, %v465
    %v467 = vmul.f32 %v447, %v465
    %v468 = vmul.f32 %v448, %v465
    %v469 = vmul.f32 %v449, %v465
    %v470 = vld [vmem:[#allocation6] sm:$0x1]
    %v472 = vlaneseq
    %v473 = vshrl.u32 %v472, 7
    %v474 = vsub.s32 0, %v473
    %v475 = vrot.slane %v470, %v474
    %v477 = vmul.f32 %v466, %v475
    %v478 = vmul.f32 %v467, %v475
    %v479 = vmul.f32 %v468, %v475
    %v480 = vmul.f32 %v469, %v475
    %v481 = vld [vmem:[#allocation7] sm:$0x1]
    %v483 = vlaneseq
    %v484 = vshrl.u32 %v483, 7
    %v485 = vsub.s32 0, %v484
    %v486 = vrot.slane %v481, %v485
    %v488 = vadd.f32 %v477, %v486
    %v489 = vadd.f32 %v478, %v486
    %v490 = vadd.f32 %v479, %v486
    %v491 = vadd.f32 %v480, %v486
    %v492 = vmax.f32 %v488, 0.0
    %v493 = vmax.f32 %v489, 0.0
    %v494 = vmax.f32 %v490, 0.0
    %v495 = vmax.f32 %v491, 0.0
    %496 = vst [vmem:[%s5] sm:$0xff] %v492
    %497 = vst [vmem:[%s5 + $0x8] sm:$0xff] %v493
    %498 = vst [vmem:[%s5 + $0x10] sm:$0xff] %v494
    %499 = vst [vmem:[%s5 + $0x18] sm:$0xff] %v495
    // Predicated region
    $region38: #{image_encoder_fcn_pallas.5} parent=1 // pred_check
      _
    $region39: #{image_encoder_fcn_pallas.5} parent=1 // pred_check_branch
      %501 = sbr.rel (0) target = $region41
    $region40: #{image_encoder_fcn_pallas.5} parent=1 // pred_region
      _
    $region41: #{image_encoder_fcn_pallas.5} parent=1 // pred_fallthru
      _
    // Predicated region
    $region42: #{image_encoder_fcn_pallas.5} parent=1 // pred_check
      _
    $region43: #{image_encoder_fcn_pallas.5} parent=1 // pred_check_branch
      %503 = sbr.rel (0) target = $region45
    $region44: #{image_encoder_fcn_pallas.5} parent=1 // pred_region
      _
    $region45: #{image_encoder_fcn_pallas.5} parent=1 // pred_fallthru
      _
    %504 = vsyncpa [#allocation3], 1
    %505 = vsyncpa [#allocation5], 1
    %506 = vsyncpa [#allocation8], 1

// kernel: image_encoder_fcn_pallas.6
$region0: #{image_encoder_fcn_pallas.6}
  #allocation0 [shape = 'u32[]', space=smem, size = 0x4, offset = 0x4, fixed_abs, tag = 'smem constant byte address 0x4 - core index']
  #allocation1 [shape = 'u32[144,128]{1,0:T(1,128)}', space=vmem, size = 0x12000, scoped, tag = 'internal scratch']
  %s0 = inlined_call_operand.vmem [shape: f32[8,1152], index: 0, kind: input, shape index: {}]
  %s1 = inlined_call_operand.vmem [shape: f32[1152,256], index: 1, kind: input, shape index: {}]
  %s2 = inlined_call_operand.vmem [shape: f32[1,256], index: 2, kind: input, shape index: {}]
  %s3 = inlined_call_operand.vmem [shape: f32[1,256], index: 3, kind: input, shape index: {}]
  %s4 = inlined_call_operand.vmem [shape: f32[1,256], index: 4, kind: input, shape index: {}]
  %s5 = inlined_call_operand.vmem [shape: f32[8,256], index: 5, kind: output, shape index: {}]
  %s6 = sld [smem:[#allocation0]]
  $region30: #{image_encoder_fcn_pallas.6} parent=0
    _
  %s8 = ssub.s32 1, %s6
  %s9 = scalar_select 0, %s8, %s6
  // Predicated region
  $region2: #{image_encoder_fcn_pallas.6} parent=0 // pred_check
    _
  $region3: #{image_encoder_fcn_pallas.6} parent=0 // pred_check_branch
    %11 = sbr.rel (0) target = $region5
  $region4: #{image_encoder_fcn_pallas.6} parent=0 // pred_region
    _
  $region5: #{image_encoder_fcn_pallas.6} parent=0 // pred_fallthru
    _
  // Predicated region
  $region6: #{image_encoder_fcn_pallas.6} parent=0 // pred_check
    _
  $region7: #{image_encoder_fcn_pallas.6} parent=0 // pred_check_branch
    %13 = sbr.rel (0) target = $region9
  $region8: #{image_encoder_fcn_pallas.6} parent=0 // pred_region
    _
  $region9: #{image_encoder_fcn_pallas.6} parent=0 // pred_fallthru
    _
  // Predicated region
  $region10: #{image_encoder_fcn_pallas.6} parent=0 // pred_check
    _
  $region11: #{image_encoder_fcn_pallas.6} parent=0 // pred_check_branch
    %15 = sbr.rel (0) target = $region13
  $region12: #{image_encoder_fcn_pallas.6} parent=0 // pred_region
    _
  $region13: #{image_encoder_fcn_pallas.6} parent=0 // pred_fallthru
    _
  // Predicated region
  $region14: #{image_encoder_fcn_pallas.6} parent=0 // pred_check
    _
  $region15: #{image_encoder_fcn_pallas.6} parent=0 // pred_check_branch
    %17 = sbr.rel (0) target = $region17
  $region16: #{image_encoder_fcn_pallas.6} parent=0 // pred_region
    _
  $region17: #{image_encoder_fcn_pallas.6} parent=0 // pred_fallthru
    _
  // Predicated region
  $region18: #{image_encoder_fcn_pallas.6} parent=0 // pred_check
    _
  $region19: #{image_encoder_fcn_pallas.6} parent=0 // pred_check_branch
    %19 = sbr.rel (0) target = $region21
  $region20: #{image_encoder_fcn_pallas.6} parent=0 // pred_region
    _
  $region21: #{image_encoder_fcn_pallas.6} parent=0 // pred_fallthru
    _
  %v20 = vld [vmem:[%s0] sm:$0xff]
  %v21 = vld [vmem:[%s0 + $0x8] sm:$0xff]
  %v22 = vld [vmem:[%s0 + $0x10] sm:$0xff]
  %v23 = vld [vmem:[%s0 + $0x18] sm:$0xff]
  %v24 = vld [vmem:[%s0 + $0x20] sm:$0xff]
  %v25 = vld [vmem:[%s0 + $0x28] sm:$0xff]
  %v26 = vld [vmem:[%s0 + $0x30] sm:$0xff]
  %v27 = vld [vmem:[%s0 + $0x38] sm:$0xff]
  %v28 = vld [vmem:[%s0 + $0x40] sm:$0xff]
  %v29 = vld [vmem:[%s1] sm:$0xff]
  %v30 = vld [vmem:[%s1 + $0x8] sm:$0xff]
  %v31 = vld [vmem:[%s1 + $0x10] sm:$0xff]
  %v32 = vld [vmem:[%s1 + $0x18] sm:$0xff]
  %v33 = vld [vmem:[%s1 + $0x20] sm:$0xff]
  %v34 = vld [vmem:[%s1 + $0x28] sm:$0xff]
  %v35 = vld [vmem:[%s1 + $0x30] sm:$0xff]
  %v36 = vld [vmem:[%s1 + $0x38] sm:$0xff]
  %v37 = vld [vmem:[%s1 + $0x40] sm:$0xff]
  %v38 = vld [vmem:[%s1 + $0x48] sm:$0xff]
  %v39 = vld [vmem:[%s1 + $0x50] sm:$0xff]
  %v40 = vld [vmem:[%s1 + $0x58] sm:$0xff]
  %v41 = vld [vmem:[%s1 + $0x60] sm:$0xff]
  %v42 = vld [vmem:[%s1 + $0x68] sm:$0xff]
  %v43 = vld [vmem:[%s1 + $0x70] sm:$0xff]
  %v44 = vld [vmem:[%s1 + $0x78] sm:$0xff]
  %v45 = vld [vmem:[%s1 + $0x80] sm:$0xff]
  %v46 = vld [vmem:[%s1 + $0x88] sm:$0xff]
  %v47 = vld [vmem:[%s1 + $0x90] sm:$0xff]
  %v48 = vld [vmem:[%s1 + $0x98] sm:$0xff]
  %v49 = vld [vmem:[%s1 + $0xa0] sm:$0xff]
  %v50 = vld [vmem:[%s1 + $0xa8] sm:$0xff]
  %v51 = vld [vmem:[%s1 + $0xb0] sm:$0xff]
  %v52 = vld [vmem:[%s1 + $0xb8] sm:$0xff]
  %v53 = vld [vmem:[%s1 + $0xc0] sm:$0xff]
  %v54 = vld [vmem:[%s1 + $0xc8] sm:$0xff]
  %v55 = vld [vmem:[%s1 + $0xd0] sm:$0xff]
  %v56 = vld [vmem:[%s1 + $0xd8] sm:$0xff]
  %v57 = vld [vmem:[%s1 + $0xe0] sm:$0xff]
  %v58 = vld [vmem:[%s1 + $0xe8] sm:$0xff]
  %v59 = vld [vmem:[%s1 + $0xf0] sm:$0xff]
  %v60 = vld [vmem:[%s1 + $0xf8] sm:$0xff]
  %v61 = vld [vmem:[%s1 + $0x100] sm:$0xff]
  %v62 = vld [vmem:[%s1 + $0x108] sm:$0xff]
  %v63 = vld [vmem:[%s1 + $0x110] sm:$0xff]
  %v64 = vld [vmem:[%s1 + $0x118] sm:$0xff]
  %v65 = vld [vmem:[%s1 + $0x120] sm:$0xff]
  %v66 = vld [vmem:[%s1 + $0x128] sm:$0xff]
  %v67 = vld [vmem:[%s1 + $0x130] sm:$0xff]
  %v68 = vld [vmem:[%s1 + $0x138] sm:$0xff]
  %v69 = vld [vmem:[%s1 + $0x140] sm:$0xff]
  %v70 = vld [vmem:[%s1 + $0x148] sm:$0xff]
  %v71 = vld [vmem:[%s1 + $0x150] sm:$0xff]
  %v72 = vld [vmem:[%s1 + $0x158] sm:$0xff]
  %v73 = vld [vmem:[%s1 + $0x160] sm:$0xff]
  %v74 = vld [vmem:[%s1 + $0x168] sm:$0xff]
  %v75 = vld [vmem:[%s1 + $0x170] sm:$0xff]
  %v76 = vld [vmem:[%s1 + $0x178] sm:$0xff]
  %v77 = vld [vmem:[%s1 + $0x180] sm:$0xff]
  %v78 = vld [vmem:[%s1 + $0x188] sm:$0xff]
  %v79 = vld [vmem:[%s1 + $0x190] sm:$0xff]
  %v80 = vld [vmem:[%s1 + $0x198] sm:$0xff]
  %v81 = vld [vmem:[%s1 + $0x1a0] sm:$0xff]
  %v82 = vld [vmem:[%s1 + $0x1a8] sm:$0xff]
  %v83 = vld [vmem:[%s1 + $0x1b0] sm:$0xff]
  %v84 = vld [vmem:[%s1 + $0x1b8] sm:$0xff]
  %v85 = vld [vmem:[%s1 + $0x1c0] sm:$0xff]
  %v86 = vld [vmem:[%s1 + $0x1c8] sm:$0xff]
  %v87 = vld [vmem:[%s1 + $0x1d0] sm:$0xff]
  %v88 = vld [vmem:[%s1 + $0x1d8] sm:$0xff]
  %v89 = vld [vmem:[%s1 + $0x1e0] sm:$0xff]
  %v90 = vld [vmem:[%s1 + $0x1e8] sm:$0xff]
  %v91 = vld [vmem:[%s1 + $0x1f0] sm:$0xff]
  %v92 = vld [vmem:[%s1 + $0x1f8] sm:$0xff]
  %v93 = vld [vmem:[%s1 + $0x200] sm:$0xff]
  %v94 = vld [vmem:[%s1 + $0x208] sm:$0xff]
  %v95 = vld [vmem:[%s1 + $0x210] sm:$0xff]
  %v96 = vld [vmem:[%s1 + $0x218] sm:$0xff]
  %v97 = vld [vmem:[%s1 + $0x220] sm:$0xff]
  %v98 = vld [vmem:[%s1 + $0x228] sm:$0xff]
  %v99 = vld [vmem:[%s1 + $0x230] sm:$0xff]
  %v100 = vld [vmem:[%s1 + $0x238] sm:$0xff]
  %v101 = vld [vmem:[%s1 + $0x240] sm:$0xff]
  %v102 = vld [vmem:[%s1 + $0x248] sm:$0xff]
  %v103 = vld [vmem:[%s1 + $0x250] sm:$0xff]
  %v104 = vld [vmem:[%s1 + $0x258] sm:$0xff]
  %v105 = vld [vmem:[%s1 + $0x260] sm:$0xff]
  %v106 = vld [vmem:[%s1 + $0x268] sm:$0xff]
  %v107 = vld [vmem:[%s1 + $0x270] sm:$0xff]
  %v108 = vld [vmem:[%s1 + $0x278] sm:$0xff]
  %v109 = vld [vmem:[%s1 + $0x280] sm:$0xff]
  %v110 = vld [vmem:[%s1 + $0x288] sm:$0xff]
  %v111 = vld [vmem:[%s1 + $0x290] sm:$0xff]
  %v112 = vld [vmem:[%s1 + $0x298] sm:$0xff]
  %v113 = vld [vmem:[%s1 + $0x2a0] sm:$0xff]
  %v114 = vld [vmem:[%s1 + $0x2a8] sm:$0xff]
  %v115 = vld [vmem:[%s1 + $0x2b0] sm:$0xff]
  %v116 = vld [vmem:[%s1 + $0x2b8] sm:$0xff]
  %v117 = vld [vmem:[%s1 + $0x2c0] sm:$0xff]
  %v118 = vld [vmem:[%s1 + $0x2c8] sm:$0xff]
  %v119 = vld [vmem:[%s1 + $0x2d0] sm:$0xff]
  %v120 = vld [vmem:[%s1 + $0x2d8] sm:$0xff]
  %v121 = vld [vmem:[%s1 + $0x2e0] sm:$0xff]
  %v122 = vld [vmem:[%s1 + $0x2e8] sm:$0xff]
  %v123 = vld [vmem:[%s1 + $0x2f0] sm:$0xff]
  %v124 = vld [vmem:[%s1 + $0x2f8] sm:$0xff]
  %v125 = vld [vmem:[%s1 + $0x300] sm:$0xff]
  %v126 = vld [vmem:[%s1 + $0x308] sm:$0xff]
  %v127 = vld [vmem:[%s1 + $0x310] sm:$0xff]
  %v128 = vld [vmem:[%s1 + $0x318] sm:$0xff]
  %v129 = vld [vmem:[%s1 + $0x320] sm:$0xff]
  %v130 = vld [vmem:[%s1 + $0x328] sm:$0xff]
  %v131 = vld [vmem:[%s1 + $0x330] sm:$0xff]
  %v132 = vld [vmem:[%s1 + $0x338] sm:$0xff]
  %v133 = vld [vmem:[%s1 + $0x340] sm:$0xff]
  %v134 = vld [vmem:[%s1 + $0x348] sm:$0xff]
  %v135 = vld [vmem:[%s1 + $0x350] sm:$0xff]
  %v136 = vld [vmem:[%s1 + $0x358] sm:$0xff]
  %v137 = vld [vmem:[%s1 + $0x360] sm:$0xff]
  %v138 = vld [vmem:[%s1 + $0x368] sm:$0xff]
  %v139 = vld [vmem:[%s1 + $0x370] sm:$0xff]
  %v140 = vld [vmem:[%s1 + $0x378] sm:$0xff]
  %v141 = vld [vmem:[%s1 + $0x380] sm:$0xff]
  %v142 = vld [vmem:[%s1 + $0x388] sm:$0xff]
  %v143 = vld [vmem:[%s1 + $0x390] sm:$0xff]
  %v144 = vld [vmem:[%s1 + $0x398] sm:$0xff]
  %v145 = vld [vmem:[%s1 + $0x3a0] sm:$0xff]
  %v146 = vld [vmem:[%s1 + $0x3a8] sm:$0xff]
  %v147 = vld [vmem:[%s1 + $0x3b0] sm:$0xff]
  %v148 = vld [vmem:[%s1 + $0x3b8] sm:$0xff]
  %v149 = vld [vmem:[%s1 + $0x3c0] sm:$0xff]
  %v150 = vld [vmem:[%s1 + $0x3c8] sm:$0xff]
  %v151 = vld [vmem:[%s1 + $0x3d0] sm:$0xff]
  %v152 = vld [vmem:[%s1 + $0x3d8] sm:$0xff]
  %v153 = vld [vmem:[%s1 + $0x3e0] sm:$0xff]
  %v154 = vld [vmem:[%s1 + $0x3e8] sm:$0xff]
  %v155 = vld [vmem:[%s1 + $0x3f0] sm:$0xff]
  %v156 = vld [vmem:[%s1 + $0x3f8] sm:$0xff]
  %v157 = vld [vmem:[%s1 + $0x400] sm:$0xff]
  %v158 = vld [vmem:[%s1 + $0x408] sm:$0xff]
  %v159 = vld [vmem:[%s1 + $0x410] sm:$0xff]
  %v160 = vld [vmem:[%s1 + $0x418] sm:$0xff]
  %v161 = vld [vmem:[%s1 + $0x420] sm:$0xff]
  %v162 = vld [vmem:[%s1 + $0x428] sm:$0xff]
  %v163 = vld [vmem:[%s1 + $0x430] sm:$0xff]
  %v164 = vld [vmem:[%s1 + $0x438] sm:$0xff]
  %v165 = vld [vmem:[%s1 + $0x440] sm:$0xff]
  %v166 = vld [vmem:[%s1 + $0x448] sm:$0xff]
  %v167 = vld [vmem:[%s1 + $0x450] sm:$0xff]
  %v168 = vld [vmem:[%s1 + $0x458] sm:$0xff]
  %v169 = vld [vmem:[%s1 + $0x460] sm:$0xff]
  %v170 = vld [vmem:[%s1 + $0x468] sm:$0xff]
  %v171 = vld [vmem:[%s1 + $0x470] sm:$0xff]
  %v172 = vld [vmem:[%s1 + $0x478] sm:$0xff]
  %v173 = vld [vmem:[%s1 + $0x480] sm:$0xff]
  %v174 = vld [vmem:[%s1 + $0x488] sm:$0xff]
  %v175 = vld [vmem:[%s1 + $0x490] sm:$0xff]
  %v176 = vld [vmem:[%s1 + $0x498] sm:$0xff]
  %v177 = vld [vmem:[%s1 + $0x4a0] sm:$0xff]
  %v178 = vld [vmem:[%s1 + $0x4a8] sm:$0xff]
  %v179 = vld [vmem:[%s1 + $0x4b0] sm:$0xff]
  %v180 = vld [vmem:[%s1 + $0x4b8] sm:$0xff]
  %v181 = vld [vmem:[%s1 + $0x4c0] sm:$0xff]
  %v182 = vld [vmem:[%s1 + $0x4c8] sm:$0xff]
  %v183 = vld [vmem:[%s1 + $0x4d0] sm:$0xff]
  %v184 = vld [vmem:[%s1 + $0x4d8] sm:$0xff]
  %v185 = vld [vmem:[%s1 + $0x4e0] sm:$0xff]
  %v186 = vld [vmem:[%s1 + $0x4e8] sm:$0xff]
  %v187 = vld [vmem:[%s1 + $0x4f0] sm:$0xff]
  %v188 = vld [vmem:[%s1 + $0x4f8] sm:$0xff]
  %v189 = vld [vmem:[%s1 + $0x500] sm:$0xff]
  %v190 = vld [vmem:[%s1 + $0x508] sm:$0xff]
  %v191 = vld [vmem:[%s1 + $0x510] sm:$0xff]
  %v192 = vld [vmem:[%s1 + $0x518] sm:$0xff]
  %v193 = vld [vmem:[%s1 + $0x520] sm:$0xff]
  %v194 = vld [vmem:[%s1 + $0x528] sm:$0xff]
  %v195 = vld [vmem:[%s1 + $0x530] sm:$0xff]
  %v196 = vld [vmem:[%s1 + $0x538] sm:$0xff]
  %v197 = vld [vmem:[%s1 + $0x540] sm:$0xff]
  %v198 = vld [vmem:[%s1 + $0x548] sm:$0xff]
  %v199 = vld [vmem:[%s1 + $0x550] sm:$0xff]
  %v200 = vld [vmem:[%s1 + $0x558] sm:$0xff]
  %v201 = vld [vmem:[%s1 + $0x560] sm:$0xff]
  %v202 = vld [vmem:[%s1 + $0x568] sm:$0xff]
  %v203 = vld [vmem:[%s1 + $0x570] sm:$0xff]
  %v204 = vld [vmem:[%s1 + $0x578] sm:$0xff]
  %v205 = vld [vmem:[%s1 + $0x580] sm:$0xff]
  %v206 = vld [vmem:[%s1 + $0x588] sm:$0xff]
  %v207 = vld [vmem:[%s1 + $0x590] sm:$0xff]
  %v208 = vld [vmem:[%s1 + $0x598] sm:$0xff]
  %v209 = vld [vmem:[%s1 + $0x5a0] sm:$0xff]
  %v210 = vld [vmem:[%s1 + $0x5a8] sm:$0xff]
  %v211 = vld [vmem:[%s1 + $0x5b0] sm:$0xff]
  %v212 = vld [vmem:[%s1 + $0x5b8] sm:$0xff]
  %v213 = vld [vmem:[%s1 + $0x5c0] sm:$0xff]
  %v214 = vld [vmem:[%s1 + $0x5c8] sm:$0xff]
  %v215 = vld [vmem:[%s1 + $0x5d0] sm:$0xff]
  %v216 = vld [vmem:[%s1 + $0x5d8] sm:$0xff]
  %v217 = vld [vmem:[%s1 + $0x5e0] sm:$0xff]
  %v218 = vld [vmem:[%s1 + $0x5e8] sm:$0xff]
  %v219 = vld [vmem:[%s1 + $0x5f0] sm:$0xff]
  %v220 = vld [vmem:[%s1 + $0x5f8] sm:$0xff]
  %v221 = vld [vmem:[%s1 + $0x600] sm:$0xff]
  %v222 = vld [vmem:[%s1 + $0x608] sm:$0xff]
  %v223 = vld [vmem:[%s1 + $0x610] sm:$0xff]
  %v224 = vld [vmem:[%s1 + $0x618] sm:$0xff]
  %v225 = vld [vmem:[%s1 + $0x620] sm:$0xff]
  %v226 = vld [vmem:[%s1 + $0x628] sm:$0xff]
  %v227 = vld [vmem:[%s1 + $0x630] sm:$0xff]
  %v228 = vld [vmem:[%s1 + $0x638] sm:$0xff]
  %v229 = vld [vmem:[%s1 + $0x640] sm:$0xff]
  %v230 = vld [vmem:[%s1 + $0x648] sm:$0xff]
  %v231 = vld [vmem:[%s1 + $0x650] sm:$0xff]
  %v232 = vld [vmem:[%s1 + $0x658] sm:$0xff]
  %v233 = vld [vmem:[%s1 + $0x660] sm:$0xff]
  %v234 = vld [vmem:[%s1 + $0x668] sm:$0xff]
  %v235 = vld [vmem:[%s1 + $0x670] sm:$0xff]
  %v236 = vld [vmem:[%s1 + $0x678] sm:$0xff]
  %v237 = vld [vmem:[%s1 + $0x680] sm:$0xff]
  %v238 = vld [vmem:[%s1 + $0x688] sm:$0xff]
  %v239 = vld [vmem:[%s1 + $0x690] sm:$0xff]
  %v240 = vld [vmem:[%s1 + $0x698] sm:$0xff]
  %v241 = vld [vmem:[%s1 + $0x6a0] sm:$0xff]
  %v242 = vld [vmem:[%s1 + $0x6a8] sm:$0xff]
  %v243 = vld [vmem:[%s1 + $0x6b0] sm:$0xff]
  %v244 = vld [vmem:[%s1 + $0x6b8] sm:$0xff]
  %v245 = vld [vmem:[%s1 + $0x6c0] sm:$0xff]
  %v246 = vld [vmem:[%s1 + $0x6c8] sm:$0xff]
  %v247 = vld [vmem:[%s1 + $0x6d0] sm:$0xff]
  %v248 = vld [vmem:[%s1 + $0x6d8] sm:$0xff]
  %v249 = vld [vmem:[%s1 + $0x6e0] sm:$0xff]
  %v250 = vld [vmem:[%s1 + $0x6e8] sm:$0xff]
  %v251 = vld [vmem:[%s1 + $0x6f0] sm:$0xff]
  %v252 = vld [vmem:[%s1 + $0x6f8] sm:$0xff]
  %v253 = vld [vmem:[%s1 + $0x700] sm:$0xff]
  %v254 = vld [vmem:[%s1 + $0x708] sm:$0xff]
  %v255 = vld [vmem:[%s1 + $0x710] sm:$0xff]
  %v256 = vld [vmem:[%s1 + $0x718] sm:$0xff]
  %v257 = vld [vmem:[%s1 + $0x720] sm:$0xff]
  %v258 = vld [vmem:[%s1 + $0x728] sm:$0xff]
  %v259 = vld [vmem:[%s1 + $0x730] sm:$0xff]
  %v260 = vld [vmem:[%s1 + $0x738] sm:$0xff]
  %v261 = vld [vmem:[%s1 + $0x740] sm:$0xff]
  %v262 = vld [vmem:[%s1 + $0x748] sm:$0xff]
  %v263 = vld [vmem:[%s1 + $0x750] sm:$0xff]
  %v264 = vld [vmem:[%s1 + $0x758] sm:$0xff]
  %v265 = vld [vmem:[%s1 + $0x760] sm:$0xff]
  %v266 = vld [vmem:[%s1 + $0x768] sm:$0xff]
  %v267 = vld [vmem:[%s1 + $0x770] sm:$0xff]
  %v268 = vld [vmem:[%s1 + $0x778] sm:$0xff]
  %v269 = vld [vmem:[%s1 + $0x780] sm:$0xff]
  %v270 = vld [vmem:[%s1 + $0x788] sm:$0xff]
  %v271 = vld [vmem:[%s1 + $0x790] sm:$0xff]
  %v272 = vld [vmem:[%s1 + $0x798] sm:$0xff]
  %v273 = vld [vmem:[%s1 + $0x7a0] sm:$0xff]
  %v274 = vld [vmem:[%s1 + $0x7a8] sm:$0xff]
  %v275 = vld [vmem:[%s1 + $0x7b0] sm:$0xff]
  %v276 = vld [vmem:[%s1 + $0x7b8] sm:$0xff]
  %v277 = vld [vmem:[%s1 + $0x7c0] sm:$0xff]
  %v278 = vld [vmem:[%s1 + $0x7c8] sm:$0xff]
  %v279 = vld [vmem:[%s1 + $0x7d0] sm:$0xff]
  %v280 = vld [vmem:[%s1 + $0x7d8] sm:$0xff]
  %v281 = vld [vmem:[%s1 + $0x7e0] sm:$0xff]
  %v282 = vld [vmem:[%s1 + $0x7e8] sm:$0xff]
  %v283 = vld [vmem:[%s1 + $0x7f0] sm:$0xff]
  %v284 = vld [vmem:[%s1 + $0x7f8] sm:$0xff]
  %v285 = vld [vmem:[%s1 + $0x800] sm:$0xff]
  %v286 = vld [vmem:[%s1 + $0x808] sm:$0xff]
  %v287 = vld [vmem:[%s1 + $0x810] sm:$0xff]
  %v288 = vld [vmem:[%s1 + $0x818] sm:$0xff]
  %v289 = vld [vmem:[%s1 + $0x820] sm:$0xff]
  %v290 = vld [vmem:[%s1 + $0x828] sm:$0xff]
  %v291 = vld [vmem:[%s1 + $0x830] sm:$0xff]
  %v292 = vld [vmem:[%s1 + $0x838] sm:$0xff]
  %v293 = vld [vmem:[%s1 + $0x840] sm:$0xff]
  %v294 = vld [vmem:[%s1 + $0x848] sm:$0xff]
  %v295 = vld [vmem:[%s1 + $0x850] sm:$0xff]
  %v296 = vld [vmem:[%s1 + $0x858] sm:$0xff]
  %v297 = vld [vmem:[%s1 + $0x860] sm:$0xff]
  %v298 = vld [vmem:[%s1 + $0x868] sm:$0xff]
  %v299 = vld [vmem:[%s1 + $0x870] sm:$0xff]
  %v300 = vld [vmem:[%s1 + $0x878] sm:$0xff]
  %v301 = vld [vmem:[%s1 + $0x880] sm:$0xff]
  %v302 = vld [vmem:[%s1 + $0x888] sm:$0xff]
  %v303 = vld [vmem:[%s1 + $0x890] sm:$0xff]
  %v304 = vld [vmem:[%s1 + $0x898] sm:$0xff]
  %v305 = vld [vmem:[%s1 + $0x8a0] sm:$0xff]
  %v306 = vld [vmem:[%s1 + $0x8a8] sm:$0xff]
  %v307 = vld [vmem:[%s1 + $0x8b0] sm:$0xff]
  %v308 = vld [vmem:[%s1 + $0x8b8] sm:$0xff]
  %v309 = vld [vmem:[%s1 + $0x8c0] sm:$0xff]
  %v310 = vld [vmem:[%s1 + $0x8c8] sm:$0xff]
  %v311 = vld [vmem:[%s1 + $0x8d0] sm:$0xff]
  %v312 = vld [vmem:[%s1 + $0x8d8] sm:$0xff]
  %v313 = vld [vmem:[%s1 + $0x8e0] sm:$0xff]
  %v314 = vld [vmem:[%s1 + $0x8e8] sm:$0xff]
  %v315 = vld [vmem:[%s1 + $0x8f0] sm:$0xff]
  %v316 = vld [vmem:[%s1 + $0x8f8] sm:$0xff]
  %v317 = vld [vmem:[%s2] sm:$0x3]
  %v319 = vlaneseq
  %v320 = vshrl.u32 %v319, 7
  %v321 = vsub.s32 0, %v320
  %v322 = vrot.slane %v317, %v321
  %v323 = vlaneseq
  %v324 = vshrl.u32 %v323, 7
  %v325 = vsub.s32 1, %v324
  %v326 = vrot.slane %v317, %v325
  %329 = vmatprep.subr.mxu0 %v30
  %330 = vmatpush1.msra.mxu0 %v29
  %331 = vmatprep.subr.mxu0 %v32
  %332 = vmatpush1.msra.mxu0 %v31
  %333 = vmatprep.subr.mxu0 %v34
  %334 = vmatpush1.msra.mxu0 %v33
  %335 = vmatprep.subr.mxu0 %v36
  %336 = vmatpush1.msra.mxu0 %v35
  %337 = vmatprep.subr.mxu0 %v38
  %338 = vmatpush1.msra.mxu0 %v37
  %339 = vmatprep.subr.mxu0 %v40
  %340 = vmatpush1.msra.mxu0 %v39
  %341 = vmatprep.subr.mxu0 %v42
  %342 = vmatpush1.msra.mxu0 %v41
  %343 = vmatprep.subr.mxu0 %v44
  %344 = vmatpush1.msra.mxu0 %v43
  %345 = vmatprep.subr.mxu0 %v46
  %346 = vmatpush1.msra.mxu0 %v45
  %347 = vmatprep.subr.mxu0 %v48
  %348 = vmatpush1.msra.mxu0 %v47
  %349 = vmatprep.subr.mxu0 %v50
  %350 = vmatpush1.msra.mxu0 %v49
  %351 = vmatprep.subr.mxu0 %v52
  %352 = vmatpush1.msra.mxu0 %v51
  %353 = vmatprep.subr.mxu0 %v54
  %354 = vmatpush1.msra.mxu0 %v53
  %355 = vmatprep.subr.mxu0 %v56
  %356 = vmatpush1.msra.mxu0 %v55
  %357 = vmatprep.subr.mxu0 %v58
  %358 = vmatpush1.msra.mxu0 %v57
  %359 = vmatprep.subr.mxu0 %v60
  %360 = vmatpush1.msra.mxu0 %v59
  %361 = vmatprep.subr.mxu0 %v62
  %362 = vmatpush1.msra.mxu0 %v61
  %363 = vmatprep.subr.mxu0 %v64
  %364 = vmatpush1.msra.mxu0 %v63
  %365 = vmatprep.subr.mxu0 %v66
  %366 = vmatpush1.msra.mxu0 %v65
  %367 = vmatprep.subr.mxu0 %v68
  %368 = vmatpush1.msra.mxu0 %v67
  %369 = vmatprep.subr.mxu0 %v70
  %370 = vmatpush1.msra.mxu0 %v69
  %371 = vmatprep.subr.mxu0 %v72
  %372 = vmatpush1.msra.mxu0 %v71
  %373 = vmatprep.subr.mxu0 %v74
  %374 = vmatpush1.msra.mxu0 %v73
  %375 = vmatprep.subr.mxu0 %v76
  %376 = vmatpush1.msra.mxu0 %v75
  %377 = vmatprep.subr.mxu0 %v78
  %378 = vmatpush1.msra.mxu0 %v77
  %379 = vmatprep.subr.mxu0 %v80
  %380 = vmatpush1.msra.mxu0 %v79
  %381 = vmatprep.subr.mxu0 %v82
  %382 = vmatpush1.msra.mxu0 %v81
  %383 = vmatprep.subr.mxu0 %v84
  %384 = vmatpush1.msra.mxu0 %v83
  %385 = vmatprep.subr.mxu0 %v86
  %386 = vmatpush1.msra.mxu0 %v85
  %387 = vmatprep.subr.mxu0 %v88
  %388 = vmatpush1.msra.mxu0 %v87
  %389 = vmatprep.subr.mxu0 %v90
  %390 = vmatpush1.msra.mxu0 %v89
  %391 = vmatprep.subr.mxu0 %v92
  %392 = vmatpush1.msra.mxu0 %v91
  %393 = vmatprep.mubr.f32.mxu0 %v21
  %394 = vmatmul.mubr.f32.gmra.mrb[0].mxu0 %v20
  %v395 = vpop.f32.mrb[0].mxu0
  %v396 = vadd.f32 %v322, %v395
  %v397 = vpop.f32.mrb[0].mxu0
  %v398 = vadd.f32 %v326, %v397
  %399 = vdwg.mxu0
  %400 = vmatprep.subr.mxu0 %v94
  %401 = vmatpush1.msra.mxu0 %v93
  %402 = vmatprep.subr.mxu0 %v96
  %403 = vmatpush1.msra.mxu0 %v95
  %404 = vmatprep.subr.mxu0 %v98
  %405 = vmatpush1.msra.mxu0 %v97
  %406 = vmatprep.subr.mxu0 %v100
  %407 = vmatpush1.msra.mxu0 %v99
  %408 = vmatprep.subr.mxu0 %v102
  %409 = vmatpush1.msra.mxu0 %v101
  %410 = vmatprep.subr.mxu0 %v104
  %411 = vmatpush1.msra.mxu0 %v103
  %412 = vmatprep.subr.mxu0 %v106
  %413 = vmatpush1.msra.mxu0 %v105
  %414 = vmatprep.subr.mxu0 %v108
  %415 = vmatpush1.msra.mxu0 %v107
  %416 = vmatprep.subr.mxu0 %v110
  %417 = vmatpush1.msra.mxu0 %v109
  %418 = vmatprep.subr.mxu0 %v112
  %419 = vmatpush1.msra.mxu0 %v111
  %420 = vmatprep.subr.mxu0 %v114
  %421 = vmatpush1.msra.mxu0 %v113
  %422 = vmatprep.subr.mxu0 %v116
  %423 = vmatpush1.msra.mxu0 %v115
  %424 = vmatprep.subr.mxu0 %v118
  %425 = vmatpush1.msra.mxu0 %v117
  %426 = vmatprep.subr.mxu0 %v120
  %427 = vmatpush1.msra.mxu0 %v119
  %428 = vmatprep.subr.mxu0 %v122
  %429 = vmatpush1.msra.mxu0 %v121
  %430 = vmatprep.subr.mxu0 %v124
  %431 = vmatpush1.msra.mxu0 %v123
  %432 = vmatprep.subr.mxu0 %v126
  %433 = vmatpush1.msra.mxu0 %v125
  %434 = vmatprep.subr.mxu0 %v128
  %435 = vmatpush1.msra.mxu0 %v127
  %436 = vmatprep.subr.mxu0 %v130
  %437 = vmatpush1.msra.mxu0 %v129
  %438 = vmatprep.subr.mxu0 %v132
  %439 = vmatpush1.msra.mxu0 %v131
  %440 = vmatprep.subr.mxu0 %v134
  %441 = vmatpush1.msra.mxu0 %v133
  %442 = vmatprep.subr.mxu0 %v136
  %443 = vmatpush1.msra.mxu0 %v135
  %444 = vmatprep.subr.mxu0 %v138
  %445 = vmatpush1.msra.mxu0 %v137
  %446 = vmatprep.subr.mxu0 %v140
  %447 = vmatpush1.msra.mxu0 %v139
  %448 = vmatprep.subr.mxu0 %v142
  %449 = vmatpush1.msra.mxu0 %v141
  %450 = vmatprep.subr.mxu0 %v144
  %451 = vmatpush1.msra.mxu0 %v143
  %452 = vmatprep.subr.mxu0 %v146
  %453 = vmatpush1.msra.mxu0 %v145
  %454 = vmatprep.subr.mxu0 %v148
  %455 = vmatpush1.msra.mxu0 %v147
  %456 = vmatprep.subr.mxu0 %v150
  %457 = vmatpush1.msra.mxu0 %v149
  %458 = vmatprep.subr.mxu0 %v152
  %459 = vmatpush1.msra.mxu0 %v151
  %460 = vmatprep.subr.mxu0 %v154
  %461 = vmatpush1.msra.mxu0 %v153
  %462 = vmatprep.subr.mxu0 %v156
  %463 = vmatpush1.msra.mxu0 %v155
  %464 = vmatprep.mubr.f32.mxu0 %v23
  %465 = vmatmul.mubr.f32.gmra.mrb[0].mxu0 %v22
  %v466 = vpop.f32.mrb[0].mxu0
  %v467 = vadd.f32 %v396, %v466
  %v468 = vpop.f32.mrb[0].mxu0
  %v469 = vadd.f32 %v398, %v468
  %470 = vdwg.mxu0
  %471 = vmatprep.subr.mxu0 %v158
  %472 = vmatpush1.msra.mxu0 %v157
  %473 = vmatprep.subr.mxu0 %v160
  %474 = vmatpush1.msra.mxu0 %v159
  %475 = vmatprep.subr.mxu0 %v162
  %476 = vmatpush1.msra.mxu0 %v161
  %477 = vmatprep.subr.mxu0 %v164
  %478 = vmatpush1.msra.mxu0 %v163
  %479 = vmatprep.subr.mxu0 %v166
  %480 = vmatpush1.msra.mxu0 %v165
  %481 = vmatprep.subr.mxu0 %v168
  %482 = vmatpush1.msra.mxu0 %v167
  %483 = vmatprep.subr.mxu0 %v170
  %484 = vmatpush1.msra.mxu0 %v169
  %485 = vmatprep.subr.mxu0 %v172
  %486 = vmatpush1.msra.mxu0 %v171
  %487 = vmatprep.subr.mxu0 %v174
  %488 = vmatpush1.msra.mxu0 %v173
  %489 = vmatprep.subr.mxu0 %v176
  %490 = vmatpush1.msra.mxu0 %v175
  %491 = vmatprep.subr.mxu0 %v178
  %492 = vmatpush1.msra.mxu0 %v177
  %493 = vmatprep.subr.mxu0 %v180
  %494 = vmatpush1.msra.mxu0 %v179
  %495 = vmatprep.subr.mxu0 %v182
  %496 = vmatpush1.msra.mxu0 %v181
  %497 = vmatprep.subr.mxu0 %v184
  %498 = vmatpush1.msra.mxu0 %v183
  %499 = vmatprep.subr.mxu0 %v186
  %500 = vmatpush1.msra.mxu0 %v185
  %501 = vmatprep.subr.mxu0 %v188
  %502 = vmatpush1.msra.mxu0 %v187
  %503 = vmatprep.subr.mxu0 %v190
  %504 = vmatpush1.msra.mxu0 %v189
  %505 = vmatprep.subr.mxu0 %v192
  %506 = vmatpush1.msra.mxu0 %v191
  %507 = vmatprep.subr.mxu0 %v194
  %508 = vmatpush1.msra.mxu0 %v193
  %509 = vmatprep.subr.mxu0 %v196
  %510 = vmatpush1.msra.mxu0 %v195
  %511 = vmatprep.subr.mxu0 %v198
  %512 = vmatpush1.msra.mxu0 %v197
  %513 = vmatprep.subr.mxu0 %v200
  %514 = vmatpush1.msra.mxu0 %v199
  %515 = vmatprep.subr.mxu0 %v202
  %516 = vmatpush1.msra.mxu0 %v201
  %517 = vmatprep.subr.mxu0 %v204
  %518 = vmatpush1.msra.mxu0 %v203
  %519 = vmatprep.subr.mxu0 %v206
  %520 = vmatpush1.msra.mxu0 %v205
  %521 = vmatprep.subr.mxu0 %v208
  %522 = vmatpush1.msra.mxu0 %v207
  %523 = vmatprep.subr.mxu0 %v210
  %524 = vmatpush1.msra.mxu0 %v209
  %525 = vmatprep.subr.mxu0 %v212
  %526 = vmatpush1.msra.mxu0 %v211
  %527 = vmatprep.subr.mxu0 %v214
  %528 = vmatpush1.msra.mxu0 %v213
  %529 = vmatprep.subr.mxu0 %v216
  %530 = vmatpush1.msra.mxu0 %v215
  %531 = vmatprep.subr.mxu0 %v218
  %532 = vmatpush1.msra.mxu0 %v217
  %533 = vmatprep.subr.mxu0 %v220
  %534 = vmatpush1.msra.mxu0 %v219
  %535 = vmatprep.mubr.f32.mxu0 %v25
  %536 = vmatmul.mubr.f32.gmra.mrb[0].mxu0 %v24
  %v537 = vpop.f32.mrb[0].mxu0
  %v538 = vadd.f32 %v467, %v537
  %v539 = vpop.f32.mrb[0].mxu0
  %v540 = vadd.f32 %v469, %v539
  %541 = vdwg.mxu0
  %542 = vmatprep.subr.mxu0 %v222
  %543 = vmatpush1.msra.mxu0 %v221
  %544 = vmatprep.subr.mxu0 %v224
  %545 = vmatpush1.msra.mxu0 %v223
  %546 = vmatprep.subr.mxu0 %v226
  %547 = vmatpush1.msra.mxu0 %v225
  %548 = vmatprep.subr.mxu0 %v228
  %549 = vmatpush1.msra.mxu0 %v227
  %550 = vmatprep.subr.mxu0 %v230
  %551 = vmatpush1.msra.mxu0 %v229
  %552 = vmatprep.subr.mxu0 %v232
  %553 = vmatpush1.msra.mxu0 %v231
  %554 = vmatprep.subr.mxu0 %v234
  %555 = vmatpush1.msra.mxu0 %v233
  %556 = vmatprep.subr.mxu0 %v236
  %557 = vmatpush1.msra.mxu0 %v235
  %558 = vmatprep.subr.mxu0 %v238
  %559 = vmatpush1.msra.mxu0 %v237
  %560 = vmatprep.subr.mxu0 %v240
  %561 = vmatpush1.msra.mxu0 %v239
  %562 = vmatprep.subr.mxu0 %v242
  %563 = vmatpush1.msra.mxu0 %v241
  %564 = vmatprep.subr.mxu0 %v244
  %565 = vmatpush1.msra.mxu0 %v243
  %566 = vmatprep.subr.mxu0 %v246
  %567 = vmatpush1.msra.mxu0 %v245
  %568 = vmatprep.subr.mxu0 %v248
  %569 = vmatpush1.msra.mxu0 %v247
  %570 = vmatprep.subr.mxu0 %v250
  %571 = vmatpush1.msra.mxu0 %v249
  %572 = vmatprep.subr.mxu0 %v252
  %573 = vmatpush1.msra.mxu0 %v251
  %574 = vmatprep.subr.mxu0 %v254
  %575 = vmatpush1.msra.mxu0 %v253
  %576 = vmatprep.subr.mxu0 %v256
  %577 = vmatpush1.msra.mxu0 %v255
  %578 = vmatprep.subr.mxu0 %v258
  %579 = vmatpush1.msra.mxu0 %v257
  %580 = vmatprep.subr.mxu0 %v260
  %581 = vmatpush1.msra.mxu0 %v259
  %582 = vmatprep.subr.mxu0 %v262
  %583 = vmatpush1.msra.mxu0 %v261
  %584 = vmatprep.subr.mxu0 %v264
  %585 = vmatpush1.msra.mxu0 %v263
  %586 = vmatprep.subr.mxu0 %v266
  %587 = vmatpush1.msra.mxu0 %v265
  %588 = vmatprep.subr.mxu0 %v268
  %589 = vmatpush1.msra.mxu0 %v267
  %590 = vmatprep.subr.mxu0 %v270
  %591 = vmatpush1.msra.mxu0 %v269
  %592 = vmatprep.subr.mxu0 %v272
  %593 = vmatpush1.msra.mxu0 %v271
  %594 = vmatprep.subr.mxu0 %v274
  %595 = vmatpush1.msra.mxu0 %v273
  %596 = vmatprep.subr.mxu0 %v276
  %597 = vmatpush1.msra.mxu0 %v275
  %598 = vmatprep.subr.mxu0 %v278
  %599 = vmatpush1.msra.mxu0 %v277
  %600 = vmatprep.subr.mxu0 %v280
  %601 = vmatpush1.msra.mxu0 %v279
  %602 = vmatprep.subr.mxu0 %v282
  %603 = vmatpush1.msra.mxu0 %v281
  %604 = vmatprep.subr.mxu0 %v284
  %605 = vmatpush1.msra.mxu0 %v283
  %606 = vmatprep.mubr.f32.mxu0 %v27
  %607 = vmatmul.mubr.f32.gmra.mrb[0].mxu0 %v26
  %v608 = vpop.f32.mrb[0].mxu0
  %v609 = vadd.f32 %v538, %v608
  %v610 = vpop.f32.mrb[0].mxu0
  %v611 = vadd.f32 %v540, %v610
  %612 = vdwg.mxu0
  %613 = vmatprep.subr.mxu0 %v286
  %614 = vmatpush1.msra.mxu0 %v285
  %615 = vmatprep.subr.mxu0 %v288
  %616 = vmatpush1.msra.mxu0 %v287
  %617 = vmatprep.subr.mxu0 %v290
  %618 = vmatpush1.msra.mxu0 %v289
  %619 = vmatprep.subr.mxu0 %v292
  %620 = vmatpush1.msra.mxu0 %v291
  %621 = vmatprep.subr.mxu0 %v294
  %622 = vmatpush1.msra.mxu0 %v293
  %623 = vmatprep.subr.mxu0 %v296
  %624 = vmatpush1.msra.mxu0 %v295
  %625 = vmatprep.subr.mxu0 %v298
  %626 = vmatpush1.msra.mxu0 %v297
  %627 = vmatprep.subr.mxu0 %v300
  %628 = vmatpush1.msra.mxu0 %v299
  %629 = vmatprep.subr.mxu0 %v302
  %630 = vmatpush1.msra.mxu0 %v301
  %631 = vmatprep.subr.mxu0 %v304
  %632 = vmatpush1.msra.mxu0 %v303
  %633 = vmatprep.subr.mxu0 %v306
  %634 = vmatpush1.msra.mxu0 %v305
  %635 = vmatprep.subr.mxu0 %v308
  %636 = vmatpush1.msra.mxu0 %v307
  %637 = vmatprep.subr.mxu0 %v310
  %638 = vmatpush1.msra.mxu0 %v309
  %639 = vmatprep.subr.mxu0 %v312
  %640 = vmatpush1.msra.mxu0 %v311
  %641 = vmatprep.subr.mxu0 %v314
  %642 = vmatpush1.msra.mxu0 %v313
  %643 = vmatprep.subr.mxu0 %v316
  %644 = vmatpush1.msra.mxu0 %v315
  %645 = vmatprep.subr.mxu0 0.0
  %646 = vmatpush1.msra.mxu0 0.0
  %647 = vmatprep.subr.mxu0 0.0
  %648 = vmatpush1.msra.mxu0 0.0
  %649 = vmatprep.subr.mxu0 0.0
  %650 = vmatpush1.msra.mxu0 0.0
  %651 = vmatprep.subr.mxu0 0.0
  %652 = vmatpush1.msra.mxu0 0.0
  %653 = vmatprep.subr.mxu0 0.0
  %654 = vmatpush1.msra.mxu0 0.0
  %655 = vmatprep.subr.mxu0 0.0
  %656 = vmatpush1.msra.mxu0 0.0
  %657 = vmatprep.subr.mxu0 0.0
  %658 = vmatpush1.msra.mxu0 0.0
  %659 = vmatprep.subr.mxu0 0.0
  %660 = vmatpush1.msra.mxu0 0.0
  %661 = vmatprep.subr.mxu0 0.0
  %662 = vmatpush1.msra.mxu0 0.0
  %663 = vmatprep.subr.mxu0 0.0
  %664 = vmatpush1.msra.mxu0 0.0
  %665 = vmatprep.subr.mxu0 0.0
  %666 = vmatpush1.msra.mxu0 0.0
  %667 = vmatprep.subr.mxu0 0.0
  %668 = vmatpush1.msra.mxu0 0.0
  %669 = vmatprep.subr.mxu0 0.0
  %670 = vmatpush1.msra.mxu0 0.0
  %671 = vmatprep.subr.mxu0 0.0
  %672 = vmatpush1.msra.mxu0 0.0
  %673 = vmatprep.subr.mxu0 0.0
  %674 = vmatpush1.msra.mxu0 0.0
  %675 = vmatprep.subr.mxu0 0.0
  %676 = vmatpush1.msra.mxu0 0.0
  %677 = vmatprep.mubr.f32.mxu0 0.0
  %678 = vmatmul.mubr.f32.gmra.mrb[0].mxu0 %v28
  %v679 = vpop.f32.mrb[0].mxu0
  %v680 = vadd.f32 %v609, %v679
  %v681 = vpop.f32.mrb[0].mxu0
  %v682 = vadd.f32 %v611, %v681
  %683 = vdwg.mxu0
  %v684 = vrot.slane %v680, 4
  %v685 = vadd.f32 %v680, %v684
  %v686 = vrot.slane %v685, 2
  %v687 = vadd.f32 %v685, %v686
  %v688 = vrot.slane %v687, 1
  %v689 = vadd.f32 %v687, %v688
  %v690 = vrot.slane %v682, 4
  %v691 = vadd.f32 %v682, %v690
  %v692 = vrot.slane %v691, 2
  %v693 = vadd.f32 %v691, %v692
  %v694 = vrot.slane %v693, 1
  %v695 = vadd.f32 %v693, %v694
  %v696 = vmul.f32 %v689, 0.125
  %v697 = vmul.f32 %v695, 0.125
  %v698 = vsub.f32 %v680, %v696
  %v699 = vsub.f32 %v682, %v697
  %v700 = vmul.f32 %v698, %v698
  %v701 = vmul.f32 %v699, %v699
  %v702 = vrot.slane %v700, 4
  %v703 = vadd.f32 %v700, %v702
  %v704 = vrot.slane %v703, 2
  %v705 = vadd.f32 %v703, %v704
  %v706 = vrot.slane %v705, 1
  %v707 = vadd.f32 %v705, %v706
  %v708 = vrot.slane %v701, 4
  %v709 = vadd.f32 %v701, %v708
  %v710 = vrot.slane %v709, 2
  %v711 = vadd.f32 %v709, %v710
  %v712 = vrot.slane %v711, 1
  %v713 = vadd.f32 %v711, %v712
  %v714 = vmul.f32 %v707, 0.125
  %v715 = vmul.f32 %v713, 0.125
  %v716 = vadd.f32 %v714, 1e-05
  %v717 = vadd.f32 %v715, 1e-05
  %v718 = vrsqrt.pop %v716
  %v719 = vrsqrt.pop %v717
  %v720 = vmul.f32 %v698, %v718
  %v721 = vmul.f32 %v699, %v719
  %v722 = vld [vmem:[%s3] sm:$0x3]
  %v724 = vlaneseq
  %v725 = vshrl.u32 %v724, 7
  %v726 = vsub.s32 0, %v725
  %v727 = vrot.slane %v722, %v726
  %v728 = vlaneseq
  %v729 = vshrl.u32 %v728, 7
  %v730 = vsub.s32 1, %v729
  %v731 = vrot.slane %v722, %v730
  %v734 = vmul.f32 %v720, %v727
  %v735 = vmul.f32 %v721, %v731
  %v736 = vld [vmem:[%s4] sm:$0x3]
  %v738 = vlaneseq
  %v739 = vshrl.u32 %v738, 7
  %v740 = vsub.s32 0, %v739
  %v741 = vrot.slane %v736, %v740
  %v742 = vlaneseq
  %v743 = vshrl.u32 %v742, 7
  %v744 = vsub.s32 1, %v743
  %v745 = vrot.slane %v736, %v744
  %v748 = vadd.f32 %v734, %v741
  %v749 = vadd.f32 %v735, %v745
  %v750 = vmax.f32 %v748, 0.0
  %v751 = vmax.f32 %v749, 0.0
  %752 = vst [vmem:[%s5] sm:$0xff] %v750
  %753 = vst [vmem:[%s5 + $0x8] sm:$0xff] %v751
  // Predicated region
  $region22: #{image_encoder_fcn_pallas.6} parent=0 // pred_check
    _
  $region23: #{image_encoder_fcn_pallas.6} parent=0 // pred_check_branch
    %755 = sbr.rel (0) target = $region25
  $region24: #{image_encoder_fcn_pallas.6} parent=0 // pred_region
    _
  $region25: #{image_encoder_fcn_pallas.6} parent=0 // pred_fallthru
    _
  // Predicated region
  $region26: #{image_encoder_fcn_pallas.6} parent=0 // pred_check
    _
  $region27: #{image_encoder_fcn_pallas.6} parent=0 // pred_check_branch
    %757 = sbr.rel (0) target = $region29
  $region28: #{image_encoder_fcn_pallas.6} parent=0 // pred_region
    _
  $region29: #{image_encoder_fcn_pallas.6} parent=0 // pred_fallthru
    _

// kernel: image_encoder_fcn_pallas.7
$region0: #{image_encoder_fcn_pallas.7}
  #allocation0 [shape = 'u32[]', space=smem, size = 0x4, offset = 0x4, fixed_abs, tag = 'smem constant byte address 0x4 - core index']
  #allocation1 [shape = 'u32[144,128]{1,0:T(1,128)}', space=vmem, size = 0x12000, scoped, tag = 'internal scratch']
  %s0 = inlined_call_operand.vmem [shape: f32[2,2304], index: 0, kind: input, shape index: {}]
  %s1 = inlined_call_operand.vmem [shape: f32[2304,512], index: 1, kind: input, shape index: {}]
  %s2 = inlined_call_operand.vmem [shape: f32[1,512], index: 2, kind: input, shape index: {}]
  %s3 = inlined_call_operand.vmem [shape: f32[1,512], index: 3, kind: input, shape index: {}]
  %s4 = inlined_call_operand.vmem [shape: f32[1,512], index: 4, kind: input, shape index: {}]
  %s5 = inlined_call_operand.vmem [shape: f32[2,512], index: 5, kind: output, shape index: {}]
  %s6 = sld [smem:[#allocation0]]
  $region30: #{image_encoder_fcn_pallas.7} parent=0
    _
  %s8 = ssub.s32 1, %s6
  %s9 = scalar_select 0, %s8, %s6
  // Predicated region
  $region2: #{image_encoder_fcn_pallas.7} parent=0 // pred_check
    _
  $region3: #{image_encoder_fcn_pallas.7} parent=0 // pred_check_branch
    %11 = sbr.rel (0) target = $region5
  $region4: #{image_encoder_fcn_pallas.7} parent=0 // pred_region
    _
  $region5: #{image_encoder_fcn_pallas.7} parent=0 // pred_fallthru
    _
  // Predicated region
  $region6: #{image_encoder_fcn_pallas.7} parent=0 // pred_check
    _
  $region7: #{image_encoder_fcn_pallas.7} parent=0 // pred_check_branch
    %13 = sbr.rel (0) target = $region9
  $region8: #{image_encoder_fcn_pallas.7} parent=0 // pred_region
    _
  $region9: #{image_encoder_fcn_pallas.7} parent=0 // pred_fallthru
    _
  // Predicated region
  $region10: #{image_encoder_fcn_pallas.7} parent=0 // pred_check
    _
  $region11: #{image_encoder_fcn_pallas.7} parent=0 // pred_check_branch
    %15 = sbr.rel (0) target = $region13
  $region12: #{image_encoder_fcn_pallas.7} parent=0 // pred_region
    _
  $region13: #{image_encoder_fcn_pallas.7} parent=0 // pred_fallthru
    _
  // Predicated region
  $region14: #{image_encoder_fcn_pallas.7} parent=0 // pred_check
    _
  $region15: #{image_encoder_fcn_pallas.7} parent=0 // pred_check_branch
    %17 = sbr.rel (0) target = $region17
  $region16: #{image_encoder_fcn_pallas.7} parent=0 // pred_region
    _
  $region17: #{image_encoder_fcn_pallas.7} parent=0 // pred_fallthru
    _
  // Predicated region
  $region18: #{image_encoder_fcn_pallas.7} parent=0 // pred_check
    _
  $region19: #{image_encoder_fcn_pallas.7} parent=0 // pred_check_branch
    %19 = sbr.rel (0) target = $region21
  $region20: #{image_encoder_fcn_pallas.7} parent=0 // pred_region
    _
  $region21: #{image_encoder_fcn_pallas.7} parent=0 // pred_fallthru
    _
  %v20 = vld [vmem:[%s0] sm:$0xff]
  %v21 = vld [vmem:[%s0 + $0x8] sm:$0xff]
  %v22 = vld [vmem:[%s0 + $0x10] sm:$0xff]
  %v23 = vld [vmem:[%s0 + $0x18] sm:$0xff]
  %v24 = vld [vmem:[%s0 + $0x20] sm:$0xf]
  %v25 = vld [vmem:[%s1] sm:$0xff]
  %v26 = vld [vmem:[%s1 + $0x8] sm:$0xff]
  %v27 = vld [vmem:[%s1 + $0x10] sm:$0xff]
  %v28 = vld [vmem:[%s1 + $0x18] sm:$0xff]
  %v29 = vld [vmem:[%s1 + $0x20] sm:$0xff]
  %v30 = vld [vmem:[%s1 + $0x28] sm:$0xff]
  %v31 = vld [vmem:[%s1 + $0x30] sm:$0xff]
  %v32 = vld [vmem:[%s1 + $0x38] sm:$0xff]
  %v33 = vld [vmem:[%s1 + $0x40] sm:$0xff]
  %v34 = vld [vmem:[%s1 + $0x48] sm:$0xff]
  %v35 = vld [vmem:[%s1 + $0x50] sm:$0xff]
  %v36 = vld [vmem:[%s1 + $0x58] sm:$0xff]
  %v37 = vld [vmem:[%s1 + $0x60] sm:$0xff]
  %v38 = vld [vmem:[%s1 + $0x68] sm:$0xff]
  %v39 = vld [vmem:[%s1 + $0x70] sm:$0xff]
  %v40 = vld [vmem:[%s1 + $0x78] sm:$0xff]
  %v41 = vld [vmem:[%s1 + $0x80] sm:$0xff]
  %v42 = vld [vmem:[%s1 + $0x88] sm:$0xff]
  %v43 = vld [vmem:[%s1 + $0x90] sm:$0xff]
  %v44 = vld [vmem:[%s1 + $0x98] sm:$0xff]
  %v45 = vld [vmem:[%s1 + $0xa0] sm:$0xff]
  %v46 = vld [vmem:[%s1 + $0xa8] sm:$0xff]
  %v47 = vld [vmem:[%s1 + $0xb0] sm:$0xff]
  %v48 = vld [vmem:[%s1 + $0xb8] sm:$0xff]
  %v49 = vld [vmem:[%s1 + $0xc0] sm:$0xff]
  %v50 = vld [vmem:[%s1 + $0xc8] sm:$0xff]
  %v51 = vld [vmem:[%s1 + $0xd0] sm:$0xff]
  %v52 = vld [vmem:[%s1 + $0xd8] sm:$0xff]
  %v53 = vld [vmem:[%s1 + $0xe0] sm:$0xff]
  %v54 = vld [vmem:[%s1 + $0xe8] sm:$0xff]
  %v55 = vld [vmem:[%s1 + $0xf0] sm:$0xff]
  %v56 = vld [vmem:[%s1 + $0xf8] sm:$0xff]
  %v57 = vld [vmem:[%s1 + $0x100] sm:$0xff]
  %v58 = vld [vmem:[%s1 + $0x108] sm:$0xff]
  %v59 = vld [vmem:[%s1 + $0x110] sm:$0xff]
  %v60 = vld [vmem:[%s1 + $0x118] sm:$0xff]
  %v61 = vld [vmem:[%s1 + $0x120] sm:$0xff]
  %v62 = vld [vmem:[%s1 + $0x128] sm:$0xff]
  %v63 = vld [vmem:[%s1 + $0x130] sm:$0xff]
  %v64 = vld [vmem:[%s1 + $0x138] sm:$0xff]
  %v65 = vld [vmem:[%s1 + $0x140] sm:$0xff]
  %v66 = vld [vmem:[%s1 + $0x148] sm:$0xff]
  %v67 = vld [vmem:[%s1 + $0x150] sm:$0xff]
  %v68 = vld [vmem:[%s1 + $0x158] sm:$0xff]
  %v69 = vld [vmem:[%s1 + $0x160] sm:$0xff]
  %v70 = vld [vmem:[%s1 + $0x168] sm:$0xff]
  %v71 = vld [vmem:[%s1 + $0x170] sm:$0xff]
  %v72 = vld [vmem:[%s1 + $0x178] sm:$0xff]
  %v73 = vld [vmem:[%s1 + $0x180] sm:$0xff]
  %v74 = vld [vmem:[%s1 + $0x188] sm:$0xff]
  %v75 = vld [vmem:[%s1 + $0x190] sm:$0xff]
  %v76 = vld [vmem:[%s1 + $0x198] sm:$0xff]
  %v77 = vld [vmem:[%s1 + $0x1a0] sm:$0xff]
  %v78 = vld [vmem:[%s1 + $0x1a8] sm:$0xff]
  %v79 = vld [vmem:[%s1 + $0x1b0] sm:$0xff]
  %v80 = vld [vmem:[%s1 + $0x1b8] sm:$0xff]
  %v81 = vld [vmem:[%s1 + $0x1c0] sm:$0xff]
  %v82 = vld [vmem:[%s1 + $0x1c8] sm:$0xff]
  %v83 = vld [vmem:[%s1 + $0x1d0] sm:$0xff]
  %v84 = vld [vmem:[%s1 + $0x1d8] sm:$0xff]
  %v85 = vld [vmem:[%s1 + $0x1e0] sm:$0xff]
  %v86 = vld [vmem:[%s1 + $0x1e8] sm:$0xff]
  %v87 = vld [vmem:[%s1 + $0x1f0] sm:$0xff]
  %v88 = vld [vmem:[%s1 + $0x1f8] sm:$0xff]
  %v89 = vld [vmem:[%s1 + $0x200] sm:$0xff]
  %v90 = vld [vmem:[%s1 + $0x208] sm:$0xff]
  %v91 = vld [vmem:[%s1 + $0x210] sm:$0xff]
  %v92 = vld [vmem:[%s1 + $0x218] sm:$0xff]
  %v93 = vld [vmem:[%s1 + $0x220] sm:$0xff]
  %v94 = vld [vmem:[%s1 + $0x228] sm:$0xff]
  %v95 = vld [vmem:[%s1 + $0x230] sm:$0xff]
  %v96 = vld [vmem:[%s1 + $0x238] sm:$0xff]
  %v97 = vld [vmem:[%s1 + $0x240] sm:$0xff]
  %v98 = vld [vmem:[%s1 + $0x248] sm:$0xff]
  %v99 = vld [vmem:[%s1 + $0x250] sm:$0xff]
  %v100 = vld [vmem:[%s1 + $0x258] sm:$0xff]
  %v101 = vld [vmem:[%s1 + $0x260] sm:$0xff]
  %v102 = vld [vmem:[%s1 + $0x268] sm:$0xff]
  %v103 = vld [vmem:[%s1 + $0x270] sm:$0xff]
  %v104 = vld [vmem:[%s1 + $0x278] sm:$0xff]
  %v105 = vld [vmem:[%s1 + $0x280] sm:$0xff]
  %v106 = vld [vmem:[%s1 + $0x288] sm:$0xff]
  %v107 = vld [vmem:[%s1 + $0x290] sm:$0xff]
  %v108 = vld [vmem:[%s1 + $0x298] sm:$0xff]
  %v109 = vld [vmem:[%s1 + $0x2a0] sm:$0xff]
  %v110 = vld [vmem:[%s1 + $0x2a8] sm:$0xff]
  %v111 = vld [vmem:[%s1 + $0x2b0] sm:$0xff]
  %v112 = vld [vmem:[%s1 + $0x2b8] sm:$0xff]
  %v113 = vld [vmem:[%s1 + $0x2c0] sm:$0xff]
  %v114 = vld [vmem:[%s1 + $0x2c8] sm:$0xff]
  %v115 = vld [vmem:[%s1 + $0x2d0] sm:$0xff]
  %v116 = vld [vmem:[%s1 + $0x2d8] sm:$0xff]
  %v117 = vld [vmem:[%s1 + $0x2e0] sm:$0xff]
  %v118 = vld [vmem:[%s1 + $0x2e8] sm:$0xff]
  %v119 = vld [vmem:[%s1 + $0x2f0] sm:$0xff]
  %v120 = vld [vmem:[%s1 + $0x2f8] sm:$0xff]
  %v121 = vld [vmem:[%s1 + $0x300] sm:$0xff]
  %v122 = vld [vmem:[%s1 + $0x308] sm:$0xff]
  %v123 = vld [vmem:[%s1 + $0x310] sm:$0xff]
  %v124 = vld [vmem:[%s1 + $0x318] sm:$0xff]
  %v125 = vld [vmem:[%s1 + $0x320] sm:$0xff]
  %v126 = vld [vmem:[%s1 + $0x328] sm:$0xff]
  %v127 = vld [vmem:[%s1 + $0x330] sm:$0xff]
  %v128 = vld [vmem:[%s1 + $0x338] sm:$0xff]
  %v129 = vld [vmem:[%s1 + $0x340] sm:$0xff]
  %v130 = vld [vmem:[%s1 + $0x348] sm:$0xff]
  %v131 = vld [vmem:[%s1 + $0x350] sm:$0xff]
  %v132 = vld [vmem:[%s1 + $0x358] sm:$0xff]
  %v133 = vld [vmem:[%s1 + $0x360] sm:$0xff]
  %v134 = vld [vmem:[%s1 + $0x368] sm:$0xff]
  %v135 = vld [vmem:[%s1 + $0x370] sm:$0xff]
  %v136 = vld [vmem:[%s1 + $0x378] sm:$0xff]
  %v137 = vld [vmem:[%s1 + $0x380] sm:$0xff]
  %v138 = vld [vmem:[%s1 + $0x388] sm:$0xff]
  %v139 = vld [vmem:[%s1 + $0x390] sm:$0xff]
  %v140 = vld [vmem:[%s1 + $0x398] sm:$0xff]
  %v141 = vld [vmem:[%s1 + $0x3a0] sm:$0xff]
  %v142 = vld [vmem:[%s1 + $0x3a8] sm:$0xff]
  %v143 = vld [vmem:[%s1 + $0x3b0] sm:$0xff]
  %v144 = vld [vmem:[%s1 + $0x3b8] sm:$0xff]
  %v145 = vld [vmem:[%s1 + $0x3c0] sm:$0xff]
  %v146 = vld [vmem:[%s1 + $0x3c8] sm:$0xff]
  %v147 = vld [vmem:[%s1 + $0x3d0] sm:$0xff]
  %v148 = vld [vmem:[%s1 + $0x3d8] sm:$0xff]
  %v149 = vld [vmem:[%s1 + $0x3e0] sm:$0xff]
  %v150 = vld [vmem:[%s1 + $0x3e8] sm:$0xff]
  %v151 = vld [vmem:[%s1 + $0x3f0] sm:$0xff]
  %v152 = vld [vmem:[%s1 + $0x3f8] sm:$0xff]
  %v153 = vld [vmem:[%s1 + $0x400] sm:$0xff]
  %v154 = vld [vmem:[%s1 + $0x408] sm:$0xff]
  %v155 = vld [vmem:[%s1 + $0x410] sm:$0xff]
  %v156 = vld [vmem:[%s1 + $0x418] sm:$0xff]
  %v157 = vld [vmem:[%s1 + $0x420] sm:$0xff]
  %v158 = vld [vmem:[%s1 + $0x428] sm:$0xff]
  %v159 = vld [vmem:[%s1 + $0x430] sm:$0xff]
  %v160 = vld [vmem:[%s1 + $0x438] sm:$0xff]
  %v161 = vld [vmem:[%s1 + $0x440] sm:$0xff]
  %v162 = vld [vmem:[%s1 + $0x448] sm:$0xff]
  %v163 = vld [vmem:[%s1 + $0x450] sm:$0xff]
  %v164 = vld [vmem:[%s1 + $0x458] sm:$0xff]
  %v165 = vld [vmem:[%s1 + $0x460] sm:$0xff]
  %v166 = vld [vmem:[%s1 + $0x468] sm:$0xff]
  %v167 = vld [vmem:[%s1 + $0x470] sm:$0xff]
  %v168 = vld [vmem:[%s1 + $0x478] sm:$0xff]
  %v169 = vld [vmem:[%s1 + $0x480] sm:$0xff]
  %v170 = vld [vmem:[%s1 + $0x488] sm:$0xff]
  %v171 = vld [vmem:[%s1 + $0x490] sm:$0xff]
  %v172 = vld [vmem:[%s1 + $0x498] sm:$0xff]
  %v173 = vld [vmem:[%s1 + $0x4a0] sm:$0xff]
  %v174 = vld [vmem:[%s1 + $0x4a8] sm:$0xff]
  %v175 = vld [vmem:[%s1 + $0x4b0] sm:$0xff]
  %v176 = vld [vmem:[%s1 + $0x4b8] sm:$0xff]
  %v177 = vld [vmem:[%s1 + $0x4c0] sm:$0xff]
  %v178 = vld [vmem:[%s1 + $0x4c8] sm:$0xff]
  %v179 = vld [vmem:[%s1 + $0x4d0] sm:$0xff]
  %v180 = vld [vmem:[%s1 + $0x4d8] sm:$0xff]
  %v181 = vld [vmem:[%s1 + $0x4e0] sm:$0xff]
  %v182 = vld [vmem:[%s1 + $0x4e8] sm:$0xff]
  %v183 = vld [vmem:[%s1 + $0x4f0] sm:$0xff]
  %v184 = vld [vmem:[%s1 + $0x4f8] sm:$0xff]
  %v185 = vld [vmem:[%s1 + $0x500] sm:$0xff]
  %v186 = vld [vmem:[%s1 + $0x508] sm:$0xff]
  %v187 = vld [vmem:[%s1 + $0x510] sm:$0xff]
  %v188 = vld [vmem:[%s1 + $0x518] sm:$0xff]
  %v189 = vld [vmem:[%s1 + $0x520] sm:$0xff]
  %v190 = vld [vmem:[%s1 + $0x528] sm:$0xff]
  %v191 = vld [vmem:[%s1 + $0x530] sm:$0xff]
  %v192 = vld [vmem:[%s1 + $0x538] sm:$0xff]
  %v193 = vld [vmem:[%s1 + $0x540] sm:$0xff]
  %v194 = vld [vmem:[%s1 + $0x548] sm:$0xff]
  %v195 = vld [vmem:[%s1 + $0x550] sm:$0xff]
  %v196 = vld [vmem:[%s1 + $0x558] sm:$0xff]
  %v197 = vld [vmem:[%s1 + $0x560] sm:$0xff]
  %v198 = vld [vmem:[%s1 + $0x568] sm:$0xff]
  %v199 = vld [vmem:[%s1 + $0x570] sm:$0xff]
  %v200 = vld [vmem:[%s1 + $0x578] sm:$0xff]
  %v201 = vld [vmem:[%s1 + $0x580] sm:$0xff]
  %v202 = vld [vmem:[%s1 + $0x588] sm:$0xff]
  %v203 = vld [vmem:[%s1 + $0x590] sm:$0xff]
  %v204 = vld [vmem:[%s1 + $0x598] sm:$0xff]
  %v205 = vld [vmem:[%s1 + $0x5a0] sm:$0xff]
  %v206 = vld [vmem:[%s1 + $0x5a8] sm:$0xff]
  %v207 = vld [vmem:[%s1 + $0x5b0] sm:$0xff]
  %v208 = vld [vmem:[%s1 + $0x5b8] sm:$0xff]
  %v209 = vld [vmem:[%s1 + $0x5c0] sm:$0xff]
  %v210 = vld [vmem:[%s1 + $0x5c8] sm:$0xff]
  %v211 = vld [vmem:[%s1 + $0x5d0] sm:$0xff]
  %v212 = vld [vmem:[%s1 + $0x5d8] sm:$0xff]
  %v213 = vld [vmem:[%s1 + $0x5e0] sm:$0xff]
  %v214 = vld [vmem:[%s1 + $0x5e8] sm:$0xff]
  %v215 = vld [vmem:[%s1 + $0x5f0] sm:$0xff]
  %v216 = vld [vmem:[%s1 + $0x5f8] sm:$0xff]
  %v217 = vld [vmem:[%s1 + $0x600] sm:$0xff]
  %v218 = vld [vmem:[%s1 + $0x608] sm:$0xff]
  %v219 = vld [vmem:[%s1 + $0x610] sm:$0xff]
  %v220 = vld [vmem:[%s1 + $0x618] sm:$0xff]
  %v221 = vld [vmem:[%s1 + $0x620] sm:$0xff]
  %v222 = vld [vmem:[%s1 + $0x628] sm:$0xff]
  %v223 = vld [vmem:[%s1 + $0x630] sm:$0xff]
  %v224 = vld [vmem:[%s1 + $0x638] sm:$0xff]
  %v225 = vld [vmem:[%s1 + $0x640] sm:$0xff]
  %v226 = vld [vmem:[%s1 + $0x648] sm:$0xff]
  %v227 = vld [vmem:[%s1 + $0x650] sm:$0xff]
  %v228 = vld [vmem:[%s1 + $0x658] sm:$0xff]
  %v229 = vld [vmem:[%s1 + $0x660] sm:$0xff]
  %v230 = vld [vmem:[%s1 + $0x668] sm:$0xff]
  %v231 = vld [vmem:[%s1 + $0x670] sm:$0xff]
  %v232 = vld [vmem:[%s1 + $0x678] sm:$0xff]
  %v233 = vld [vmem:[%s1 + $0x680] sm:$0xff]
  %v234 = vld [vmem:[%s1 + $0x688] sm:$0xff]
  %v235 = vld [vmem:[%s1 + $0x690] sm:$0xff]
  %v236 = vld [vmem:[%s1 + $0x698] sm:$0xff]
  %v237 = vld [vmem:[%s1 + $0x6a0] sm:$0xff]
  %v238 = vld [vmem:[%s1 + $0x6a8] sm:$0xff]
  %v239 = vld [vmem:[%s1 + $0x6b0] sm:$0xff]
  %v240 = vld [vmem:[%s1 + $0x6b8] sm:$0xff]
  %v241 = vld [vmem:[%s1 + $0x6c0] sm:$0xff]
  %v242 = vld [vmem:[%s1 + $0x6c8] sm:$0xff]
  %v243 = vld [vmem:[%s1 + $0x6d0] sm:$0xff]
  %v244 = vld [vmem:[%s1 + $0x6d8] sm:$0xff]
  %v245 = vld [vmem:[%s1 + $0x6e0] sm:$0xff]
  %v246 = vld [vmem:[%s1 + $0x6e8] sm:$0xff]
  %v247 = vld [vmem:[%s1 + $0x6f0] sm:$0xff]
  %v248 = vld [vmem:[%s1 + $0x6f8] sm:$0xff]
  %v249 = vld [vmem:[%s1 + $0x700] sm:$0xff]
  %v250 = vld [vmem:[%s1 + $0x708] sm:$0xff]
  %v251 = vld [vmem:[%s1 + $0x710] sm:$0xff]
  %v252 = vld [vmem:[%s1 + $0x718] sm:$0xff]
  %v253 = vld [vmem:[%s1 + $0x720] sm:$0xff]
  %v254 = vld [vmem:[%s1 + $0x728] sm:$0xff]
  %v255 = vld [vmem:[%s1 + $0x730] sm:$0xff]
  %v256 = vld [vmem:[%s1 + $0x738] sm:$0xff]
  %v257 = vld [vmem:[%s1 + $0x740] sm:$0xff]
  %v258 = vld [vmem:[%s1 + $0x748] sm:$0xff]
  %v259 = vld [vmem:[%s1 + $0x750] sm:$0xff]
  %v260 = vld [vmem:[%s1 + $0x758] sm:$0xff]
  %v261 = vld [vmem:[%s1 + $0x760] sm:$0xff]
  %v262 = vld [vmem:[%s1 + $0x768] sm:$0xff]
  %v263 = vld [vmem:[%s1 + $0x770] sm:$0xff]
  %v264 = vld [vmem:[%s1 + $0x778] sm:$0xff]
  %v265 = vld [vmem:[%s1 + $0x780] sm:$0xff]
  %v266 = vld [vmem:[%s1 + $0x788] sm:$0xff]
  %v267 = vld [vmem:[%s1 + $0x790] sm:$0xff]
  %v268 = vld [vmem:[%s1 + $0x798] sm:$0xff]
  %v269 = vld [vmem:[%s1 + $0x7a0] sm:$0xff]
  %v270 = vld [vmem:[%s1 + $0x7a8] sm:$0xff]
  %v271 = vld [vmem:[%s1 + $0x7b0] sm:$0xff]
  %v272 = vld [vmem:[%s1 + $0x7b8] sm:$0xff]
  %v273 = vld [vmem:[%s1 + $0x7c0] sm:$0xff]
  %v274 = vld [vmem:[%s1 + $0x7c8] sm:$0xff]
  %v275 = vld [vmem:[%s1 + $0x7d0] sm:$0xff]
  %v276 = vld [vmem:[%s1 + $0x7d8] sm:$0xff]
  %v277 = vld [vmem:[%s1 + $0x7e0] sm:$0xff]
  %v278 = vld [vmem:[%s1 + $0x7e8] sm:$0xff]
  %v279 = vld [vmem:[%s1 + $0x7f0] sm:$0xff]
  %v280 = vld [vmem:[%s1 + $0x7f8] sm:$0xff]
  %v281 = vld [vmem:[%s1 + $0x800] sm:$0xff]
  %v282 = vld [vmem:[%s1 + $0x808] sm:$0xff]
  %v283 = vld [vmem:[%s1 + $0x810] sm:$0xff]
  %v284 = vld [vmem:[%s1 + $0x818] sm:$0xff]
  %v285 = vld [vmem:[%s1 + $0x820] sm:$0xff]
  %v286 = vld [vmem:[%s1 + $0x828] sm:$0xff]
  %v287 = vld [vmem:[%s1 + $0x830] sm:$0xff]
  %v288 = vld [vmem:[%s1 + $0x838] sm:$0xff]
  %v289 = vld [vmem:[%s1 + $0x840] sm:$0xff]
  %v290 = vld [vmem:[%s1 + $0x848] sm:$0xff]
  %v291 = vld [vmem:[%s1 + $0x850] sm:$0xff]
  %v292 = vld [vmem:[%s1 + $0x858] sm:$0xff]
  %v293 = vld [vmem:[%s1 + $0x860] sm:$0xff]
  %v294 = vld [vmem:[%s1 + $0x868] sm:$0xff]
  %v295 = vld [vmem:[%s1 + $0x870] sm:$0xff]
  %v296 = vld [vmem:[%s1 + $0x878] sm:$0xff]
  %v297 = vld [vmem:[%s1 + $0x880] sm:$0xff]
  %v298 = vld [vmem:[%s1 + $0x888] sm:$0xff]
  %v299 = vld [vmem:[%s1 + $0x890] sm:$0xff]
  %v300 = vld [vmem:[%s1 + $0x898] sm:$0xff]
  %v301 = vld [vmem:[%s1 + $0x8a0] sm:$0xff]
  %v302 = vld [vmem:[%s1 + $0x8a8] sm:$0xff]
  %v303 = vld [vmem:[%s1 + $0x8b0] sm:$0xff]
  %v304 = vld [vmem:[%s1 + $0x8b8] sm:$0xff]
  %v305 = vld [vmem:[%s1 + $0x8c0] sm:$0xff]
  %v306 = vld [vmem:[%s1 + $0x8c8] sm:$0xff]
  %v307 = vld [vmem:[%s1 + $0x8d0] sm:$0xff]
  %v308 = vld [vmem:[%s1 + $0x8d8] sm:$0xff]
  %v309 = vld [vmem:[%s1 + $0x8e0] sm:$0xff]
  %v310 = vld [vmem:[%s1 + $0x8e8] sm:$0xff]
  %v311 = vld [vmem:[%s1 + $0x8f0] sm:$0xff]
  %v312 = vld [vmem:[%s1 + $0x8f8] sm:$0xff]
  %v313 = vld [vmem:[%s1 + $0x900] sm:$0xff]
  %v314 = vld [vmem:[%s1 + $0x908] sm:$0xff]
  %v315 = vld [vmem:[%s1 + $0x910] sm:$0xff]
  %v316 = vld [vmem:[%s1 + $0x918] sm:$0xff]
  %v317 = vld [vmem:[%s1 + $0x920] sm:$0xff]
  %v318 = vld [vmem:[%s1 + $0x928] sm:$0xff]
  %v319 = vld [vmem:[%s1 + $0x930] sm:$0xff]
  %v320 = vld [vmem:[%s1 + $0x938] sm:$0xff]
  %v321 = vld [vmem:[%s1 + $0x940] sm:$0xff]
  %v322 = vld [vmem:[%s1 + $0x948] sm:$0xff]
  %v323 = vld [vmem:[%s1 + $0x950] sm:$0xff]
  %v324 = vld [vmem:[%s1 + $0x958] sm:$0xff]
  %v325 = vld [vmem:[%s1 + $0x960] sm:$0xff]
  %v326 = vld [vmem:[%s1 + $0x968] sm:$0xff]
  %v327 = vld [vmem:[%s1 + $0x970] sm:$0xff]
  %v328 = vld [vmem:[%s1 + $0x978] sm:$0xff]
  %v329 = vld [vmem:[%s1 + $0x980] sm:$0xff]
  %v330 = vld [vmem:[%s1 + $0x988] sm:$0xff]
  %v331 = vld [vmem:[%s1 + $0x990] sm:$0xff]
  %v332 = vld [vmem:[%s1 + $0x998] sm:$0xff]
  %v333 = vld [vmem:[%s1 + $0x9a0] sm:$0xff]
  %v334 = vld [vmem:[%s1 + $0x9a8] sm:$0xff]
  %v335 = vld [vmem:[%s1 + $0x9b0] sm:$0xff]
  %v336 = vld [vmem:[%s1 + $0x9b8] sm:$0xff]
  %v337 = vld [vmem:[%s1 + $0x9c0] sm:$0xff]
  %v338 = vld [vmem:[%s1 + $0x9c8] sm:$0xff]
  %v339 = vld [vmem:[%s1 + $0x9d0] sm:$0xff]
  %v340 = vld [vmem:[%s1 + $0x9d8] sm:$0xff]
  %v341 = vld [vmem:[%s1 + $0x9e0] sm:$0xff]
  %v342 = vld [vmem:[%s1 + $0x9e8] sm:$0xff]
  %v343 = vld [vmem:[%s1 + $0x9f0] sm:$0xff]
  %v344 = vld [vmem:[%s1 + $0x9f8] sm:$0xff]
  %v345 = vld [vmem:[%s1 + $0xa00] sm:$0xff]
  %v346 = vld [vmem:[%s1 + $0xa08] sm:$0xff]
  %v347 = vld [vmem:[%s1 + $0xa10] sm:$0xff]
  %v348 = vld [vmem:[%s1 + $0xa18] sm:$0xff]
  %v349 = vld [vmem:[%s1 + $0xa20] sm:$0xff]
  %v350 = vld [vmem:[%s1 + $0xa28] sm:$0xff]
  %v351 = vld [vmem:[%s1 + $0xa30] sm:$0xff]
  %v352 = vld [vmem:[%s1 + $0xa38] sm:$0xff]
  %v353 = vld [vmem:[%s1 + $0xa40] sm:$0xff]
  %v354 = vld [vmem:[%s1 + $0xa48] sm:$0xff]
  %v355 = vld [vmem:[%s1 + $0xa50] sm:$0xff]
  %v356 = vld [vmem:[%s1 + $0xa58] sm:$0xff]
  %v357 = vld [vmem:[%s1 + $0xa60] sm:$0xff]
  %v358 = vld [vmem:[%s1 + $0xa68] sm:$0xff]
  %v359 = vld [vmem:[%s1 + $0xa70] sm:$0xff]
  %v360 = vld [vmem:[%s1 + $0xa78] sm:$0xff]
  %v361 = vld [vmem:[%s1 + $0xa80] sm:$0xff]
  %v362 = vld [vmem:[%s1 + $0xa88] sm:$0xff]
  %v363 = vld [vmem:[%s1 + $0xa90] sm:$0xff]
  %v364 = vld [vmem:[%s1 + $0xa98] sm:$0xff]
  %v365 = vld [vmem:[%s1 + $0xaa0] sm:$0xff]
  %v366 = vld [vmem:[%s1 + $0xaa8] sm:$0xff]
  %v367 = vld [vmem:[%s1 + $0xab0] sm:$0xff]
  %v368 = vld [vmem:[%s1 + $0xab8] sm:$0xff]
  %v369 = vld [vmem:[%s1 + $0xac0] sm:$0xff]
  %v370 = vld [vmem:[%s1 + $0xac8] sm:$0xff]
  %v371 = vld [vmem:[%s1 + $0xad0] sm:$0xff]
  %v372 = vld [vmem:[%s1 + $0xad8] sm:$0xff]
  %v373 = vld [vmem:[%s1 + $0xae0] sm:$0xff]
  %v374 = vld [vmem:[%s1 + $0xae8] sm:$0xff]
  %v375 = vld [vmem:[%s1 + $0xaf0] sm:$0xff]
  %v376 = vld [vmem:[%s1 + $0xaf8] sm:$0xff]
  %v377 = vld [vmem:[%s1 + $0xb00] sm:$0xff]
  %v378 = vld [vmem:[%s1 + $0xb08] sm:$0xff]
  %v379 = vld [vmem:[%s1 + $0xb10] sm:$0xff]
  %v380 = vld [vmem:[%s1 + $0xb18] sm:$0xff]
  %v381 = vld [vmem:[%s1 + $0xb20] sm:$0xff]
  %v382 = vld [vmem:[%s1 + $0xb28] sm:$0xff]
  %v383 = vld [vmem:[%s1 + $0xb30] sm:$0xff]
  %v384 = vld [vmem:[%s1 + $0xb38] sm:$0xff]
  %v385 = vld [vmem:[%s1 + $0xb40] sm:$0xff]
  %v386 = vld [vmem:[%s1 + $0xb48] sm:$0xff]
  %v387 = vld [vmem:[%s1 + $0xb50] sm:$0xff]
  %v388 = vld [vmem:[%s1 + $0xb58] sm:$0xff]
  %v389 = vld [vmem:[%s1 + $0xb60] sm:$0xff]
  %v390 = vld [vmem:[%s1 + $0xb68] sm:$0xff]
  %v391 = vld [vmem:[%s1 + $0xb70] sm:$0xff]
  %v392 = vld [vmem:[%s1 + $0xb78] sm:$0xff]
  %v393 = vld [vmem:[%s1 + $0xb80] sm:$0xff]
  %v394 = vld [vmem:[%s1 + $0xb88] sm:$0xff]
  %v395 = vld [vmem:[%s1 + $0xb90] sm:$0xff]
  %v396 = vld [vmem:[%s1 + $0xb98] sm:$0xff]
  %v397 = vld [vmem:[%s1 + $0xba0] sm:$0xff]
  %v398 = vld [vmem:[%s1 + $0xba8] sm:$0xff]
  %v399 = vld [vmem:[%s1 + $0xbb0] sm:$0xff]
  %v400 = vld [vmem:[%s1 + $0xbb8] sm:$0xff]
  %v401 = vld [vmem:[%s1 + $0xbc0] sm:$0xff]
  %v402 = vld [vmem:[%s1 + $0xbc8] sm:$0xff]
  %v403 = vld [vmem:[%s1 + $0xbd0] sm:$0xff]
  %v404 = vld [vmem:[%s1 + $0xbd8] sm:$0xff]
  %v405 = vld [vmem:[%s1 + $0xbe0] sm:$0xff]
  %v406 = vld [vmem:[%s1 + $0xbe8] sm:$0xff]
  %v407 = vld [vmem:[%s1 + $0xbf0] sm:$0xff]
  %v408 = vld [vmem:[%s1 + $0xbf8] sm:$0xff]
  %v409 = vld [vmem:[%s1 + $0xc00] sm:$0xff]
  %v410 = vld [vmem:[%s1 + $0xc08] sm:$0xff]
  %v411 = vld [vmem:[%s1 + $0xc10] sm:$0xff]
  %v412 = vld [vmem:[%s1 + $0xc18] sm:$0xff]
  %v413 = vld [vmem:[%s1 + $0xc20] sm:$0xff]
  %v414 = vld [vmem:[%s1 + $0xc28] sm:$0xff]
  %v415 = vld [vmem:[%s1 + $0xc30] sm:$0xff]
  %v416 = vld [vmem:[%s1 + $0xc38] sm:$0xff]
  %v417 = vld [vmem:[%s1 + $0xc40] sm:$0xff]
  %v418 = vld [vmem:[%s1 + $0xc48] sm:$0xff]
  %v419 = vld [vmem:[%s1 + $0xc50] sm:$0xff]
  %v420 = vld [vmem:[%s1 + $0xc58] sm:$0xff]
  %v421 = vld [vmem:[%s1 + $0xc60] sm:$0xff]
  %v422 = vld [vmem:[%s1 + $0xc68] sm:$0xff]
  %v423 = vld [vmem:[%s1 + $0xc70] sm:$0xff]
  %v424 = vld [vmem:[%s1 + $0xc78] sm:$0xff]
  %v425 = vld [vmem:[%s1 + $0xc80] sm:$0xff]
  %v426 = vld [vmem:[%s1 + $0xc88] sm:$0xff]
  %v427 = vld [vmem:[%s1 + $0xc90] sm:$0xff]
  %v428 = vld [vmem:[%s1 + $0xc98] sm:$0xff]
  %v429 = vld [vmem:[%s1 + $0xca0] sm:$0xff]
  %v430 = vld [vmem:[%s1 + $0xca8] sm:$0xff]
  %v431 = vld [vmem:[%s1 + $0xcb0] sm:$0xff]
  %v432 = vld [vmem:[%s1 + $0xcb8] sm:$0xff]
  %v433 = vld [vmem:[%s1 + $0xcc0] sm:$0xff]
  %v434 = vld [vmem:[%s1 + $0xcc8] sm:$0xff]
  %v435 = vld [vmem:[%s1 + $0xcd0] sm:$0xff]
  %v436 = vld [vmem:[%s1 + $0xcd8] sm:$0xff]
  %v437 = vld [vmem:[%s1 + $0xce0] sm:$0xff]
  %v438 = vld [vmem:[%s1 + $0xce8] sm:$0xff]
  %v439 = vld [vmem:[%s1 + $0xcf0] sm:$0xff]
  %v440 = vld [vmem:[%s1 + $0xcf8] sm:$0xff]
  %v441 = vld [vmem:[%s1 + $0xd00] sm:$0xff]
  %v442 = vld [vmem:[%s1 + $0xd08] sm:$0xff]
  %v443 = vld [vmem:[%s1 + $0xd10] sm:$0xff]
  %v444 = vld [vmem:[%s1 + $0xd18] sm:$0xff]
  %v445 = vld [vmem:[%s1 + $0xd20] sm:$0xff]
  %v446 = vld [vmem:[%s1 + $0xd28] sm:$0xff]
  %v447 = vld [vmem:[%s1 + $0xd30] sm:$0xff]
  %v448 = vld [vmem:[%s1 + $0xd38] sm:$0xff]
  %v449 = vld [vmem:[%s1 + $0xd40] sm:$0xff]
  %v450 = vld [vmem:[%s1 + $0xd48] sm:$0xff]
  %v451 = vld [vmem:[%s1 + $0xd50] sm:$0xff]
  %v452 = vld [vmem:[%s1 + $0xd58] sm:$0xff]
  %v453 = vld [vmem:[%s1 + $0xd60] sm:$0xff]
  %v454 = vld [vmem:[%s1 + $0xd68] sm:$0xff]
  %v455 = vld [vmem:[%s1 + $0xd70] sm:$0xff]
  %v456 = vld [vmem:[%s1 + $0xd78] sm:$0xff]
  %v457 = vld [vmem:[%s1 + $0xd80] sm:$0xff]
  %v458 = vld [vmem:[%s1 + $0xd88] sm:$0xff]
  %v459 = vld [vmem:[%s1 + $0xd90] sm:$0xff]
  %v460 = vld [vmem:[%s1 + $0xd98] sm:$0xff]
  %v461 = vld [vmem:[%s1 + $0xda0] sm:$0xff]
  %v462 = vld [vmem:[%s1 + $0xda8] sm:$0xff]
  %v463 = vld [vmem:[%s1 + $0xdb0] sm:$0xff]
  %v464 = vld [vmem:[%s1 + $0xdb8] sm:$0xff]
  %v465 = vld [vmem:[%s1 + $0xdc0] sm:$0xff]
  %v466 = vld [vmem:[%s1 + $0xdc8] sm:$0xff]
  %v467 = vld [vmem:[%s1 + $0xdd0] sm:$0xff]
  %v468 = vld [vmem:[%s1 + $0xdd8] sm:$0xff]
  %v469 = vld [vmem:[%s1 + $0xde0] sm:$0xff]
  %v470 = vld [vmem:[%s1 + $0xde8] sm:$0xff]
  %v471 = vld [vmem:[%s1 + $0xdf0] sm:$0xff]
  %v472 = vld [vmem:[%s1 + $0xdf8] sm:$0xff]
  %v473 = vld [vmem:[%s1 + $0xe00] sm:$0xff]
  %v474 = vld [vmem:[%s1 + $0xe08] sm:$0xff]
  %v475 = vld [vmem:[%s1 + $0xe10] sm:$0xff]
  %v476 = vld [vmem:[%s1 + $0xe18] sm:$0xff]
  %v477 = vld [vmem:[%s1 + $0xe20] sm:$0xff]
  %v478 = vld [vmem:[%s1 + $0xe28] sm:$0xff]
  %v479 = vld [vmem:[%s1 + $0xe30] sm:$0xff]
  %v480 = vld [vmem:[%s1 + $0xe38] sm:$0xff]
  %v481 = vld [vmem:[%s1 + $0xe40] sm:$0xff]
  %v482 = vld [vmem:[%s1 + $0xe48] sm:$0xff]
  %v483 = vld [vmem:[%s1 + $0xe50] sm:$0xff]
  %v484 = vld [vmem:[%s1 + $0xe58] sm:$0xff]
  %v485 = vld [vmem:[%s1 + $0xe60] sm:$0xff]
  %v486 = vld [vmem:[%s1 + $0xe68] sm:$0xff]
  %v487 = vld [vmem:[%s1 + $0xe70] sm:$0xff]
  %v488 = vld [vmem:[%s1 + $0xe78] sm:$0xff]
  %v489 = vld [vmem:[%s1 + $0xe80] sm:$0xff]
  %v490 = vld [vmem:[%s1 + $0xe88] sm:$0xff]
  %v491 = vld [vmem:[%s1 + $0xe90] sm:$0xff]
  %v492 = vld [vmem:[%s1 + $0xe98] sm:$0xff]
  %v493 = vld [vmem:[%s1 + $0xea0] sm:$0xff]
  %v494 = vld [vmem:[%s1 + $0xea8] sm:$0xff]
  %v495 = vld [vmem:[%s1 + $0xeb0] sm:$0xff]
  %v496 = vld [vmem:[%s1 + $0xeb8] sm:$0xff]
  %v497 = vld [vmem:[%s1 + $0xec0] sm:$0xff]
  %v498 = vld [vmem:[%s1 + $0xec8] sm:$0xff]
  %v499 = vld [vmem:[%s1 + $0xed0] sm:$0xff]
  %v500 = vld [vmem:[%s1 + $0xed8] sm:$0xff]
  %v501 = vld [vmem:[%s1 + $0xee0] sm:$0xff]
  %v502 = vld [vmem:[%s1 + $0xee8] sm:$0xff]
  %v503 = vld [vmem:[%s1 + $0xef0] sm:$0xff]
  %v504 = vld [vmem:[%s1 + $0xef8] sm:$0xff]
  %v505 = vld [vmem:[%s1 + $0xf00] sm:$0xff]
  %v506 = vld [vmem:[%s1 + $0xf08] sm:$0xff]
  %v507 = vld [vmem:[%s1 + $0xf10] sm:$0xff]
  %v508 = vld [vmem:[%s1 + $0xf18] sm:$0xff]
  %v509 = vld [vmem:[%s1 + $0xf20] sm:$0xff]
  %v510 = vld [vmem:[%s1 + $0xf28] sm:$0xff]
  %v511 = vld [vmem:[%s1 + $0xf30] sm:$0xff]
  %v512 = vld [vmem:[%s1 + $0xf38] sm:$0xff]
  %v513 = vld [vmem:[%s1 + $0xf40] sm:$0xff]
  %v514 = vld [vmem:[%s1 + $0xf48] sm:$0xff]
  %v515 = vld [vmem:[%s1 + $0xf50] sm:$0xff]
  %v516 = vld [vmem:[%s1 + $0xf58] sm:$0xff]
  %v517 = vld [vmem:[%s1 + $0xf60] sm:$0xff]
  %v518 = vld [vmem:[%s1 + $0xf68] sm:$0xff]
  %v519 = vld [vmem:[%s1 + $0xf70] sm:$0xff]
  %v520 = vld [vmem:[%s1 + $0xf78] sm:$0xff]
  %v521 = vld [vmem:[%s1 + $0xf80] sm:$0xff]
  %v522 = vld [vmem:[%s1 + $0xf88] sm:$0xff]
  %v523 = vld [vmem:[%s1 + $0xf90] sm:$0xff]
  %v524 = vld [vmem:[%s1 + $0xf98] sm:$0xff]
  %v525 = vld [vmem:[%s1 + $0xfa0] sm:$0xff]
  %v526 = vld [vmem:[%s1 + $0xfa8] sm:$0xff]
  %v527 = vld [vmem:[%s1 + $0xfb0] sm:$0xff]
  %v528 = vld [vmem:[%s1 + $0xfb8] sm:$0xff]
  %v529 = vld [vmem:[%s1 + $0xfc0] sm:$0xff]
  %v530 = vld [vmem:[%s1 + $0xfc8] sm:$0xff]
  %v531 = vld [vmem:[%s1 + $0xfd0] sm:$0xff]
  %v532 = vld [vmem:[%s1 + $0xfd8] sm:$0xff]
  %v533 = vld [vmem:[%s1 + $0xfe0] sm:$0xff]
  %v534 = vld [vmem:[%s1 + $0xfe8] sm:$0xff]
  %v535 = vld [vmem:[%s1 + $0xff0] sm:$0xff]
  %v536 = vld [vmem:[%s1 + $0xff8] sm:$0xff]
  %v537 = vld [vmem:[%s1 + $0x1000] sm:$0xff]
  %v538 = vld [vmem:[%s1 + $0x1008] sm:$0xff]
  %v539 = vld [vmem:[%s1 + $0x1010] sm:$0xff]
  %v540 = vld [vmem:[%s1 + $0x1018] sm:$0xff]
  %v541 = vld [vmem:[%s1 + $0x1020] sm:$0xff]
  %v542 = vld [vmem:[%s1 + $0x1028] sm:$0xff]
  %v543 = vld [vmem:[%s1 + $0x1030] sm:$0xff]
  %v544 = vld [vmem:[%s1 + $0x1038] sm:$0xff]
  %v545 = vld [vmem:[%s1 + $0x1040] sm:$0xff]
  %v546 = vld [vmem:[%s1 + $0x1048] sm:$0xff]
  %v547 = vld [vmem:[%s1 + $0x1050] sm:$0xff]
  %v548 = vld [vmem:[%s1 + $0x1058] sm:$0xff]
  %v549 = vld [vmem:[%s1 + $0x1060] sm:$0xff]
  %v550 = vld [vmem:[%s1 + $0x1068] sm:$0xff]
  %v551 = vld [vmem:[%s1 + $0x1070] sm:$0xff]
  %v552 = vld [vmem:[%s1 + $0x1078] sm:$0xff]
  %v553 = vld [vmem:[%s1 + $0x1080] sm:$0xff]
  %v554 = vld [vmem:[%s1 + $0x1088] sm:$0xff]
  %v555 = vld [vmem:[%s1 + $0x1090] sm:$0xff]
  %v556 = vld [vmem:[%s1 + $0x1098] sm:$0xff]
  %v557 = vld [vmem:[%s1 + $0x10a0] sm:$0xff]
  %v558 = vld [vmem:[%s1 + $0x10a8] sm:$0xff]
  %v559 = vld [vmem:[%s1 + $0x10b0] sm:$0xff]
  %v560 = vld [vmem:[%s1 + $0x10b8] sm:$0xff]
  %v561 = vld [vmem:[%s1 + $0x10c0] sm:$0xff]
  %v562 = vld [vmem:[%s1 + $0x10c8] sm:$0xff]
  %v563 = vld [vmem:[%s1 + $0x10d0] sm:$0xff]
  %v564 = vld [vmem:[%s1 + $0x10d8] sm:$0xff]
  %v565 = vld [vmem:[%s1 + $0x10e0] sm:$0xff]
  %v566 = vld [vmem:[%s1 + $0x10e8] sm:$0xff]
  %v567 = vld [vmem:[%s1 + $0x10f0] sm:$0xff]
  %v568 = vld [vmem:[%s1 + $0x10f8] sm:$0xff]
  %v569 = vld [vmem:[%s1 + $0x1100] sm:$0xff]
  %v570 = vld [vmem:[%s1 + $0x1108] sm:$0xff]
  %v571 = vld [vmem:[%s1 + $0x1110] sm:$0xff]
  %v572 = vld [vmem:[%s1 + $0x1118] sm:$0xff]
  %v573 = vld [vmem:[%s1 + $0x1120] sm:$0xff]
  %v574 = vld [vmem:[%s1 + $0x1128] sm:$0xff]
  %v575 = vld [vmem:[%s1 + $0x1130] sm:$0xff]
  %v576 = vld [vmem:[%s1 + $0x1138] sm:$0xff]
  %v577 = vld [vmem:[%s1 + $0x1140] sm:$0xff]
  %v578 = vld [vmem:[%s1 + $0x1148] sm:$0xff]
  %v579 = vld [vmem:[%s1 + $0x1150] sm:$0xff]
  %v580 = vld [vmem:[%s1 + $0x1158] sm:$0xff]
  %v581 = vld [vmem:[%s1 + $0x1160] sm:$0xff]
  %v582 = vld [vmem:[%s1 + $0x1168] sm:$0xff]
  %v583 = vld [vmem:[%s1 + $0x1170] sm:$0xff]
  %v584 = vld [vmem:[%s1 + $0x1178] sm:$0xff]
  %v585 = vld [vmem:[%s1 + $0x1180] sm:$0xff]
  %v586 = vld [vmem:[%s1 + $0x1188] sm:$0xff]
  %v587 = vld [vmem:[%s1 + $0x1190] sm:$0xff]
  %v588 = vld [vmem:[%s1 + $0x1198] sm:$0xff]
  %v589 = vld [vmem:[%s1 + $0x11a0] sm:$0xff]
  %v590 = vld [vmem:[%s1 + $0x11a8] sm:$0xff]
  %v591 = vld [vmem:[%s1 + $0x11b0] sm:$0xff]
  %v592 = vld [vmem:[%s1 + $0x11b8] sm:$0xff]
  %v593 = vld [vmem:[%s1 + $0x11c0] sm:$0xff]
  %v594 = vld [vmem:[%s1 + $0x11c8] sm:$0xff]
  %v595 = vld [vmem:[%s1 + $0x11d0] sm:$0xff]
  %v596 = vld [vmem:[%s1 + $0x11d8] sm:$0xff]
  %v597 = vld [vmem:[%s1 + $0x11e0] sm:$0xff]
  %v598 = vld [vmem:[%s1 + $0x11e8] sm:$0xff]
  %v599 = vld [vmem:[%s1 + $0x11f0] sm:$0xff]
  %v600 = vld [vmem:[%s1 + $0x11f8] sm:$0xff]
  %v601 = vld [vmem:[%s1 + $0x1200] sm:$0xff]
  %v602 = vld [vmem:[%s1 + $0x1208] sm:$0xff]
  %v603 = vld [vmem:[%s1 + $0x1210] sm:$0xff]
  %v604 = vld [vmem:[%s1 + $0x1218] sm:$0xff]
  %v605 = vld [vmem:[%s1 + $0x1220] sm:$0xff]
  %v606 = vld [vmem:[%s1 + $0x1228] sm:$0xff]
  %v607 = vld [vmem:[%s1 + $0x1230] sm:$0xff]
  %v608 = vld [vmem:[%s1 + $0x1238] sm:$0xff]
  %v609 = vld [vmem:[%s1 + $0x1240] sm:$0xff]
  %v610 = vld [vmem:[%s1 + $0x1248] sm:$0xff]
  %v611 = vld [vmem:[%s1 + $0x1250] sm:$0xff]
  %v612 = vld [vmem:[%s1 + $0x1258] sm:$0xff]
  %v613 = vld [vmem:[%s1 + $0x1260] sm:$0xff]
  %v614 = vld [vmem:[%s1 + $0x1268] sm:$0xff]
  %v615 = vld [vmem:[%s1 + $0x1270] sm:$0xff]
  %v616 = vld [vmem:[%s1 + $0x1278] sm:$0xff]
  %v617 = vld [vmem:[%s1 + $0x1280] sm:$0xff]
  %v618 = vld [vmem:[%s1 + $0x1288] sm:$0xff]
  %v619 = vld [vmem:[%s1 + $0x1290] sm:$0xff]
  %v620 = vld [vmem:[%s1 + $0x1298] sm:$0xff]
  %v621 = vld [vmem:[%s1 + $0x12a0] sm:$0xff]
  %v622 = vld [vmem:[%s1 + $0x12a8] sm:$0xff]
  %v623 = vld [vmem:[%s1 + $0x12b0] sm:$0xff]
  %v624 = vld [vmem:[%s1 + $0x12b8] sm:$0xff]
  %v625 = vld [vmem:[%s1 + $0x12c0] sm:$0xff]
  %v626 = vld [vmem:[%s1 + $0x12c8] sm:$0xff]
  %v627 = vld [vmem:[%s1 + $0x12d0] sm:$0xff]
  %v628 = vld [vmem:[%s1 + $0x12d8] sm:$0xff]
  %v629 = vld [vmem:[%s1 + $0x12e0] sm:$0xff]
  %v630 = vld [vmem:[%s1 + $0x12e8] sm:$0xff]
  %v631 = vld [vmem:[%s1 + $0x12f0] sm:$0xff]
  %v632 = vld [vmem:[%s1 + $0x12f8] sm:$0xff]
  %v633 = vld [vmem:[%s1 + $0x1300] sm:$0xff]
  %v634 = vld [vmem:[%s1 + $0x1308] sm:$0xff]
  %v635 = vld [vmem:[%s1 + $0x1310] sm:$0xff]
  %v636 = vld [vmem:[%s1 + $0x1318] sm:$0xff]
  %v637 = vld [vmem:[%s1 + $0x1320] sm:$0xff]
  %v638 = vld [vmem:[%s1 + $0x1328] sm:$0xff]
  %v639 = vld [vmem:[%s1 + $0x1330] sm:$0xff]
  %v640 = vld [vmem:[%s1 + $0x1338] sm:$0xff]
  %v641 = vld [vmem:[%s1 + $0x1340] sm:$0xff]
  %v642 = vld [vmem:[%s1 + $0x1348] sm:$0xff]
  %v643 = vld [vmem:[%s1 + $0x1350] sm:$0xff]
  %v644 = vld [vmem:[%s1 + $0x1358] sm:$0xff]
  %v645 = vld [vmem:[%s1 + $0x1360] sm:$0xff]
  %v646 = vld [vmem:[%s1 + $0x1368] sm:$0xff]
  %v647 = vld [vmem:[%s1 + $0x1370] sm:$0xff]
  %v648 = vld [vmem:[%s1 + $0x1378] sm:$0xff]
  %v649 = vld [vmem:[%s1 + $0x1380] sm:$0xff]
  %v650 = vld [vmem:[%s1 + $0x1388] sm:$0xff]
  %v651 = vld [vmem:[%s1 + $0x1390] sm:$0xff]
  %v652 = vld [vmem:[%s1 + $0x1398] sm:$0xff]
  %v653 = vld [vmem:[%s1 + $0x13a0] sm:$0xff]
  %v654 = vld [vmem:[%s1 + $0x13a8] sm:$0xff]
  %v655 = vld [vmem:[%s1 + $0x13b0] sm:$0xff]
  %v656 = vld [vmem:[%s1 + $0x13b8] sm:$0xff]
  %v657 = vld [vmem:[%s1 + $0x13c0] sm:$0xff]
  %v658 = vld [vmem:[%s1 + $0x13c8] sm:$0xff]
  %v659 = vld [vmem:[%s1 + $0x13d0] sm:$0xff]
  %v660 = vld [vmem:[%s1 + $0x13d8] sm:$0xff]
  %v661 = vld [vmem:[%s1 + $0x13e0] sm:$0xff]
  %v662 = vld [vmem:[%s1 + $0x13e8] sm:$0xff]
  %v663 = vld [vmem:[%s1 + $0x13f0] sm:$0xff]
  %v664 = vld [vmem:[%s1 + $0x13f8] sm:$0xff]
  %v665 = vld [vmem:[%s1 + $0x1400] sm:$0xff]
  %v666 = vld [vmem:[%s1 + $0x1408] sm:$0xff]
  %v667 = vld [vmem:[%s1 + $0x1410] sm:$0xff]
  %v668 = vld [vmem:[%s1 + $0x1418] sm:$0xff]
  %v669 = vld [vmem:[%s1 + $0x1420] sm:$0xff]
  %v670 = vld [vmem:[%s1 + $0x1428] sm:$0xff]
  %v671 = vld [vmem:[%s1 + $0x1430] sm:$0xff]
  %v672 = vld [vmem:[%s1 + $0x1438] sm:$0xff]
  %v673 = vld [vmem:[%s1 + $0x1440] sm:$0xff]
  %v674 = vld [vmem:[%s1 + $0x1448] sm:$0xff]
  %v675 = vld [vmem:[%s1 + $0x1450] sm:$0xff]
  %v676 = vld [vmem:[%s1 + $0x1458] sm:$0xff]
  %v677 = vld [vmem:[%s1 + $0x1460] sm:$0xff]
  %v678 = vld [vmem:[%s1 + $0x1468] sm:$0xff]
  %v679 = vld [vmem:[%s1 + $0x1470] sm:$0xff]
  %v680 = vld [vmem:[%s1 + $0x1478] sm:$0xff]
  %v681 = vld [vmem:[%s1 + $0x1480] sm:$0xff]
  %v682 = vld [vmem:[%s1 + $0x1488] sm:$0xff]
  %v683 = vld [vmem:[%s1 + $0x1490] sm:$0xff]
  %v684 = vld [vmem:[%s1 + $0x1498] sm:$0xff]
  %v685 = vld [vmem:[%s1 + $0x14a0] sm:$0xff]
  %v686 = vld [vmem:[%s1 + $0x14a8] sm:$0xff]
  %v687 = vld [vmem:[%s1 + $0x14b0] sm:$0xff]
  %v688 = vld [vmem:[%s1 + $0x14b8] sm:$0xff]
  %v689 = vld [vmem:[%s1 + $0x14c0] sm:$0xff]
  %v690 = vld [vmem:[%s1 + $0x14c8] sm:$0xff]
  %v691 = vld [vmem:[%s1 + $0x14d0] sm:$0xff]
  %v692 = vld [vmem:[%s1 + $0x14d8] sm:$0xff]
  %v693 = vld [vmem:[%s1 + $0x14e0] sm:$0xff]
  %v694 = vld [vmem:[%s1 + $0x14e8] sm:$0xff]
  %v695 = vld [vmem:[%s1 + $0x14f0] sm:$0xff]
  %v696 = vld [vmem:[%s1 + $0x14f8] sm:$0xff]
  %v697 = vld [vmem:[%s1 + $0x1500] sm:$0xff]
  %v698 = vld [vmem:[%s1 + $0x1508] sm:$0xff]
  %v699 = vld [vmem:[%s1 + $0x1510] sm:$0xff]
  %v700 = vld [vmem:[%s1 + $0x1518] sm:$0xff]
  %v701 = vld [vmem:[%s1 + $0x1520] sm:$0xff]
  %v702 = vld [vmem:[%s1 + $0x1528] sm:$0xff]
  %v703 = vld [vmem:[%s1 + $0x1530] sm:$0xff]
  %v704 = vld [vmem:[%s1 + $0x1538] sm:$0xff]
  %v705 = vld [vmem:[%s1 + $0x1540] sm:$0xff]
  %v706 = vld [vmem:[%s1 + $0x1548] sm:$0xff]
  %v707 = vld [vmem:[%s1 + $0x1550] sm:$0xff]
  %v708 = vld [vmem:[%s1 + $0x1558] sm:$0xff]
  %v709 = vld [vmem:[%s1 + $0x1560] sm:$0xff]
  %v710 = vld [vmem:[%s1 + $0x1568] sm:$0xff]
  %v711 = vld [vmem:[%s1 + $0x1570] sm:$0xff]
  %v712 = vld [vmem:[%s1 + $0x1578] sm:$0xff]
  %v713 = vld [vmem:[%s1 + $0x1580] sm:$0xff]
  %v714 = vld [vmem:[%s1 + $0x1588] sm:$0xff]
  %v715 = vld [vmem:[%s1 + $0x1590] sm:$0xff]
  %v716 = vld [vmem:[%s1 + $0x1598] sm:$0xff]
  %v717 = vld [vmem:[%s1 + $0x15a0] sm:$0xff]
  %v718 = vld [vmem:[%s1 + $0x15a8] sm:$0xff]
  %v719 = vld [vmem:[%s1 + $0x15b0] sm:$0xff]
  %v720 = vld [vmem:[%s1 + $0x15b8] sm:$0xff]
  %v721 = vld [vmem:[%s1 + $0x15c0] sm:$0xff]
  %v722 = vld [vmem:[%s1 + $0x15c8] sm:$0xff]
  %v723 = vld [vmem:[%s1 + $0x15d0] sm:$0xff]
  %v724 = vld [vmem:[%s1 + $0x15d8] sm:$0xff]
  %v725 = vld [vmem:[%s1 + $0x15e0] sm:$0xff]
  %v726 = vld [vmem:[%s1 + $0x15e8] sm:$0xff]
  %v727 = vld [vmem:[%s1 + $0x15f0] sm:$0xff]
  %v728 = vld [vmem:[%s1 + $0x15f8] sm:$0xff]
  %v729 = vld [vmem:[%s1 + $0x1600] sm:$0xff]
  %v730 = vld [vmem:[%s1 + $0x1608] sm:$0xff]
  %v731 = vld [vmem:[%s1 + $0x1610] sm:$0xff]
  %v732 = vld [vmem:[%s1 + $0x1618] sm:$0xff]
  %v733 = vld [vmem:[%s1 + $0x1620] sm:$0xff]
  %v734 = vld [vmem:[%s1 + $0x1628] sm:$0xff]
  %v735 = vld [vmem:[%s1 + $0x1630] sm:$0xff]
  %v736 = vld [vmem:[%s1 + $0x1638] sm:$0xff]
  %v737 = vld [vmem:[%s1 + $0x1640] sm:$0xff]
  %v738 = vld [vmem:[%s1 + $0x1648] sm:$0xff]
  %v739 = vld [vmem:[%s1 + $0x1650] sm:$0xff]
  %v740 = vld [vmem:[%s1 + $0x1658] sm:$0xff]
  %v741 = vld [vmem:[%s1 + $0x1660] sm:$0xff]
  %v742 = vld [vmem:[%s1 + $0x1668] sm:$0xff]
  %v743 = vld [vmem:[%s1 + $0x1670] sm:$0xff]
  %v744 = vld [vmem:[%s1 + $0x1678] sm:$0xff]
  %v745 = vld [vmem:[%s1 + $0x1680] sm:$0xff]
  %v746 = vld [vmem:[%s1 + $0x1688] sm:$0xff]
  %v747 = vld [vmem:[%s1 + $0x1690] sm:$0xff]
  %v748 = vld [vmem:[%s1 + $0x1698] sm:$0xff]
  %v749 = vld [vmem:[%s1 + $0x16a0] sm:$0xff]
  %v750 = vld [vmem:[%s1 + $0x16a8] sm:$0xff]
  %v751 = vld [vmem:[%s1 + $0x16b0] sm:$0xff]
  %v752 = vld [vmem:[%s1 + $0x16b8] sm:$0xff]
  %v753 = vld [vmem:[%s1 + $0x16c0] sm:$0xff]
  %v754 = vld [vmem:[%s1 + $0x16c8] sm:$0xff]
  %v755 = vld [vmem:[%s1 + $0x16d0] sm:$0xff]
  %v756 = vld [vmem:[%s1 + $0x16d8] sm:$0xff]
  %v757 = vld [vmem:[%s1 + $0x16e0] sm:$0xff]
  %v758 = vld [vmem:[%s1 + $0x16e8] sm:$0xff]
  %v759 = vld [vmem:[%s1 + $0x16f0] sm:$0xff]
  %v760 = vld [vmem:[%s1 + $0x16f8] sm:$0xff]
  %v761 = vld [vmem:[%s1 + $0x1700] sm:$0xff]
  %v762 = vld [vmem:[%s1 + $0x1708] sm:$0xff]
  %v763 = vld [vmem:[%s1 + $0x1710] sm:$0xff]
  %v764 = vld [vmem:[%s1 + $0x1718] sm:$0xff]
  %v765 = vld [vmem:[%s1 + $0x1720] sm:$0xff]
  %v766 = vld [vmem:[%s1 + $0x1728] sm:$0xff]
  %v767 = vld [vmem:[%s1 + $0x1730] sm:$0xff]
  %v768 = vld [vmem:[%s1 + $0x1738] sm:$0xff]
  %v769 = vld [vmem:[%s1 + $0x1740] sm:$0xff]
  %v770 = vld [vmem:[%s1 + $0x1748] sm:$0xff]
  %v771 = vld [vmem:[%s1 + $0x1750] sm:$0xff]
  %v772 = vld [vmem:[%s1 + $0x1758] sm:$0xff]
  %v773 = vld [vmem:[%s1 + $0x1760] sm:$0xff]
  %v774 = vld [vmem:[%s1 + $0x1768] sm:$0xff]
  %v775 = vld [vmem:[%s1 + $0x1770] sm:$0xff]
  %v776 = vld [vmem:[%s1 + $0x1778] sm:$0xff]
  %v777 = vld [vmem:[%s1 + $0x1780] sm:$0xff]
  %v778 = vld [vmem:[%s1 + $0x1788] sm:$0xff]
  %v779 = vld [vmem:[%s1 + $0x1790] sm:$0xff]
  %v780 = vld [vmem:[%s1 + $0x1798] sm:$0xff]
  %v781 = vld [vmem:[%s1 + $0x17a0] sm:$0xff]
  %v782 = vld [vmem:[%s1 + $0x17a8] sm:$0xff]
  %v783 = vld [vmem:[%s1 + $0x17b0] sm:$0xff]
  %v784 = vld [vmem:[%s1 + $0x17b8] sm:$0xff]
  %v785 = vld [vmem:[%s1 + $0x17c0] sm:$0xff]
  %v786 = vld [vmem:[%s1 + $0x17c8] sm:$0xff]
  %v787 = vld [vmem:[%s1 + $0x17d0] sm:$0xff]
  %v788 = vld [vmem:[%s1 + $0x17d8] sm:$0xff]
  %v789 = vld [vmem:[%s1 + $0x17e0] sm:$0xff]
  %v790 = vld [vmem:[%s1 + $0x17e8] sm:$0xff]
  %v791 = vld [vmem:[%s1 + $0x17f0] sm:$0xff]
  %v792 = vld [vmem:[%s1 + $0x17f8] sm:$0xff]
  %v793 = vld [vmem:[%s1 + $0x1800] sm:$0xff]
  %v794 = vld [vmem:[%s1 + $0x1808] sm:$0xff]
  %v795 = vld [vmem:[%s1 + $0x1810] sm:$0xff]
  %v796 = vld [vmem:[%s1 + $0x1818] sm:$0xff]
  %v797 = vld [vmem:[%s1 + $0x1820] sm:$0xff]
  %v798 = vld [vmem:[%s1 + $0x1828] sm:$0xff]
  %v799 = vld [vmem:[%s1 + $0x1830] sm:$0xff]
  %v800 = vld [vmem:[%s1 + $0x1838] sm:$0xff]
  %v801 = vld [vmem:[%s1 + $0x1840] sm:$0xff]
  %v802 = vld [vmem:[%s1 + $0x1848] sm:$0xff]
  %v803 = vld [vmem:[%s1 + $0x1850] sm:$0xff]
  %v804 = vld [vmem:[%s1 + $0x1858] sm:$0xff]
  %v805 = vld [vmem:[%s1 + $0x1860] sm:$0xff]
  %v806 = vld [vmem:[%s1 + $0x1868] sm:$0xff]
  %v807 = vld [vmem:[%s1 + $0x1870] sm:$0xff]
  %v808 = vld [vmem:[%s1 + $0x1878] sm:$0xff]
  %v809 = vld [vmem:[%s1 + $0x1880] sm:$0xff]
  %v810 = vld [vmem:[%s1 + $0x1888] sm:$0xff]
  %v811 = vld [vmem:[%s1 + $0x1890] sm:$0xff]
  %v812 = vld [vmem:[%s1 + $0x1898] sm:$0xff]
  %v813 = vld [vmem:[%s1 + $0x18a0] sm:$0xff]
  %v814 = vld [vmem:[%s1 + $0x18a8] sm:$0xff]
  %v815 = vld [vmem:[%s1 + $0x18b0] sm:$0xff]
  %v816 = vld [vmem:[%s1 + $0x18b8] sm:$0xff]
  %v817 = vld [vmem:[%s1 + $0x18c0] sm:$0xff]
  %v818 = vld [vmem:[%s1 + $0x18c8] sm:$0xff]
  %v819 = vld [vmem:[%s1 + $0x18d0] sm:$0xff]
  %v820 = vld [vmem:[%s1 + $0x18d8] sm:$0xff]
  %v821 = vld [vmem:[%s1 + $0x18e0] sm:$0xff]
  %v822 = vld [vmem:[%s1 + $0x18e8] sm:$0xff]
  %v823 = vld [vmem:[%s1 + $0x18f0] sm:$0xff]
  %v824 = vld [vmem:[%s1 + $0x18f8] sm:$0xff]
  %v825 = vld [vmem:[%s1 + $0x1900] sm:$0xff]
  %v826 = vld [vmem:[%s1 + $0x1908] sm:$0xff]
  %v827 = vld [vmem:[%s1 + $0x1910] sm:$0xff]
  %v828 = vld [vmem:[%s1 + $0x1918] sm:$0xff]
  %v829 = vld [vmem:[%s1 + $0x1920] sm:$0xff]
  %v830 = vld [vmem:[%s1 + $0x1928] sm:$0xff]
  %v831 = vld [vmem:[%s1 + $0x1930] sm:$0xff]
  %v832 = vld [vmem:[%s1 + $0x1938] sm:$0xff]
  %v833 = vld [vmem:[%s1 + $0x1940] sm:$0xff]
  %v834 = vld [vmem:[%s1 + $0x1948] sm:$0xff]
  %v835 = vld [vmem:[%s1 + $0x1950] sm:$0xff]
  %v836 = vld [vmem:[%s1 + $0x1958] sm:$0xff]
  %v837 = vld [vmem:[%s1 + $0x1960] sm:$0xff]
  %v838 = vld [vmem:[%s1 + $0x1968] sm:$0xff]
  %v839 = vld [vmem:[%s1 + $0x1970] sm:$0xff]
  %v840 = vld [vmem:[%s1 + $0x1978] sm:$0xff]
  %v841 = vld [vmem:[%s1 + $0x1980] sm:$0xff]
  %v842 = vld [vmem:[%s1 + $0x1988] sm:$0xff]
  %v843 = vld [vmem:[%s1 + $0x1990] sm:$0xff]
  %v844 = vld [vmem:[%s1 + $0x1998] sm:$0xff]
  %v845 = vld [vmem:[%s1 + $0x19a0] sm:$0xff]
  %v846 = vld [vmem:[%s1 + $0x19a8] sm:$0xff]
  %v847 = vld [vmem:[%s1 + $0x19b0] sm:$0xff]
  %v848 = vld [vmem:[%s1 + $0x19b8] sm:$0xff]
  %v849 = vld [vmem:[%s1 + $0x19c0] sm:$0xff]
  %v850 = vld [vmem:[%s1 + $0x19c8] sm:$0xff]
  %v851 = vld [vmem:[%s1 + $0x19d0] sm:$0xff]
  %v852 = vld [vmem:[%s1 + $0x19d8] sm:$0xff]
  %v853 = vld [vmem:[%s1 + $0x19e0] sm:$0xff]
  %v854 = vld [vmem:[%s1 + $0x19e8] sm:$0xff]
  %v855 = vld [vmem:[%s1 + $0x19f0] sm:$0xff]
  %v856 = vld [vmem:[%s1 + $0x19f8] sm:$0xff]
  %v857 = vld [vmem:[%s1 + $0x1a00] sm:$0xff]
  %v858 = vld [vmem:[%s1 + $0x1a08] sm:$0xff]
  %v859 = vld [vmem:[%s1 + $0x1a10] sm:$0xff]
  %v860 = vld [vmem:[%s1 + $0x1a18] sm:$0xff]
  %v861 = vld [vmem:[%s1 + $0x1a20] sm:$0xff]
  %v862 = vld [vmem:[%s1 + $0x1a28] sm:$0xff]
  %v863 = vld [vmem:[%s1 + $0x1a30] sm:$0xff]
  %v864 = vld [vmem:[%s1 + $0x1a38] sm:$0xff]
  %v865 = vld [vmem:[%s1 + $0x1a40] sm:$0xff]
  %v866 = vld [vmem:[%s1 + $0x1a48] sm:$0xff]
  %v867 = vld [vmem:[%s1 + $0x1a50] sm:$0xff]
  %v868 = vld [vmem:[%s1 + $0x1a58] sm:$0xff]
  %v869 = vld [vmem:[%s1 + $0x1a60] sm:$0xff]
  %v870 = vld [vmem:[%s1 + $0x1a68] sm:$0xff]
  %v871 = vld [vmem:[%s1 + $0x1a70] sm:$0xff]
  %v872 = vld [vmem:[%s1 + $0x1a78] sm:$0xff]
  %v873 = vld [vmem:[%s1 + $0x1a80] sm:$0xff]
  %v874 = vld [vmem:[%s1 + $0x1a88] sm:$0xff]
  %v875 = vld [vmem:[%s1 + $0x1a90] sm:$0xff]
  %v876 = vld [vmem:[%s1 + $0x1a98] sm:$0xff]
  %v877 = vld [vmem:[%s1 + $0x1aa0] sm:$0xff]
  %v878 = vld [vmem:[%s1 + $0x1aa8] sm:$0xff]
  %v879 = vld [vmem:[%s1 + $0x1ab0] sm:$0xff]
  %v880 = vld [vmem:[%s1 + $0x1ab8] sm:$0xff]
  %v881 = vld [vmem:[%s1 + $0x1ac0] sm:$0xff]
  %v882 = vld [vmem:[%s1 + $0x1ac8] sm:$0xff]
  %v883 = vld [vmem:[%s1 + $0x1ad0] sm:$0xff]
  %v884 = vld [vmem:[%s1 + $0x1ad8] sm:$0xff]
  %v885 = vld [vmem:[%s1 + $0x1ae0] sm:$0xff]
  %v886 = vld [vmem:[%s1 + $0x1ae8] sm:$0xff]
  %v887 = vld [vmem:[%s1 + $0x1af0] sm:$0xff]
  %v888 = vld [vmem:[%s1 + $0x1af8] sm:$0xff]
  %v889 = vld [vmem:[%s1 + $0x1b00] sm:$0xff]
  %v890 = vld [vmem:[%s1 + $0x1b08] sm:$0xff]
  %v891 = vld [vmem:[%s1 + $0x1b10] sm:$0xff]
  %v892 = vld [vmem:[%s1 + $0x1b18] sm:$0xff]
  %v893 = vld [vmem:[%s1 + $0x1b20] sm:$0xff]
  %v894 = vld [vmem:[%s1 + $0x1b28] sm:$0xff]
  %v895 = vld [vmem:[%s1 + $0x1b30] sm:$0xff]
  %v896 = vld [vmem:[%s1 + $0x1b38] sm:$0xff]
  %v897 = vld [vmem:[%s1 + $0x1b40] sm:$0xff]
  %v898 = vld [vmem:[%s1 + $0x1b48] sm:$0xff]
  %v899 = vld [vmem:[%s1 + $0x1b50] sm:$0xff]
  %v900 = vld [vmem:[%s1 + $0x1b58] sm:$0xff]
  %v901 = vld [vmem:[%s1 + $0x1b60] sm:$0xff]
  %v902 = vld [vmem:[%s1 + $0x1b68] sm:$0xff]
  %v903 = vld [vmem:[%s1 + $0x1b70] sm:$0xff]
  %v904 = vld [vmem:[%s1 + $0x1b78] sm:$0xff]
  %v905 = vld [vmem:[%s1 + $0x1b80] sm:$0xff]
  %v906 = vld [vmem:[%s1 + $0x1b88] sm:$0xff]
  %v907 = vld [vmem:[%s1 + $0x1b90] sm:$0xff]
  %v908 = vld [vmem:[%s1 + $0x1b98] sm:$0xff]
  %v909 = vld [vmem:[%s1 + $0x1ba0] sm:$0xff]
  %v910 = vld [vmem:[%s1 + $0x1ba8] sm:$0xff]
  %v911 = vld [vmem:[%s1 + $0x1bb0] sm:$0xff]
  %v912 = vld [vmem:[%s1 + $0x1bb8] sm:$0xff]
  %v913 = vld [vmem:[%s1 + $0x1bc0] sm:$0xff]
  %v914 = vld [vmem:[%s1 + $0x1bc8] sm:$0xff]
  %v915 = vld [vmem:[%s1 + $0x1bd0] sm:$0xff]
  %v916 = vld [vmem:[%s1 + $0x1bd8] sm:$0xff]
  %v917 = vld [vmem:[%s1 + $0x1be0] sm:$0xff]
  %v918 = vld [vmem:[%s1 + $0x1be8] sm:$0xff]
  %v919 = vld [vmem:[%s1 + $0x1bf0] sm:$0xff]
  %v920 = vld [vmem:[%s1 + $0x1bf8] sm:$0xff]
  %v921 = vld [vmem:[%s1 + $0x1c00] sm:$0xff]
  %v922 = vld [vmem:[%s1 + $0x1c08] sm:$0xff]
  %v923 = vld [vmem:[%s1 + $0x1c10] sm:$0xff]
  %v924 = vld [vmem:[%s1 + $0x1c18] sm:$0xff]
  %v925 = vld [vmem:[%s1 + $0x1c20] sm:$0xff]
  %v926 = vld [vmem:[%s1 + $0x1c28] sm:$0xff]
  %v927 = vld [vmem:[%s1 + $0x1c30] sm:$0xff]
  %v928 = vld [vmem:[%s1 + $0x1c38] sm:$0xff]
  %v929 = vld [vmem:[%s1 + $0x1c40] sm:$0xff]
  %v930 = vld [vmem:[%s1 + $0x1c48] sm:$0xff]
  %v931 = vld [vmem:[%s1 + $0x1c50] sm:$0xff]
  %v932 = vld [vmem:[%s1 + $0x1c58] sm:$0xff]
  %v933 = vld [vmem:[%s1 + $0x1c60] sm:$0xff]
  %v934 = vld [vmem:[%s1 + $0x1c68] sm:$0xff]
  %v935 = vld [vmem:[%s1 + $0x1c70] sm:$0xff]
  %v936 = vld [vmem:[%s1 + $0x1c78] sm:$0xff]
  %v937 = vld [vmem:[%s1 + $0x1c80] sm:$0xff]
  %v938 = vld [vmem:[%s1 + $0x1c88] sm:$0xff]
  %v939 = vld [vmem:[%s1 + $0x1c90] sm:$0xff]
  %v940 = vld [vmem:[%s1 + $0x1c98] sm:$0xff]
  %v941 = vld [vmem:[%s1 + $0x1ca0] sm:$0xff]
  %v942 = vld [vmem:[%s1 + $0x1ca8] sm:$0xff]
  %v943 = vld [vmem:[%s1 + $0x1cb0] sm:$0xff]
  %v944 = vld [vmem:[%s1 + $0x1cb8] sm:$0xff]
  %v945 = vld [vmem:[%s1 + $0x1cc0] sm:$0xff]
  %v946 = vld [vmem:[%s1 + $0x1cc8] sm:$0xff]
  %v947 = vld [vmem:[%s1 + $0x1cd0] sm:$0xff]
  %v948 = vld [vmem:[%s1 + $0x1cd8] sm:$0xff]
  %v949 = vld [vmem:[%s1 + $0x1ce0] sm:$0xff]
  %v950 = vld [vmem:[%s1 + $0x1ce8] sm:$0xff]
  %v951 = vld [vmem:[%s1 + $0x1cf0] sm:$0xff]
  %v952 = vld [vmem:[%s1 + $0x1cf8] sm:$0xff]
  %v953 = vld [vmem:[%s1 + $0x1d00] sm:$0xff]
  %v954 = vld [vmem:[%s1 + $0x1d08] sm:$0xff]
  %v955 = vld [vmem:[%s1 + $0x1d10] sm:$0xff]
  %v956 = vld [vmem:[%s1 + $0x1d18] sm:$0xff]
  %v957 = vld [vmem:[%s1 + $0x1d20] sm:$0xff]
  %v958 = vld [vmem:[%s1 + $0x1d28] sm:$0xff]
  %v959 = vld [vmem:[%s1 + $0x1d30] sm:$0xff]
  %v960 = vld [vmem:[%s1 + $0x1d38] sm:$0xff]
  %v961 = vld [vmem:[%s1 + $0x1d40] sm:$0xff]
  %v962 = vld [vmem:[%s1 + $0x1d48] sm:$0xff]
  %v963 = vld [vmem:[%s1 + $0x1d50] sm:$0xff]
  %v964 = vld [vmem:[%s1 + $0x1d58] sm:$0xff]
  %v965 = vld [vmem:[%s1 + $0x1d60] sm:$0xff]
  %v966 = vld [vmem:[%s1 + $0x1d68] sm:$0xff]
  %v967 = vld [vmem:[%s1 + $0x1d70] sm:$0xff]
  %v968 = vld [vmem:[%s1 + $0x1d78] sm:$0xff]
  %v969 = vld [vmem:[%s1 + $0x1d80] sm:$0xff]
  %v970 = vld [vmem:[%s1 + $0x1d88] sm:$0xff]
  %v971 = vld [vmem:[%s1 + $0x1d90] sm:$0xff]
  %v972 = vld [vmem:[%s1 + $0x1d98] sm:$0xff]
  %v973 = vld [vmem:[%s1 + $0x1da0] sm:$0xff]
  %v974 = vld [vmem:[%s1 + $0x1da8] sm:$0xff]
  %v975 = vld [vmem:[%s1 + $0x1db0] sm:$0xff]
  %v976 = vld [vmem:[%s1 + $0x1db8] sm:$0xff]
  %v977 = vld [vmem:[%s1 + $0x1dc0] sm:$0xff]
  %v978 = vld [vmem:[%s1 + $0x1dc8] sm:$0xff]
  %v979 = vld [vmem:[%s1 + $0x1dd0] sm:$0xff]
  %v980 = vld [vmem:[%s1 + $0x1dd8] sm:$0xff]
  %v981 = vld [vmem:[%s1 + $0x1de0] sm:$0xff]
  %v982 = vld [vmem:[%s1 + $0x1de8] sm:$0xff]
  %v983 = vld [vmem:[%s1 + $0x1df0] sm:$0xff]
  %v984 = vld [vmem:[%s1 + $0x1df8] sm:$0xff]
  %v985 = vld [vmem:[%s1 + $0x1e00] sm:$0xff]
  %v986 = vld [vmem:[%s1 + $0x1e08] sm:$0xff]
  %v987 = vld [vmem:[%s1 + $0x1e10] sm:$0xff]
  %v988 = vld [vmem:[%s1 + $0x1e18] sm:$0xff]
  %v989 = vld [vmem:[%s1 + $0x1e20] sm:$0xff]
  %v990 = vld [vmem:[%s1 + $0x1e28] sm:$0xff]
  %v991 = vld [vmem:[%s1 + $0x1e30] sm:$0xff]
  %v992 = vld [vmem:[%s1 + $0x1e38] sm:$0xff]
  %v993 = vld [vmem:[%s1 + $0x1e40] sm:$0xff]
  %v994 = vld [vmem:[%s1 + $0x1e48] sm:$0xff]
  %v995 = vld [vmem:[%s1 + $0x1e50] sm:$0xff]
  %v996 = vld [vmem:[%s1 + $0x1e58] sm:$0xff]
  %v997 = vld [vmem:[%s1 + $0x1e60] sm:$0xff]
  %v998 = vld [vmem:[%s1 + $0x1e68] sm:$0xff]
  %v999 = vld [vmem:[%s1 + $0x1e70] sm:$0xff]
  %v1000 = vld [vmem:[%s1 + $0x1e78] sm:$0xff]
  %v1001 = vld [vmem:[%s1 + $0x1e80] sm:$0xff]
  %v1002 = vld [vmem:[%s1 + $0x1e88] sm:$0xff]
  %v1003 = vld [vmem:[%s1 + $0x1e90] sm:$0xff]
  %v1004 = vld [vmem:[%s1 + $0x1e98] sm:$0xff]
  %v1005 = vld [vmem:[%s1 + $0x1ea0] sm:$0xff]
  %v1006 = vld [vmem:[%s1 + $0x1ea8] sm:$0xff]
  %v1007 = vld [vmem:[%s1 + $0x1eb0] sm:$0xff]
  %v1008 = vld [vmem:[%s1 + $0x1eb8] sm:$0xff]
  %v1009 = vld [vmem:[%s1 + $0x1ec0] sm:$0xff]
  %v1010 = vld [vmem:[%s1 + $0x1ec8] sm:$0xff]
  %v1011 = vld [vmem:[%s1 + $0x1ed0] sm:$0xff]
  %v1012 = vld [vmem:[%s1 + $0x1ed8] sm:$0xff]
  %v1013 = vld [vmem:[%s1 + $0x1ee0] sm:$0xff]
  %v1014 = vld [vmem:[%s1 + $0x1ee8] sm:$0xff]
  %v1015 = vld [vmem:[%s1 + $0x1ef0] sm:$0xff]
  %v1016 = vld [vmem:[%s1 + $0x1ef8] sm:$0xff]
  %v1017 = vld [vmem:[%s1 + $0x1f00] sm:$0xff]
  %v1018 = vld [vmem:[%s1 + $0x1f08] sm:$0xff]
  %v1019 = vld [vmem:[%s1 + $0x1f10] sm:$0xff]
  %v1020 = vld [vmem:[%s1 + $0x1f18] sm:$0xff]
  %v1021 = vld [vmem:[%s1 + $0x1f20] sm:$0xff]
  %v1022 = vld [vmem:[%s1 + $0x1f28] sm:$0xff]
  %v1023 = vld [vmem:[%s1 + $0x1f30] sm:$0xff]
  %v1024 = vld [vmem:[%s1 + $0x1f38] sm:$0xff]
  %v1025 = vld [vmem:[%s1 + $0x1f40] sm:$0xff]
  %v1026 = vld [vmem:[%s1 + $0x1f48] sm:$0xff]
  %v1027 = vld [vmem:[%s1 + $0x1f50] sm:$0xff]
  %v1028 = vld [vmem:[%s1 + $0x1f58] sm:$0xff]
  %v1029 = vld [vmem:[%s1 + $0x1f60] sm:$0xff]
  %v1030 = vld [vmem:[%s1 + $0x1f68] sm:$0xff]
  %v1031 = vld [vmem:[%s1 + $0x1f70] sm:$0xff]
  %v1032 = vld [vmem:[%s1 + $0x1f78] sm:$0xff]
  %v1033 = vld [vmem:[%s1 + $0x1f80] sm:$0xff]
  %v1034 = vld [vmem:[%s1 + $0x1f88] sm:$0xff]
  %v1035 = vld [vmem:[%s1 + $0x1f90] sm:$0xff]
  %v1036 = vld [vmem:[%s1 + $0x1f98] sm:$0xff]
  %v1037 = vld [vmem:[%s1 + $0x1fa0] sm:$0xff]
  %v1038 = vld [vmem:[%s1 + $0x1fa8] sm:$0xff]
  %v1039 = vld [vmem:[%s1 + $0x1fb0] sm:$0xff]
  %v1040 = vld [vmem:[%s1 + $0x1fb8] sm:$0xff]
  %v1041 = vld [vmem:[%s1 + $0x1fc0] sm:$0xff]
  %v1042 = vld [vmem:[%s1 + $0x1fc8] sm:$0xff]
  %v1043 = vld [vmem:[%s1 + $0x1fd0] sm:$0xff]
  %v1044 = vld [vmem:[%s1 + $0x1fd8] sm:$0xff]
  %v1045 = vld [vmem:[%s1 + $0x1fe0] sm:$0xff]
  %v1046 = vld [vmem:[%s1 + $0x1fe8] sm:$0xff]
  %v1047 = vld [vmem:[%s1 + $0x1ff0] sm:$0xff]
  %v1048 = vld [vmem:[%s1 + $0x1ff8] sm:$0xff]
  %v1049 = vld [vmem:[%s1 + $0x2000] sm:$0xff]
  %v1050 = vld [vmem:[%s1 + $0x2008] sm:$0xff]
  %v1051 = vld [vmem:[%s1 + $0x2010] sm:$0xff]
  %v1052 = vld [vmem:[%s1 + $0x2018] sm:$0xff]
  %v1053 = vld [vmem:[%s1 + $0x2020] sm:$0xff]
  %v1054 = vld [vmem:[%s1 + $0x2028] sm:$0xff]
  %v1055 = vld [vmem:[%s1 + $0x2030] sm:$0xff]
  %v1056 = vld [vmem:[%s1 + $0x2038] sm:$0xff]
  %v1057 = vld [vmem:[%s1 + $0x2040] sm:$0xff]
  %v1058 = vld [vmem:[%s1 + $0x2048] sm:$0xff]
  %v1059 = vld [vmem:[%s1 + $0x2050] sm:$0xff]
  %v1060 = vld [vmem:[%s1 + $0x2058] sm:$0xff]
  %v1061 = vld [vmem:[%s1 + $0x2060] sm:$0xff]
  %v1062 = vld [vmem:[%s1 + $0x2068] sm:$0xff]
  %v1063 = vld [vmem:[%s1 + $0x2070] sm:$0xff]
  %v1064 = vld [vmem:[%s1 + $0x2078] sm:$0xff]
  %v1065 = vld [vmem:[%s1 + $0x2080] sm:$0xff]
  %v1066 = vld [vmem:[%s1 + $0x2088] sm:$0xff]
  %v1067 = vld [vmem:[%s1 + $0x2090] sm:$0xff]
  %v1068 = vld [vmem:[%s1 + $0x2098] sm:$0xff]
  %v1069 = vld [vmem:[%s1 + $0x20a0] sm:$0xff]
  %v1070 = vld [vmem:[%s1 + $0x20a8] sm:$0xff]
  %v1071 = vld [vmem:[%s1 + $0x20b0] sm:$0xff]
  %v1072 = vld [vmem:[%s1 + $0x20b8] sm:$0xff]
  %v1073 = vld [vmem:[%s1 + $0x20c0] sm:$0xff]
  %v1074 = vld [vmem:[%s1 + $0x20c8] sm:$0xff]
  %v1075 = vld [vmem:[%s1 + $0x20d0] sm:$0xff]
  %v1076 = vld [vmem:[%s1 + $0x20d8] sm:$0xff]
  %v1077 = vld [vmem:[%s1 + $0x20e0] sm:$0xff]
  %v1078 = vld [vmem:[%s1 + $0x20e8] sm:$0xff]
  %v1079 = vld [vmem:[%s1 + $0x20f0] sm:$0xff]
  %v1080 = vld [vmem:[%s1 + $0x20f8] sm:$0xff]
  %v1081 = vld [vmem:[%s1 + $0x2100] sm:$0xff]
  %v1082 = vld [vmem:[%s1 + $0x2108] sm:$0xff]
  %v1083 = vld [vmem:[%s1 + $0x2110] sm:$0xff]
  %v1084 = vld [vmem:[%s1 + $0x2118] sm:$0xff]
  %v1085 = vld [vmem:[%s1 + $0x2120] sm:$0xff]
  %v1086 = vld [vmem:[%s1 + $0x2128] sm:$0xff]
  %v1087 = vld [vmem:[%s1 + $0x2130] sm:$0xff]
  %v1088 = vld [vmem:[%s1 + $0x2138] sm:$0xff]
  %v1089 = vld [vmem:[%s1 + $0x2140] sm:$0xff]
  %v1090 = vld [vmem:[%s1 + $0x2148] sm:$0xff]
  %v1091 = vld [vmem:[%s1 + $0x2150] sm:$0xff]
  %v1092 = vld [vmem:[%s1 + $0x2158] sm:$0xff]
  %v1093 = vld [vmem:[%s1 + $0x2160] sm:$0xff]
  %v1094 = vld [vmem:[%s1 + $0x2168] sm:$0xff]
  %v1095 = vld [vmem:[%s1 + $0x2170] sm:$0xff]
  %v1096 = vld [vmem:[%s1 + $0x2178] sm:$0xff]
  %v1097 = vld [vmem:[%s1 + $0x2180] sm:$0xff]
  %v1098 = vld [vmem:[%s1 + $0x2188] sm:$0xff]
  %v1099 = vld [vmem:[%s1 + $0x2190] sm:$0xff]
  %v1100 = vld [vmem:[%s1 + $0x2198] sm:$0xff]
  %v1101 = vld [vmem:[%s1 + $0x21a0] sm:$0xff]
  %v1102 = vld [vmem:[%s1 + $0x21a8] sm:$0xff]
  %v1103 = vld [vmem:[%s1 + $0x21b0] sm:$0xff]
  %v1104 = vld [vmem:[%s1 + $0x21b8] sm:$0xff]
  %v1105 = vld [vmem:[%s1 + $0x21c0] sm:$0xff]
  %v1106 = vld [vmem:[%s1 + $0x21c8] sm:$0xff]
  %v1107 = vld [vmem:[%s1 + $0x21d0] sm:$0xff]
  %v1108 = vld [vmem:[%s1 + $0x21d8] sm:$0xff]
  %v1109 = vld [vmem:[%s1 + $0x21e0] sm:$0xff]
  %v1110 = vld [vmem:[%s1 + $0x21e8] sm:$0xff]
  %v1111 = vld [vmem:[%s1 + $0x21f0] sm:$0xff]
  %v1112 = vld [vmem:[%s1 + $0x21f8] sm:$0xff]
  %v1113 = vld [vmem:[%s1 + $0x2200] sm:$0xff]
  %v1114 = vld [vmem:[%s1 + $0x2208] sm:$0xff]
  %v1115 = vld [vmem:[%s1 + $0x2210] sm:$0xff]
  %v1116 = vld [vmem:[%s1 + $0x2218] sm:$0xff]
  %v1117 = vld [vmem:[%s1 + $0x2220] sm:$0xff]
  %v1118 = vld [vmem:[%s1 + $0x2228] sm:$0xff]
  %v1119 = vld [vmem:[%s1 + $0x2230] sm:$0xff]
  %v1120 = vld [vmem:[%s1 + $0x2238] sm:$0xff]
  %v1121 = vld [vmem:[%s1 + $0x2240] sm:$0xff]
  %v1122 = vld [vmem:[%s1 + $0x2248] sm:$0xff]
  %v1123 = vld [vmem:[%s1 + $0x2250] sm:$0xff]
  %v1124 = vld [vmem:[%s1 + $0x2258] sm:$0xff]
  %v1125 = vld [vmem:[%s1 + $0x2260] sm:$0xff]
  %v1126 = vld [vmem:[%s1 + $0x2268] sm:$0xff]
  %v1127 = vld [vmem:[%s1 + $0x2270] sm:$0xff]
  %v1128 = vld [vmem:[%s1 + $0x2278] sm:$0xff]
  %v1129 = vld [vmem:[%s1 + $0x2280] sm:$0xff]
  %v1130 = vld [vmem:[%s1 + $0x2288] sm:$0xff]
  %v1131 = vld [vmem:[%s1 + $0x2290] sm:$0xff]
  %v1132 = vld [vmem:[%s1 + $0x2298] sm:$0xff]
  %v1133 = vld [vmem:[%s1 + $0x22a0] sm:$0xff]
  %v1134 = vld [vmem:[%s1 + $0x22a8] sm:$0xff]
  %v1135 = vld [vmem:[%s1 + $0x22b0] sm:$0xff]
  %v1136 = vld [vmem:[%s1 + $0x22b8] sm:$0xff]
  %v1137 = vld [vmem:[%s1 + $0x22c0] sm:$0xff]
  %v1138 = vld [vmem:[%s1 + $0x22c8] sm:$0xff]
  %v1139 = vld [vmem:[%s1 + $0x22d0] sm:$0xff]
  %v1140 = vld [vmem:[%s1 + $0x22d8] sm:$0xff]
  %v1141 = vld [vmem:[%s1 + $0x22e0] sm:$0xff]
  %v1142 = vld [vmem:[%s1 + $0x22e8] sm:$0xff]
  %v1143 = vld [vmem:[%s1 + $0x22f0] sm:$0xff]
  %v1144 = vld [vmem:[%s1 + $0x22f8] sm:$0xff]
  %v1145 = vld [vmem:[%s1 + $0x2300] sm:$0xff]
  %v1146 = vld [vmem:[%s1 + $0x2308] sm:$0xff]
  %v1147 = vld [vmem:[%s1 + $0x2310] sm:$0xff]
  %v1148 = vld [vmem:[%s1 + $0x2318] sm:$0xff]
  %v1149 = vld [vmem:[%s1 + $0x2320] sm:$0xff]
  %v1150 = vld [vmem:[%s1 + $0x2328] sm:$0xff]
  %v1151 = vld [vmem:[%s1 + $0x2330] sm:$0xff]
  %v1152 = vld [vmem:[%s1 + $0x2338] sm:$0xff]
  %v1153 = vld [vmem:[%s1 + $0x2340] sm:$0xff]
  %v1154 = vld [vmem:[%s1 + $0x2348] sm:$0xff]
  %v1155 = vld [vmem:[%s1 + $0x2350] sm:$0xff]
  %v1156 = vld [vmem:[%s1 + $0x2358] sm:$0xff]
  %v1157 = vld [vmem:[%s1 + $0x2360] sm:$0xff]
  %v1158 = vld [vmem:[%s1 + $0x2368] sm:$0xff]
  %v1159 = vld [vmem:[%s1 + $0x2370] sm:$0xff]
  %v1160 = vld [vmem:[%s1 + $0x2378] sm:$0xff]
  %v1161 = vld [vmem:[%s1 + $0x2380] sm:$0xff]
  %v1162 = vld [vmem:[%s1 + $0x2388] sm:$0xff]
  %v1163 = vld [vmem:[%s1 + $0x2390] sm:$0xff]
  %v1164 = vld [vmem:[%s1 + $0x2398] sm:$0xff]
  %v1165 = vld [vmem:[%s1 + $0x23a0] sm:$0xff]
  %v1166 = vld [vmem:[%s1 + $0x23a8] sm:$0xff]
  %v1167 = vld [vmem:[%s1 + $0x23b0] sm:$0xff]
  %v1168 = vld [vmem:[%s1 + $0x23b8] sm:$0xff]
  %v1169 = vld [vmem:[%s1 + $0x23c0] sm:$0xff]
  %v1170 = vld [vmem:[%s1 + $0x23c8] sm:$0xff]
  %v1171 = vld [vmem:[%s1 + $0x23d0] sm:$0xff]
  %v1172 = vld [vmem:[%s1 + $0x23d8] sm:$0xff]
  %v1173 = vld [vmem:[%s1 + $0x23e0] sm:$0xff]
  %v1174 = vld [vmem:[%s1 + $0x23e8] sm:$0xff]
  %v1175 = vld [vmem:[%s1 + $0x23f0] sm:$0xff]
  %v1176 = vld [vmem:[%s1 + $0x23f8] sm:$0xff]
  %v1177 = vld [vmem:[%s2] sm:$0xf]
  %v1179 = vlaneseq
  %v1180 = vshrl.u32 %v1179, 7
  %v1181 = vsub.s32 0, %v1180
  %v1182 = vrot.slane %v1177, %v1181
  %v1183 = vlaneseq
  %v1184 = vshrl.u32 %v1183, 7
  %v1185 = vsub.s32 1, %v1184
  %v1186 = vrot.slane %v1177, %v1185
  %v1187 = vlaneseq
  %v1188 = vshrl.u32 %v1187, 7
  %v1189 = vsub.s32 2, %v1188
  %v1190 = vrot.slane %v1177, %v1189
  %v1191 = vlaneseq
  %v1192 = vshrl.u32 %v1191, 7
  %v1193 = vsub.s32 3, %v1192
  %v1194 = vrot.slane %v1177, %v1193
  %v1204 = vcombine.high %v20, %v20
  %v1206 = vunpack.c.l.s4 1983009808
  %v1207 = vunpack.c.0.s8 %v1206
  %v1208 = vlaneseq
  %v1209 = vshrl.u32 %v1208, 7
  %v1210 = vsub.s32 %v1207, %v1209
  %v1211 = vrot.slane %v20, %v1210
  %v1213 = vunpack.c.l.s4 1983009808
  %v1214 = vunpack.c.0.s8 %v1213
  %v1215 = vlaneseq
  %v1216 = vshrl.u32 %v1215, 7
  %v1217 = vsub.s32 %v1214, %v1216
  %v1218 = vrot.slane %v1204, %v1217
  %v1219 = vcombine.high %v1211, %v1211
  %v1220 = vcombine.high %v1218, %v1218
  %v1221 = vcombine.high %v21, %v21
  %v1223 = vunpack.c.l.s4 1983009808
  %v1224 = vunpack.c.0.s8 %v1223
  %v1225 = vlaneseq
  %v1226 = vshrl.u32 %v1225, 7
  %v1227 = vsub.s32 %v1224, %v1226
  %v1228 = vrot.slane %v21, %v1227
  %v1230 = vunpack.c.l.s4 1983009808
  %v1231 = vunpack.c.0.s8 %v1230
  %v1232 = vlaneseq
  %v1233 = vshrl.u32 %v1232, 7
  %v1234 = vsub.s32 %v1231, %v1233
  %v1235 = vrot.slane %v1221, %v1234
  %v1236 = vcombine.high %v1228, %v1228
  %v1237 = vcombine.high %v1235, %v1235
  %v1238 = vcombine.high %v22, %v22
  %v1240 = vunpack.c.l.s4 1983009808
  %v1241 = vunpack.c.0.s8 %v1240
  %v1242 = vlaneseq
  %v1243 = vshrl.u32 %v1242, 7
  %v1244 = vsub.s32 %v1241, %v1243
  %v1245 = vrot.slane %v22, %v1244
  %v1247 = vunpack.c.l.s4 1983009808
  %v1248 = vunpack.c.0.s8 %v1247
  %v1249 = vlaneseq
  %v1250 = vshrl.u32 %v1249, 7
  %v1251 = vsub.s32 %v1248, %v1250
  %v1252 = vrot.slane %v1238, %v1251
  %v1253 = vcombine.high %v1245, %v1245
  %v1254 = vcombine.high %v1252, %v1252
  %v1255 = vcombine.high %v23, %v23
  %v1257 = vunpack.c.l.s4 1983009808
  %v1258 = vunpack.c.0.s8 %v1257
  %v1259 = vlaneseq
  %v1260 = vshrl.u32 %v1259, 7
  %v1261 = vsub.s32 %v1258, %v1260
  %v1262 = vrot.slane %v23, %v1261
  %v1264 = vunpack.c.l.s4 1983009808
  %v1265 = vunpack.c.0.s8 %v1264
  %v1266 = vlaneseq
  %v1267 = vshrl.u32 %v1266, 7
  %v1268 = vsub.s32 %v1265, %v1267
  %v1269 = vrot.slane %v1255, %v1268
  %v1270 = vcombine.high %v1262, %v1262
  %v1271 = vcombine.high %v1269, %v1269
  %v1273 = vunpack.c.l.s4 1983009808
  %v1274 = vunpack.c.0.s8 %v1273
  %v1275 = vlaneseq
  %v1276 = vshrl.u32 %v1275, 7
  %v1277 = vsub.s32 %v1274, %v1276
  %v1278 = vrot.slane %v24, %v1277
  %v1279 = vcombine.high %v1278, %v1278
  %1298 = vmatprep.subr.mxu0 %v26
  %1299 = vmatpush1.msra.mxu0 %v25
  %1300 = vmatprep.subr.mxu0 %v30
  %1301 = vmatpush1.msra.mxu0 %v29
  %1302 = vmatprep.subr.mxu0 %v34
  %1303 = vmatpush1.msra.mxu0 %v33
  %1304 = vmatprep.subr.mxu0 %v38
  %1305 = vmatpush1.msra.mxu0 %v37
  %1306 = vmatprep.subr.mxu0 %v42
  %1307 = vmatpush1.msra.mxu0 %v41
  %1308 = vmatprep.subr.mxu0 %v46
  %1309 = vmatpush1.msra.mxu0 %v45
  %1310 = vmatprep.subr.mxu0 %v50
  %1311 = vmatpush1.msra.mxu0 %v49
  %1312 = vmatprep.subr.mxu0 %v54
  %1313 = vmatpush1.msra.mxu0 %v53
  %1314 = vmatprep.subr.mxu0 %v58
  %1315 = vmatpush1.msra.mxu0 %v57
  %1316 = vmatprep.subr.mxu0 %v62
  %1317 = vmatpush1.msra.mxu0 %v61
  %1318 = vmatprep.subr.mxu0 %v66
  %1319 = vmatpush1.msra.mxu0 %v65
  %1320 = vmatprep.subr.mxu0 %v70
  %1321 = vmatpush1.msra.mxu0 %v69
  %1322 = vmatprep.subr.mxu0 %v74
  %1323 = vmatpush1.msra.mxu0 %v73
  %1324 = vmatprep.subr.mxu0 %v78
  %1325 = vmatpush1.msra.mxu0 %v77
  %1326 = vmatprep.subr.mxu0 %v82
  %1327 = vmatpush1.msra.mxu0 %v81
  %1328 = vmatprep.subr.mxu0 %v86
  %1329 = vmatpush1.msra.mxu0 %v85
  %1330 = vmatprep.subr.mxu0 %v90
  %1331 = vmatpush1.msra.mxu0 %v89
  %1332 = vmatprep.subr.mxu0 %v94
  %1333 = vmatpush1.msra.mxu0 %v93
  %1334 = vmatprep.subr.mxu0 %v98
  %1335 = vmatpush1.msra.mxu0 %v97
  %1336 = vmatprep.subr.mxu0 %v102
  %1337 = vmatpush1.msra.mxu0 %v101
  %1338 = vmatprep.subr.mxu0 %v106
  %1339 = vmatpush1.msra.mxu0 %v105
  %1340 = vmatprep.subr.mxu0 %v110
  %1341 = vmatpush1.msra.mxu0 %v109
  %1342 = vmatprep.subr.mxu0 %v114
  %1343 = vmatpush1.msra.mxu0 %v113
  %1344 = vmatprep.subr.mxu0 %v118
  %1345 = vmatpush1.msra.mxu0 %v117
  %1346 = vmatprep.subr.mxu0 %v122
  %1347 = vmatpush1.msra.mxu0 %v121
  %1348 = vmatprep.subr.mxu0 %v126
  %1349 = vmatpush1.msra.mxu0 %v125
  %1350 = vmatprep.subr.mxu0 %v130
  %1351 = vmatpush1.msra.mxu0 %v129
  %1352 = vmatprep.subr.mxu0 %v134
  %1353 = vmatpush1.msra.mxu0 %v133
  %1354 = vmatprep.subr.mxu0 %v138
  %1355 = vmatpush1.msra.mxu0 %v137
  %1356 = vmatprep.subr.mxu0 %v142
  %1357 = vmatpush1.msra.mxu0 %v141
  %1358 = vmatprep.subr.mxu0 %v146
  %1359 = vmatpush1.msra.mxu0 %v145
  %1360 = vmatprep.subr.mxu0 %v150
  %1361 = vmatpush1.msra.mxu0 %v149
  %1362 = vmatprep.mubr.f32.mxu0 %v1219
  %1363 = vmatmul.mubr.f32.gmra.mrb[0].mxu0 %v1211
  %v1364 = vpop.f32.mrb[0].mxu0
  %v1365 = vadd.f32 %v1182, %v1364
  %v1366 = vpop.f32.mrb[0].mxu0
  %v1367 = vadd.f32 %v1186, %v1366
  %1368 = vdwg.mxu0
  %1369 = vmatprep.subr.mxu0 %v154
  %1370 = vmatpush1.msra.mxu0 %v153
  %1371 = vmatprep.subr.mxu0 %v158
  %1372 = vmatpush1.msra.mxu0 %v157
  %1373 = vmatprep.subr.mxu0 %v162
  %1374 = vmatpush1.msra.mxu0 %v161
  %1375 = vmatprep.subr.mxu0 %v166
  %1376 = vmatpush1.msra.mxu0 %v165
  %1377 = vmatprep.subr.mxu0 %v170
  %1378 = vmatpush1.msra.mxu0 %v169
  %1379 = vmatprep.subr.mxu0 %v174
  %1380 = vmatpush1.msra.mxu0 %v173
  %1381 = vmatprep.subr.mxu0 %v178
  %1382 = vmatpush1.msra.mxu0 %v177
  %1383 = vmatprep.subr.mxu0 %v182
  %1384 = vmatpush1.msra.mxu0 %v181
  %1385 = vmatprep.subr.mxu0 %v186
  %1386 = vmatpush1.msra.mxu0 %v185
  %1387 = vmatprep.subr.mxu0 %v190
  %1388 = vmatpush1.msra.mxu0 %v189
  %1389 = vmatprep.subr.mxu0 %v194
  %1390 = vmatpush1.msra.mxu0 %v193
  %1391 = vmatprep.subr.mxu0 %v198
  %1392 = vmatpush1.msra.mxu0 %v197
  %1393 = vmatprep.subr.mxu0 %v202
  %1394 = vmatpush1.msra.mxu0 %v201
  %1395 = vmatprep.subr.mxu0 %v206
  %1396 = vmatpush1.msra.mxu0 %v205
  %1397 = vmatprep.subr.mxu0 %v210
  %1398 = vmatpush1.msra.mxu0 %v209
  %1399 = vmatprep.subr.mxu0 %v214
  %1400 = vmatpush1.msra.mxu0 %v213
  %1401 = vmatprep.subr.mxu0 %v218
  %1402 = vmatpush1.msra.mxu0 %v217
  %1403 = vmatprep.subr.mxu0 %v222
  %1404 = vmatpush1.msra.mxu0 %v221
  %1405 = vmatprep.subr.mxu0 %v226
  %1406 = vmatpush1.msra.mxu0 %v225
  %1407 = vmatprep.subr.mxu0 %v230
  %1408 = vmatpush1.msra.mxu0 %v229
  %1409 = vmatprep.subr.mxu0 %v234
  %1410 = vmatpush1.msra.mxu0 %v233
  %1411 = vmatprep.subr.mxu0 %v238
  %1412 = vmatpush1.msra.mxu0 %v237
  %1413 = vmatprep.subr.mxu0 %v242
  %1414 = vmatpush1.msra.mxu0 %v241
  %1415 = vmatprep.subr.mxu0 %v246
  %1416 = vmatpush1.msra.mxu0 %v245
  %1417 = vmatprep.subr.mxu0 %v250
  %1418 = vmatpush1.msra.mxu0 %v249
  %1419 = vmatprep.subr.mxu0 %v254
  %1420 = vmatpush1.msra.mxu0 %v253
  %1421 = vmatprep.subr.mxu0 %v258
  %1422 = vmatpush1.msra.mxu0 %v257
  %1423 = vmatprep.subr.mxu0 %v262
  %1424 = vmatpush1.msra.mxu0 %v261
  %1425 = vmatprep.subr.mxu0 %v266
  %1426 = vmatpush1.msra.mxu0 %v265
  %1427 = vmatprep.subr.mxu0 %v270
  %1428 = vmatpush1.msra.mxu0 %v269
  %1429 = vmatprep.subr.mxu0 %v274
  %1430 = vmatpush1.msra.mxu0 %v273
  %1431 = vmatprep.subr.mxu0 %v278
  %1432 = vmatpush1.msra.mxu0 %v277
  %1433 = vmatprep.mubr.f32.mxu0 %v1220
  %1434 = vmatmul.mubr.f32.gmra.mrb[0].mxu0 %v1218
  %v1435 = vpop.f32.mrb[0].mxu0
  %v1436 = vadd.f32 %v1365, %v1435
  %v1437 = vpop.f32.mrb[0].mxu0
  %v1438 = vadd.f32 %v1367, %v1437
  %1439 = vdwg.mxu0
  %1440 = vmatprep.subr.mxu0 %v282
  %1441 = vmatpush1.msra.mxu0 %v281
  %1442 = vmatprep.subr.mxu0 %v286
  %1443 = vmatpush1.msra.mxu0 %v285
  %1444 = vmatprep.subr.mxu0 %v290
  %1445 = vmatpush1.msra.mxu0 %v289
  %1446 = vmatprep.subr.mxu0 %v294
  %1447 = vmatpush1.msra.mxu0 %v293
  %1448 = vmatprep.subr.mxu0 %v298
  %1449 = vmatpush1.msra.mxu0 %v297
  %1450 = vmatprep.subr.mxu0 %v302
  %1451 = vmatpush1.msra.mxu0 %v301
  %1452 = vmatprep.subr.mxu0 %v306
  %1453 = vmatpush1.msra.mxu0 %v305
  %1454 = vmatprep.subr.mxu0 %v310
  %1455 = vmatpush1.msra.mxu0 %v309
  %1456 = vmatprep.subr.mxu0 %v314
  %1457 = vmatpush1.msra.mxu0 %v313
  %1458 = vmatprep.subr.mxu0 %v318
  %1459 = vmatpush1.msra.mxu0 %v317
  %1460 = vmatprep.subr.mxu0 %v322
  %1461 = vmatpush1.msra.mxu0 %v321
  %1462 = vmatprep.subr.mxu0 %v326
  %1463 = vmatpush1.msra.mxu0 %v325
  %1464 = vmatprep.subr.mxu0 %v330
  %1465 = vmatpush1.msra.mxu0 %v329
  %1466 = vmatprep.subr.mxu0 %v334
  %1467 = vmatpush1.msra.mxu0 %v333
  %1468 = vmatprep.subr.mxu0 %v338
  %1469 = vmatpush1.msra.mxu0 %v337
  %1470 = vmatprep.subr.mxu0 %v342
  %1471 = vmatpush1.msra.mxu0 %v341
  %1472 = vmatprep.subr.mxu0 %v346
  %1473 = vmatpush1.msra.mxu0 %v345
  %1474 = vmatprep.subr.mxu0 %v350
  %1475 = vmatpush1.msra.mxu0 %v349
  %1476 = vmatprep.subr.mxu0 %v354
  %1477 = vmatpush1.msra.mxu0 %v353
  %1478 = vmatprep.subr.mxu0 %v358
  %1479 = vmatpush1.msra.mxu0 %v357
  %1480 = vmatprep.subr.mxu0 %v362
  %1481 = vmatpush1.msra.mxu0 %v361
  %1482 = vmatprep.subr.mxu0 %v366
  %1483 = vmatpush1.msra.mxu0 %v365
  %1484 = vmatprep.subr.mxu0 %v370
  %1485 = vmatpush1.msra.mxu0 %v369
  %1486 = vmatprep.subr.mxu0 %v374
  %1487 = vmatpush1.msra.mxu0 %v373
  %1488 = vmatprep.subr.mxu0 %v378
  %1489 = vmatpush1.msra.mxu0 %v377
  %1490 = vmatprep.subr.mxu0 %v382
  %1491 = vmatpush1.msra.mxu0 %v381
  %1492 = vmatprep.subr.mxu0 %v386
  %1493 = vmatpush1.msra.mxu0 %v385
  %1494 = vmatprep.subr.mxu0 %v390
  %1495 = vmatpush1.msra.mxu0 %v389
  %1496 = vmatprep.subr.mxu0 %v394
  %1497 = vmatpush1.msra.mxu0 %v393
  %1498 = vmatprep.subr.mxu0 %v398
  %1499 = vmatpush1.msra.mxu0 %v397
  %1500 = vmatprep.subr.mxu0 %v402
  %1501 = vmatpush1.msra.mxu0 %v401
  %1502 = vmatprep.subr.mxu0 %v406
  %1503 = vmatpush1.msra.mxu0 %v405
  %1504 = vmatprep.mubr.f32.mxu0 %v1236
  %1505 = vmatmul.mubr.f32.gmra.mrb[0].mxu0 %v1228
  %v1506 = vpop.f32.mrb[0].mxu0
  %v1507 = vadd.f32 %v1436, %v1506
  %v1508 = vpop.f32.mrb[0].mxu0
  %v1509 = vadd.f32 %v1438, %v1508
  %1510 = vdwg.mxu0
  %1511 = vmatprep.subr.mxu0 %v410
  %1512 = vmatpush1.msra.mxu0 %v409
  %1513 = vmatprep.subr.mxu0 %v414
  %1514 = vmatpush1.msra.mxu0 %v413
  %1515 = vmatprep.subr.mxu0 %v418
  %1516 = vmatpush1.msra.mxu0 %v417
  %1517 = vmatprep.subr.mxu0 %v422
  %1518 = vmatpush1.msra.mxu0 %v421
  %1519 = vmatprep.subr.mxu0 %v426
  %1520 = vmatpush1.msra.mxu0 %v425
  %1521 = vmatprep.subr.mxu0 %v430
  %1522 = vmatpush1.msra.mxu0 %v429
  %1523 = vmatprep.subr.mxu0 %v434
  %1524 = vmatpush1.msra.mxu0 %v433
  %1525 = vmatprep.subr.mxu0 %v438
  %1526 = vmatpush1.msra.mxu0 %v437
  %1527 = vmatprep.subr.mxu0 %v442
  %1528 = vmatpush1.msra.mxu0 %v441
  %1529 = vmatprep.subr.mxu0 %v446
  %1530 = vmatpush1.msra.mxu0 %v445
  %1531 = vmatprep.subr.mxu0 %v450
  %1532 = vmatpush1.msra.mxu0 %v449
  %1533 = vmatprep.subr.mxu0 %v454
  %1534 = vmatpush1.msra.mxu0 %v453
  %1535 = vmatprep.subr.mxu0 %v458
  %1536 = vmatpush1.msra.mxu0 %v457
  %1537 = vmatprep.subr.mxu0 %v462
  %1538 = vmatpush1.msra.mxu0 %v461
  %1539 = vmatprep.subr.mxu0 %v466
  %1540 = vmatpush1.msra.mxu0 %v465
  %1541 = vmatprep.subr.mxu0 %v470
  %1542 = vmatpush1.msra.mxu0 %v469
  %1543 = vmatprep.subr.mxu0 %v474
  %1544 = vmatpush1.msra.mxu0 %v473
  %1545 = vmatprep.subr.mxu0 %v478
  %1546 = vmatpush1.msra.mxu0 %v477
  %1547 = vmatprep.subr.mxu0 %v482
  %1548 = vmatpush1.msra.mxu0 %v481
  %1549 = vmatprep.subr.mxu0 %v486
  %1550 = vmatpush1.msra.mxu0 %v485
  %1551 = vmatprep.subr.mxu0 %v490
  %1552 = vmatpush1.msra.mxu0 %v489
  %1553 = vmatprep.subr.mxu0 %v494
  %1554 = vmatpush1.msra.mxu0 %v493
  %1555 = vmatprep.subr.mxu0 %v498
  %1556 = vmatpush1.msra.mxu0 %v497
  %1557 = vmatprep.subr.mxu0 %v502
  %1558 = vmatpush1.msra.mxu0 %v501
  %1559 = vmatprep.subr.mxu0 %v506
  %1560 = vmatpush1.msra.mxu0 %v505
  %1561 = vmatprep.subr.mxu0 %v510
  %1562 = vmatpush1.msra.mxu0 %v509
  %1563 = vmatprep.subr.mxu0 %v514
  %1564 = vmatpush1.msra.mxu0 %v513
  %1565 = vmatprep.subr.mxu0 %v518
  %1566 = vmatpush1.msra.mxu0 %v517
  %1567 = vmatprep.subr.mxu0 %v522
  %1568 = vmatpush1.msra.mxu0 %v521
  %1569 = vmatprep.subr.mxu0 %v526
  %1570 = vmatpush1.msra.mxu0 %v525
  %1571 = vmatprep.subr.mxu0 %v530
  %1572 = vmatpush1.msra.mxu0 %v529
  %1573 = vmatprep.subr.mxu0 %v534
  %1574 = vmatpush1.msra.mxu0 %v533
  %1575 = vmatprep.mubr.f32.mxu0 %v1237
  %1576 = vmatmul.mubr.f32.gmra.mrb[0].mxu0 %v1235
  %v1577 = vpop.f32.mrb[0].mxu0
  %v1578 = vadd.f32 %v1507, %v1577
  %v1579 = vpop.f32.mrb[0].mxu0
  %v1580 = vadd.f32 %v1509, %v1579
  %1581 = vdwg.mxu0
  %1582 = vmatprep.subr.mxu0 %v538
  %1583 = vmatpush1.msra.mxu0 %v537
  %1584 = vmatprep.subr.mxu0 %v542
  %1585 = vmatpush1.msra.mxu0 %v541
  %1586 = vmatprep.subr.mxu0 %v546
  %1587 = vmatpush1.msra.mxu0 %v545
  %1588 = vmatprep.subr.mxu0 %v550
  %1589 = vmatpush1.msra.mxu0 %v549
  %1590 = vmatprep.subr.mxu0 %v554
  %1591 = vmatpush1.msra.mxu0 %v553
  %1592 = vmatprep.subr.mxu0 %v558
  %1593 = vmatpush1.msra.mxu0 %v557
  %1594 = vmatprep.subr.mxu0 %v562
  %1595 = vmatpush1.msra.mxu0 %v561
  %1596 = vmatprep.subr.mxu0 %v566
  %1597 = vmatpush1.msra.mxu0 %v565
  %1598 = vmatprep.subr.mxu0 %v570
  %1599 = vmatpush1.msra.mxu0 %v569
  %1600 = vmatprep.subr.mxu0 %v574
  %1601 = vmatpush1.msra.mxu0 %v573
  %1602 = vmatprep.subr.mxu0 %v578
  %1603 = vmatpush1.msra.mxu0 %v577
  %1604 = vmatprep.subr.mxu0 %v582
  %1605 = vmatpush1.msra.mxu0 %v581
  %1606 = vmatprep.subr.mxu0 %v586
  %1607 = vmatpush1.msra.mxu0 %v585
  %1608 = vmatprep.subr.mxu0 %v590
  %1609 = vmatpush1.msra.mxu0 %v589
  %1610 = vmatprep.subr.mxu0 %v594
  %1611 = vmatpush1.msra.mxu0 %v593
  %1612 = vmatprep.subr.mxu0 %v598
  %1613 = vmatpush1.msra.mxu0 %v597
  %1614 = vmatprep.subr.mxu0 %v602
  %1615 = vmatpush1.msra.mxu0 %v601
  %1616 = vmatprep.subr.mxu0 %v606
  %1617 = vmatpush1.msra.mxu0 %v605
  %1618 = vmatprep.subr.mxu0 %v610
  %1619 = vmatpush1.msra.mxu0 %v609
  %1620 = vmatprep.subr.mxu0 %v614
  %1621 = vmatpush1.msra.mxu0 %v613
  %1622 = vmatprep.subr.mxu0 %v618
  %1623 = vmatpush1.msra.mxu0 %v617
  %1624 = vmatprep.subr.mxu0 %v622
  %1625 = vmatpush1.msra.mxu0 %v621
  %1626 = vmatprep.subr.mxu0 %v626
  %1627 = vmatpush1.msra.mxu0 %v625
  %1628 = vmatprep.subr.mxu0 %v630
  %1629 = vmatpush1.msra.mxu0 %v629
  %1630 = vmatprep.subr.mxu0 %v634
  %1631 = vmatpush1.msra.mxu0 %v633
  %1632 = vmatprep.subr.mxu0 %v638
  %1633 = vmatpush1.msra.mxu0 %v637
  %1634 = vmatprep.subr.mxu0 %v642
  %1635 = vmatpush1.msra.mxu0 %v641
  %1636 = vmatprep.subr.mxu0 %v646
  %1637 = vmatpush1.msra.mxu0 %v645
  %1638 = vmatprep.subr.mxu0 %v650
  %1639 = vmatpush1.msra.mxu0 %v649
  %1640 = vmatprep.subr.mxu0 %v654
  %1641 = vmatpush1.msra.mxu0 %v653
  %1642 = vmatprep.subr.mxu0 %v658
  %1643 = vmatpush1.msra.mxu0 %v657
  %1644 = vmatprep.subr.mxu0 %v662
  %1645 = vmatpush1.msra.mxu0 %v661
  %1646 = vmatprep.mubr.f32.mxu0 %v1253
  %1647 = vmatmul.mubr.f32.gmra.mrb[0].mxu0 %v1245
  %v1648 = vpop.f32.mrb[0].mxu0
  %v1649 = vadd.f32 %v1578, %v1648
  %v1650 = vpop.f32.mrb[0].mxu0
  %v1651 = vadd.f32 %v1580, %v1650
  %1652 = vdwg.mxu0
  %1653 = vmatprep.subr.mxu0 %v666
  %1654 = vmatpush1.msra.mxu0 %v665
  %1655 = vmatprep.subr.mxu0 %v670
  %1656 = vmatpush1.msra.mxu0 %v669
  %1657 = vmatprep.subr.mxu0 %v674
  %1658 = vmatpush1.msra.mxu0 %v673
  %1659 = vmatprep.subr.mxu0 %v678
  %1660 = vmatpush1.msra.mxu0 %v677
  %1661 = vmatprep.subr.mxu0 %v682
  %1662 = vmatpush1.msra.mxu0 %v681
  %1663 = vmatprep.subr.mxu0 %v686
  %1664 = vmatpush1.msra.mxu0 %v685
  %1665 = vmatprep.subr.mxu0 %v690
  %1666 = vmatpush1.msra.mxu0 %v689
  %1667 = vmatprep.subr.mxu0 %v694
  %1668 = vmatpush1.msra.mxu0 %v693
  %1669 = vmatprep.subr.mxu0 %v698
  %1670 = vmatpush1.msra.mxu0 %v697
  %1671 = vmatprep.subr.mxu0 %v702
  %1672 = vmatpush1.msra.mxu0 %v701
  %1673 = vmatprep.subr.mxu0 %v706
  %1674 = vmatpush1.msra.mxu0 %v705
  %1675 = vmatprep.subr.mxu0 %v710
  %1676 = vmatpush1.msra.mxu0 %v709
  %1677 = vmatprep.subr.mxu0 %v714
  %1678 = vmatpush1.msra.mxu0 %v713
  %1679 = vmatprep.subr.mxu0 %v718
  %1680 = vmatpush1.msra.mxu0 %v717
  %1681 = vmatprep.subr.mxu0 %v722
  %1682 = vmatpush1.msra.mxu0 %v721
  %1683 = vmatprep.subr.mxu0 %v726
  %1684 = vmatpush1.msra.mxu0 %v725
  %1685 = vmatprep.subr.mxu0 %v730
  %1686 = vmatpush1.msra.mxu0 %v729
  %1687 = vmatprep.subr.mxu0 %v734
  %1688 = vmatpush1.msra.mxu0 %v733
  %1689 = vmatprep.subr.mxu0 %v738
  %1690 = vmatpush1.msra.mxu0 %v737
  %1691 = vmatprep.subr.mxu0 %v742
  %1692 = vmatpush1.msra.mxu0 %v741
  %1693 = vmatprep.subr.mxu0 %v746
  %1694 = vmatpush1.msra.mxu0 %v745
  %1695 = vmatprep.subr.mxu0 %v750
  %1696 = vmatpush1.msra.mxu0 %v749
  %1697 = vmatprep.subr.mxu0 %v754
  %1698 = vmatpush1.msra.mxu0 %v753
  %1699 = vmatprep.subr.mxu0 %v758
  %1700 = vmatpush1.msra.mxu0 %v757
  %1701 = vmatprep.subr.mxu0 %v762
  %1702 = vmatpush1.msra.mxu0 %v761
  %1703 = vmatprep.subr.mxu0 %v766
  %1704 = vmatpush1.msra.mxu0 %v765
  %1705 = vmatprep.subr.mxu0 %v770
  %1706 = vmatpush1.msra.mxu0 %v769
  %1707 = vmatprep.subr.mxu0 %v774
  %1708 = vmatpush1.msra.mxu0 %v773
  %1709 = vmatprep.subr.mxu0 %v778
  %1710 = vmatpush1.msra.mxu0 %v777
  %1711 = vmatprep.subr.mxu0 %v782
  %1712 = vmatpush1.msra.mxu0 %v781
  %1713 = vmatprep.subr.mxu0 %v786
  %1714 = vmatpush1.msra.mxu0 %v785
  %1715 = vmatprep.subr.mxu0 %v790
  %1716 = vmatpush1.msra.mxu0 %v789
  %1717 = vmatprep.mubr.f32.mxu0 %v1254
  %1718 = vmatmul.mubr.f32.gmra.mrb[0].mxu0 %v1252
  %v1719 = vpop.f32.mrb[0].mxu0
  %v1720 = vadd.f32 %v1649, %v1719
  %v1721 = vpop.f32.mrb[0].mxu0
  %v1722 = vadd.f32 %v1651, %v1721
  %1723 = vdwg.mxu0
  %1724 = vmatprep.subr.mxu0 %v794
  %1725 = vmatpush1.msra.mxu0 %v793
  %1726 = vmatprep.subr.mxu0 %v798
  %1727 = vmatpush1.msra.mxu0 %v797
  %1728 = vmatprep.subr.mxu0 %v802
  %1729 = vmatpush1.msra.mxu0 %v801
  %1730 = vmatprep.subr.mxu0 %v806
  %1731 = vmatpush1.msra.mxu0 %v805
  %1732 = vmatprep.subr.mxu0 %v810
  %1733 = vmatpush1.msra.mxu0 %v809
  %1734 = vmatprep.subr.mxu0 %v814
  %1735 = vmatpush1.msra.mxu0 %v813
  %1736 = vmatprep.subr.mxu0 %v818
  %1737 = vmatpush1.msra.mxu0 %v817
  %1738 = vmatprep.subr.mxu0 %v822
  %1739 = vmatpush1.msra.mxu0 %v821
  %1740 = vmatprep.subr.mxu0 %v826
  %1741 = vmatpush1.msra.mxu0 %v825
  %1742 = vmatprep.subr.mxu0 %v830
  %1743 = vmatpush1.msra.mxu0 %v829
  %1744 = vmatprep.subr.mxu0 %v834
  %1745 = vmatpush1.msra.mxu0 %v833
  %1746 = vmatprep.subr.mxu0 %v838
  %1747 = vmatpush1.msra.mxu0 %v837
  %1748 = vmatprep.subr.mxu0 %v842
  %1749 = vmatpush1.msra.mxu0 %v841
  %1750 = vmatprep.subr.mxu0 %v846
  %1751 = vmatpush1.msra.mxu0 %v845
  %1752 = vmatprep.subr.mxu0 %v850
  %1753 = vmatpush1.msra.mxu0 %v849
  %1754 = vmatprep.subr.mxu0 %v854
  %1755 = vmatpush1.msra.mxu0 %v853
  %1756 = vmatprep.subr.mxu0 %v858
  %1757 = vmatpush1.msra.mxu0 %v857
  %1758 = vmatprep.subr.mxu0 %v862
  %1759 = vmatpush1.msra.mxu0 %v861
  %1760 = vmatprep.subr.mxu0 %v866
  %1761 = vmatpush1.msra.mxu0 %v865
  %1762 = vmatprep.subr.mxu0 %v870
  %1763 = vmatpush1.msra.mxu0 %v869
  %1764 = vmatprep.subr.mxu0 %v874
  %1765 = vmatpush1.msra.mxu0 %v873
  %1766 = vmatprep.subr.mxu0 %v878
  %1767 = vmatpush1.msra.mxu0 %v877
  %1768 = vmatprep.subr.mxu0 %v882
  %1769 = vmatpush1.msra.mxu0 %v881
  %1770 = vmatprep.subr.mxu0 %v886
  %1771 = vmatpush1.msra.mxu0 %v885
  %1772 = vmatprep.subr.mxu0 %v890
  %1773 = vmatpush1.msra.mxu0 %v889
  %1774 = vmatprep.subr.mxu0 %v894
  %1775 = vmatpush1.msra.mxu0 %v893
  %1776 = vmatprep.subr.mxu0 %v898
  %1777 = vmatpush1.msra.mxu0 %v897
  %1778 = vmatprep.subr.mxu0 %v902
  %1779 = vmatpush1.msra.mxu0 %v901
  %1780 = vmatprep.subr.mxu0 %v906
  %1781 = vmatpush1.msra.mxu0 %v905
  %1782 = vmatprep.subr.mxu0 %v910
  %1783 = vmatpush1.msra.mxu0 %v909
  %1784 = vmatprep.subr.mxu0 %v914
  %1785 = vmatpush1.msra.mxu0 %v913
  %1786 = vmatprep.subr.mxu0 %v918
  %1787 = vmatpush1.msra.mxu0 %v917
  %1788 = vmatprep.mubr.f32.mxu0 %v1270
  %1789 = vmatmul.mubr.f32.gmra.mrb[0].mxu0 %v1262
  %v1790 = vpop.f32.mrb[0].mxu0
  %v1791 = vadd.f32 %v1720, %v1790
  %v1792 = vpop.f32.mrb[0].mxu0
  %v1793 = vadd.f32 %v1722, %v1792
  %1794 = vdwg.mxu0
  %1795 = vmatprep.subr.mxu0 %v922
  %1796 = vmatpush1.msra.mxu0 %v921
  %1797 = vmatprep.subr.mxu0 %v926
  %1798 = vmatpush1.msra.mxu0 %v925
  %1799 = vmatprep.subr.mxu0 %v930
  %1800 = vmatpush1.msra.mxu0 %v929
  %1801 = vmatprep.subr.mxu0 %v934
  %1802 = vmatpush1.msra.mxu0 %v933
  %1803 = vmatprep.subr.mxu0 %v938
  %1804 = vmatpush1.msra.mxu0 %v937
  %1805 = vmatprep.subr.mxu0 %v942
  %1806 = vmatpush1.msra.mxu0 %v941
  %1807 = vmatprep.subr.mxu0 %v946
  %1808 = vmatpush1.msra.mxu0 %v945
  %1809 = vmatprep.subr.mxu0 %v950
  %1810 = vmatpush1.msra.mxu0 %v949
  %1811 = vmatprep.subr.mxu0 %v954
  %1812 = vmatpush1.msra.mxu0 %v953
  %1813 = vmatprep.subr.mxu0 %v958
  %1814 = vmatpush1.msra.mxu0 %v957
  %1815 = vmatprep.subr.mxu0 %v962
  %1816 = vmatpush1.msra.mxu0 %v961
  %1817 = vmatprep.subr.mxu0 %v966
  %1818 = vmatpush1.msra.mxu0 %v965
  %1819 = vmatprep.subr.mxu0 %v970
  %1820 = vmatpush1.msra.mxu0 %v969
  %1821 = vmatprep.subr.mxu0 %v974
  %1822 = vmatpush1.msra.mxu0 %v973
  %1823 = vmatprep.subr.mxu0 %v978
  %1824 = vmatpush1.msra.mxu0 %v977
  %1825 = vmatprep.subr.mxu0 %v982
  %1826 = vmatpush1.msra.mxu0 %v981
  %1827 = vmatprep.subr.mxu0 %v986
  %1828 = vmatpush1.msra.mxu0 %v985
  %1829 = vmatprep.subr.mxu0 %v990
  %1830 = vmatpush1.msra.mxu0 %v989
  %1831 = vmatprep.subr.mxu0 %v994
  %1832 = vmatpush1.msra.mxu0 %v993
  %1833 = vmatprep.subr.mxu0 %v998
  %1834 = vmatpush1.msra.mxu0 %v997
  %1835 = vmatprep.subr.mxu0 %v1002
  %1836 = vmatpush1.msra.mxu0 %v1001
  %1837 = vmatprep.subr.mxu0 %v1006
  %1838 = vmatpush1.msra.mxu0 %v1005
  %1839 = vmatprep.subr.mxu0 %v1010
  %1840 = vmatpush1.msra.mxu0 %v1009
  %1841 = vmatprep.subr.mxu0 %v1014
  %1842 = vmatpush1.msra.mxu0 %v1013
  %1843 = vmatprep.subr.mxu0 %v1018
  %1844 = vmatpush1.msra.mxu0 %v1017
  %1845 = vmatprep.subr.mxu0 %v1022
  %1846 = vmatpush1.msra.mxu0 %v1021
  %1847 = vmatprep.subr.mxu0 %v1026
  %1848 = vmatpush1.msra.mxu0 %v1025
  %1849 = vmatprep.subr.mxu0 %v1030
  %1850 = vmatpush1.msra.mxu0 %v1029
  %1851 = vmatprep.subr.mxu0 %v1034
  %1852 = vmatpush1.msra.mxu0 %v1033
  %1853 = vmatprep.subr.mxu0 %v1038
  %1854 = vmatpush1.msra.mxu0 %v1037
  %1855 = vmatprep.subr.mxu0 %v1042
  %1856 = vmatpush1.msra.mxu0 %v1041
  %1857 = vmatprep.subr.mxu0 %v1046
  %1858 = vmatpush1.msra.mxu0 %v1045
  %1859 = vmatprep.mubr.f32.mxu0 %v1271
  %1860 = vmatmul.mubr.f32.gmra.mrb[0].mxu0 %v1269
  %v1861 = vpop.f32.mrb[0].mxu0
  %v1862 = vadd.f32 %v1791, %v1861
  %v1863 = vpop.f32.mrb[0].mxu0
  %v1864 = vadd.f32 %v1793, %v1863
  %1865 = vdwg.mxu0
  %1866 = vmatprep.subr.mxu0 %v1050
  %1867 = vmatpush1.msra.mxu0 %v1049
  %1868 = vmatprep.subr.mxu0 %v1054
  %1869 = vmatpush1.msra.mxu0 %v1053
  %1870 = vmatprep.subr.mxu0 %v1058
  %1871 = vmatpush1.msra.mxu0 %v1057
  %1872 = vmatprep.subr.mxu0 %v1062
  %1873 = vmatpush1.msra.mxu0 %v1061
  %1874 = vmatprep.subr.mxu0 %v1066
  %1875 = vmatpush1.msra.mxu0 %v1065
  %1876 = vmatprep.subr.mxu0 %v1070
  %1877 = vmatpush1.msra.mxu0 %v1069
  %1878 = vmatprep.subr.mxu0 %v1074
  %1879 = vmatpush1.msra.mxu0 %v1073
  %1880 = vmatprep.subr.mxu0 %v1078
  %1881 = vmatpush1.msra.mxu0 %v1077
  %1882 = vmatprep.subr.mxu0 %v1082
  %1883 = vmatpush1.msra.mxu0 %v1081
  %1884 = vmatprep.subr.mxu0 %v1086
  %1885 = vmatpush1.msra.mxu0 %v1085
  %1886 = vmatprep.subr.mxu0 %v1090
  %1887 = vmatpush1.msra.mxu0 %v1089
  %1888 = vmatprep.subr.mxu0 %v1094
  %1889 = vmatpush1.msra.mxu0 %v1093
  %1890 = vmatprep.subr.mxu0 %v1098
  %1891 = vmatpush1.msra.mxu0 %v1097
  %1892 = vmatprep.subr.mxu0 %v1102
  %1893 = vmatpush1.msra.mxu0 %v1101
  %1894 = vmatprep.subr.mxu0 %v1106
  %1895 = vmatpush1.msra.mxu0 %v1105
  %1896 = vmatprep.subr.mxu0 %v1110
  %1897 = vmatpush1.msra.mxu0 %v1109
  %1898 = vmatprep.subr.mxu0 %v1114
  %1899 = vmatpush1.msra.mxu0 %v1113
  %1900 = vmatprep.subr.mxu0 %v1118
  %1901 = vmatpush1.msra.mxu0 %v1117
  %1902 = vmatprep.subr.mxu0 %v1122
  %1903 = vmatpush1.msra.mxu0 %v1121
  %1904 = vmatprep.subr.mxu0 %v1126
  %1905 = vmatpush1.msra.mxu0 %v1125
  %1906 = vmatprep.subr.mxu0 %v1130
  %1907 = vmatpush1.msra.mxu0 %v1129
  %1908 = vmatprep.subr.mxu0 %v1134
  %1909 = vmatpush1.msra.mxu0 %v1133
  %1910 = vmatprep.subr.mxu0 %v1138
  %1911 = vmatpush1.msra.mxu0 %v1137
  %1912 = vmatprep.subr.mxu0 %v1142
  %1913 = vmatpush1.msra.mxu0 %v1141
  %1914 = vmatprep.subr.mxu0 %v1146
  %1915 = vmatpush1.msra.mxu0 %v1145
  %1916 = vmatprep.subr.mxu0 %v1150
  %1917 = vmatpush1.msra.mxu0 %v1149
  %1918 = vmatprep.subr.mxu0 %v1154
  %1919 = vmatpush1.msra.mxu0 %v1153
  %1920 = vmatprep.subr.mxu0 %v1158
  %1921 = vmatpush1.msra.mxu0 %v1157
  %1922 = vmatprep.subr.mxu0 %v1162
  %1923 = vmatpush1.msra.mxu0 %v1161
  %1924 = vmatprep.subr.mxu0 %v1166
  %1925 = vmatpush1.msra.mxu0 %v1165
  %1926 = vmatprep.subr.mxu0 %v1170
  %1927 = vmatpush1.msra.mxu0 %v1169
  %1928 = vmatprep.subr.mxu0 %v1174
  %1929 = vmatpush1.msra.mxu0 %v1173
  %1930 = vmatprep.mubr.f32.mxu0 %v1279
  %1931 = vmatmul.mubr.f32.gmra.mrb[0].mxu0 %v1278
  %v1932 = vpop.f32.mrb[0].mxu0
  %v1933 = vadd.f32 %v1862, %v1932
  %v1934 = vpop.f32.mrb[0].mxu0
  %v1935 = vadd.f32 %v1864, %v1934
  %1936 = vdwg.mxu0
  %1937 = vmatprep.subr.mxu0 %v28
  %1938 = vmatpush1.msra.mxu0 %v27
  %1939 = vmatprep.subr.mxu0 %v32
  %1940 = vmatpush1.msra.mxu0 %v31
  %1941 = vmatprep.subr.mxu0 %v36
  %1942 = vmatpush1.msra.mxu0 %v35
  %1943 = vmatprep.subr.mxu0 %v40
  %1944 = vmatpush1.msra.mxu0 %v39
  %1945 = vmatprep.subr.mxu0 %v44
  %1946 = vmatpush1.msra.mxu0 %v43
  %1947 = vmatprep.subr.mxu0 %v48
  %1948 = vmatpush1.msra.mxu0 %v47
  %1949 = vmatprep.subr.mxu0 %v52
  %1950 = vmatpush1.msra.mxu0 %v51
  %1951 = vmatprep.subr.mxu0 %v56
  %1952 = vmatpush1.msra.mxu0 %v55
  %1953 = vmatprep.subr.mxu0 %v60
  %1954 = vmatpush1.msra.mxu0 %v59
  %1955 = vmatprep.subr.mxu0 %v64
  %1956 = vmatpush1.msra.mxu0 %v63
  %1957 = vmatprep.subr.mxu0 %v68
  %1958 = vmatpush1.msra.mxu0 %v67
  %1959 = vmatprep.subr.mxu0 %v72
  %1960 = vmatpush1.msra.mxu0 %v71
  %1961 = vmatprep.subr.mxu0 %v76
  %1962 = vmatpush1.msra.mxu0 %v75
  %1963 = vmatprep.subr.mxu0 %v80
  %1964 = vmatpush1.msra.mxu0 %v79
  %1965 = vmatprep.subr.mxu0 %v84
  %1966 = vmatpush1.msra.mxu0 %v83
  %1967 = vmatprep.subr.mxu0 %v88
  %1968 = vmatpush1.msra.mxu0 %v87
  %1969 = vmatprep.subr.mxu0 %v92
  %1970 = vmatpush1.msra.mxu0 %v91
  %1971 = vmatprep.subr.mxu0 %v96
  %1972 = vmatpush1.msra.mxu0 %v95
  %1973 = vmatprep.subr.mxu0 %v100
  %1974 = vmatpush1.msra.mxu0 %v99
  %1975 = vmatprep.subr.mxu0 %v104
  %1976 = vmatpush1.msra.mxu0 %v103
  %1977 = vmatprep.subr.mxu0 %v108
  %1978 = vmatpush1.msra.mxu0 %v107
  %1979 = vmatprep.subr.mxu0 %v112
  %1980 = vmatpush1.msra.mxu0 %v111
  %1981 = vmatprep.subr.mxu0 %v116
  %1982 = vmatpush1.msra.mxu0 %v115
  %1983 = vmatprep.subr.mxu0 %v120
  %1984 = vmatpush1.msra.mxu0 %v119
  %1985 = vmatprep.subr.mxu0 %v124
  %1986 = vmatpush1.msra.mxu0 %v123
  %1987 = vmatprep.subr.mxu0 %v128
  %1988 = vmatpush1.msra.mxu0 %v127
  %1989 = vmatprep.subr.mxu0 %v132
  %1990 = vmatpush1.msra.mxu0 %v131
  %1991 = vmatprep.subr.mxu0 %v136
  %1992 = vmatpush1.msra.mxu0 %v135
  %1993 = vmatprep.subr.mxu0 %v140
  %1994 = vmatpush1.msra.mxu0 %v139
  %1995 = vmatprep.subr.mxu0 %v144
  %1996 = vmatpush1.msra.mxu0 %v143
  %1997 = vmatprep.subr.mxu0 %v148
  %1998 = vmatpush1.msra.mxu0 %v147
  %1999 = vmatprep.subr.mxu0 %v152
  %2000 = vmatpush1.msra.mxu0 %v151
  %2001 = vmatprep.mubr.f32.mxu0 %v1219
  %2002 = vmatmul.mubr.f32.gmra.mrb[0].mxu0 %v1211
  %v2003 = vpop.f32.mrb[0].mxu0
  %v2004 = vadd.f32 %v1190, %v2003
  %v2005 = vpop.f32.mrb[0].mxu0
  %v2006 = vadd.f32 %v1194, %v2005
  %2007 = vdwg.mxu0
  %2008 = vmatprep.subr.mxu0 %v156
  %2009 = vmatpush1.msra.mxu0 %v155
  %2010 = vmatprep.subr.mxu0 %v160
  %2011 = vmatpush1.msra.mxu0 %v159
  %2012 = vmatprep.subr.mxu0 %v164
  %2013 = vmatpush1.msra.mxu0 %v163
  %2014 = vmatprep.subr.mxu0 %v168
  %2015 = vmatpush1.msra.mxu0 %v167
  %2016 = vmatprep.subr.mxu0 %v172
  %2017 = vmatpush1.msra.mxu0 %v171
  %2018 = vmatprep.subr.mxu0 %v176
  %2019 = vmatpush1.msra.mxu0 %v175
  %2020 = vmatprep.subr.mxu0 %v180
  %2021 = vmatpush1.msra.mxu0 %v179
  %2022 = vmatprep.subr.mxu0 %v184
  %2023 = vmatpush1.msra.mxu0 %v183
  %2024 = vmatprep.subr.mxu0 %v188
  %2025 = vmatpush1.msra.mxu0 %v187
  %2026 = vmatprep.subr.mxu0 %v192
  %2027 = vmatpush1.msra.mxu0 %v191
  %2028 = vmatprep.subr.mxu0 %v196
  %2029 = vmatpush1.msra.mxu0 %v195
  %2030 = vmatprep.subr.mxu0 %v200
  %2031 = vmatpush1.msra.mxu0 %v199
  %2032 = vmatprep.subr.mxu0 %v204
  %2033 = vmatpush1.msra.mxu0 %v203
  %2034 = vmatprep.subr.mxu0 %v208
  %2035 = vmatpush1.msra.mxu0 %v207
  %2036 = vmatprep.subr.mxu0 %v212
  %2037 = vmatpush1.msra.mxu0 %v211
  %2038 = vmatprep.subr.mxu0 %v216
  %2039 = vmatpush1.msra.mxu0 %v215
  %2040 = vmatprep.subr.mxu0 %v220
  %2041 = vmatpush1.msra.mxu0 %v219
  %2042 = vmatprep.subr.mxu0 %v224
  %2043 = vmatpush1.msra.mxu0 %v223
  %2044 = vmatprep.subr.mxu0 %v228
  %2045 = vmatpush1.msra.mxu0 %v227
  %2046 = vmatprep.subr.mxu0 %v232
  %2047 = vmatpush1.msra.mxu0 %v231
  %2048 = vmatprep.subr.mxu0 %v236
  %2049 = vmatpush1.msra.mxu0 %v235
  %2050 = vmatprep.subr.mxu0 %v240
  %2051 = vmatpush1.msra.mxu0 %v239
  %2052 = vmatprep.subr.mxu0 %v244
  %2053 = vmatpush1.msra.mxu0 %v243
  %2054 = vmatprep.subr.mxu0 %v248
  %2055 = vmatpush1.msra.mxu0 %v247
  %2056 = vmatprep.subr.mxu0 %v252
  %2057 = vmatpush1.msra.mxu0 %v251
  %2058 = vmatprep.subr.mxu0 %v256
  %2059 = vmatpush1.msra.mxu0 %v255
  %2060 = vmatprep.subr.mxu0 %v260
  %2061 = vmatpush1.msra.mxu0 %v259
  %2062 = vmatprep.subr.mxu0 %v264
  %2063 = vmatpush1.msra.mxu0 %v263
  %2064 = vmatprep.subr.mxu0 %v268
  %2065 = vmatpush1.msra.mxu0 %v267
  %2066 = vmatprep.subr.mxu0 %v272
  %2067 = vmatpush1.msra.mxu0 %v271
  %2068 = vmatprep.subr.mxu0 %v276
  %2069 = vmatpush1.msra.mxu0 %v275
  %2070 = vmatprep.subr.mxu0 %v280
  %2071 = vmatpush1.msra.mxu0 %v279
  %2072 = vmatprep.mubr.f32.mxu0 %v1220
  %2073 = vmatmul.mubr.f32.gmra.mrb[0].mxu0 %v1218
  %v2074 = vpop.f32.mrb[0].mxu0
  %v2075 = vadd.f32 %v2004, %v2074
  %v2076 = vpop.f32.mrb[0].mxu0
  %v2077 = vadd.f32 %v2006, %v2076
  %2078 = vdwg.mxu0
  %2079 = vmatprep.subr.mxu0 %v284
  %2080 = vmatpush1.msra.mxu0 %v283
  %2081 = vmatprep.subr.mxu0 %v288
  %2082 = vmatpush1.msra.mxu0 %v287
  %2083 = vmatprep.subr.mxu0 %v292
  %2084 = vmatpush1.msra.mxu0 %v291
  %2085 = vmatprep.subr.mxu0 %v296
  %2086 = vmatpush1.msra.mxu0 %v295
  %2087 = vmatprep.subr.mxu0 %v300
  %2088 = vmatpush1.msra.mxu0 %v299
  %2089 = vmatprep.subr.mxu0 %v304
  %2090 = vmatpush1.msra.mxu0 %v303
  %2091 = vmatprep.subr.mxu0 %v308
  %2092 = vmatpush1.msra.mxu0 %v307
  %2093 = vmatprep.subr.mxu0 %v312
  %2094 = vmatpush1.msra.mxu0 %v311
  %2095 = vmatprep.subr.mxu0 %v316
  %2096 = vmatpush1.msra.mxu0 %v315
  %2097 = vmatprep.subr.mxu0 %v320
  %2098 = vmatpush1.msra.mxu0 %v319
  %2099 = vmatprep.subr.mxu0 %v324
  %2100 = vmatpush1.msra.mxu0 %v323
  %2101 = vmatprep.subr.mxu0 %v328
  %2102 = vmatpush1.msra.mxu0 %v327
  %2103 = vmatprep.subr.mxu0 %v332
  %2104 = vmatpush1.msra.mxu0 %v331
  %2105 = vmatprep.subr.mxu0 %v336
  %2106 = vmatpush1.msra.mxu0 %v335
  %2107 = vmatprep.subr.mxu0 %v340
  %2108 = vmatpush1.msra.mxu0 %v339
  %2109 = vmatprep.subr.mxu0 %v344
  %2110 = vmatpush1.msra.mxu0 %v343
  %2111 = vmatprep.subr.mxu0 %v348
  %2112 = vmatpush1.msra.mxu0 %v347
  %2113 = vmatprep.subr.mxu0 %v352
  %2114 = vmatpush1.msra.mxu0 %v351
  %2115 = vmatprep.subr.mxu0 %v356
  %2116 = vmatpush1.msra.mxu0 %v355
  %2117 = vmatprep.subr.mxu0 %v360
  %2118 = vmatpush1.msra.mxu0 %v359
  %2119 = vmatprep.subr.mxu0 %v364
  %2120 = vmatpush1.msra.mxu0 %v363
  %2121 = vmatprep.subr.mxu0 %v368
  %2122 = vmatpush1.msra.mxu0 %v367
  %2123 = vmatprep.subr.mxu0 %v372
  %2124 = vmatpush1.msra.mxu0 %v371
  %2125 = vmatprep.subr.mxu0 %v376
  %2126 = vmatpush1.msra.mxu0 %v375
  %2127 = vmatprep.subr.mxu0 %v380
  %2128 = vmatpush1.msra.mxu0 %v379
  %2129 = vmatprep.subr.mxu0 %v384
  %2130 = vmatpush1.msra.mxu0 %v383
  %2131 = vmatprep.subr.mxu0 %v388
  %2132 = vmatpush1.msra.mxu0 %v387
  %2133 = vmatprep.subr.mxu0 %v392
  %2134 = vmatpush1.msra.mxu0 %v391
  %2135 = vmatprep.subr.mxu0 %v396
  %2136 = vmatpush1.msra.mxu0 %v395
  %2137 = vmatprep.subr.mxu0 %v400
  %2138 = vmatpush1.msra.mxu0 %v399
  %2139 = vmatprep.subr.mxu0 %v404
  %2140 = vmatpush1.msra.mxu0 %v403
  %2141 = vmatprep.subr.mxu0 %v408
  %2142 = vmatpush1.msra.mxu0 %v407
  %2143 = vmatprep.mubr.f32.mxu0 %v1236
  %2144 = vmatmul.mubr.f32.gmra.mrb[0].mxu0 %v1228
  %v2145 = vpop.f32.mrb[0].mxu0
  %v2146 = vadd.f32 %v2075, %v2145
  %v2147 = vpop.f32.mrb[0].mxu0
  %v2148 = vadd.f32 %v2077, %v2147
  %2149 = vdwg.mxu0
  %2150 = vmatprep.subr.mxu0 %v412
  %2151 = vmatpush1.msra.mxu0 %v411
  %2152 = vmatprep.subr.mxu0 %v416
  %2153 = vmatpush1.msra.mxu0 %v415
  %2154 = vmatprep.subr.mxu0 %v420
  %2155 = vmatpush1.msra.mxu0 %v419
  %2156 = vmatprep.subr.mxu0 %v424
  %2157 = vmatpush1.msra.mxu0 %v423
  %2158 = vmatprep.subr.mxu0 %v428
  %2159 = vmatpush1.msra.mxu0 %v427
  %2160 = vmatprep.subr.mxu0 %v432
  %2161 = vmatpush1.msra.mxu0 %v431
  %2162 = vmatprep.subr.mxu0 %v436
  %2163 = vmatpush1.msra.mxu0 %v435
  %2164 = vmatprep.subr.mxu0 %v440
  %2165 = vmatpush1.msra.mxu0 %v439
  %2166 = vmatprep.subr.mxu0 %v444
  %2167 = vmatpush1.msra.mxu0 %v443
  %2168 = vmatprep.subr.mxu0 %v448
  %2169 = vmatpush1.msra.mxu0 %v447
  %2170 = vmatprep.subr.mxu0 %v452
  %2171 = vmatpush1.msra.mxu0 %v451
  %2172 = vmatprep.subr.mxu0 %v456
  %2173 = vmatpush1.msra.mxu0 %v455
  %2174 = vmatprep.subr.mxu0 %v460
  %2175 = vmatpush1.msra.mxu0 %v459
  %2176 = vmatprep.subr.mxu0 %v464
  %2177 = vmatpush1.msra.mxu0 %v463
  %2178 = vmatprep.subr.mxu0 %v468
  %2179 = vmatpush1.msra.mxu0 %v467
  %2180 = vmatprep.subr.mxu0 %v472
  %2181 = vmatpush1.msra.mxu0 %v471
  %2182 = vmatprep.subr.mxu0 %v476
  %2183 = vmatpush1.msra.mxu0 %v475
  %2184 = vmatprep.subr.mxu0 %v480
  %2185 = vmatpush1.msra.mxu0 %v479
  %2186 = vmatprep.subr.mxu0 %v484
  %2187 = vmatpush1.msra.mxu0 %v483
  %2188 = vmatprep.subr.mxu0 %v488
  %2189 = vmatpush1.msra.mxu0 %v487
  %2190 = vmatprep.subr.mxu0 %v492
  %2191 = vmatpush1.msra.mxu0 %v491
  %2192 = vmatprep.subr.mxu0 %v496
  %2193 = vmatpush1.msra.mxu0 %v495
  %2194 = vmatprep.subr.mxu0 %v500
  %2195 = vmatpush1.msra.mxu0 %v499
  %2196 = vmatprep.subr.mxu0 %v504
  %2197 = vmatpush1.msra.mxu0 %v503
  %2198 = vmatprep.subr.mxu0 %v508
  %2199 = vmatpush1.msra.mxu0 %v507
  %2200 = vmatprep.subr.mxu0 %v512
  %2201 = vmatpush1.msra.mxu0 %v511
  %2202 = vmatprep.subr.mxu0 %v516
  %2203 = vmatpush1.msra.mxu0 %v515
  %2204 = vmatprep.subr.mxu0 %v520
  %2205 = vmatpush1.msra.mxu0 %v519
  %2206 = vmatprep.subr.mxu0 %v524
  %2207 = vmatpush1.msra.mxu0 %v523
  %2208 = vmatprep.subr.mxu0 %v528
  %2209 = vmatpush1.msra.mxu0 %v527
  %2210 = vmatprep.subr.mxu0 %v532
  %2211 = vmatpush1.msra.mxu0 %v531
  %2212 = vmatprep.subr.mxu0 %v536
  %2213 = vmatpush1.msra.mxu0 %v535
  %2214 = vmatprep.mubr.f32.mxu0 %v1237
  %2215 = vmatmul.mubr.f32.gmra.mrb[0].mxu0 %v1235
  %v2216 = vpop.f32.mrb[0].mxu0
  %v2217 = vadd.f32 %v2146, %v2216
  %v2218 = vpop.f32.mrb[0].mxu0
  %v2219 = vadd.f32 %v2148, %v2218
  %2220 = vdwg.mxu0
  %2221 = vmatprep.subr.mxu0 %v540
  %2222 = vmatpush1.msra.mxu0 %v539
  %2223 = vmatprep.subr.mxu0 %v544
  %2224 = vmatpush1.msra.mxu0 %v543
  %2225 = vmatprep.subr.mxu0 %v548
  %2226 = vmatpush1.msra.mxu0 %v547
  %2227 = vmatprep.subr.mxu0 %v552
  %2228 = vmatpush1.msra.mxu0 %v551
  %2229 = vmatprep.subr.mxu0 %v556
  %2230 = vmatpush1.msra.mxu0 %v555
  %2231 = vmatprep.subr.mxu0 %v560
  %2232 = vmatpush1.msra.mxu0 %v559
  %2233 = vmatprep.subr.mxu0 %v564
  %2234 = vmatpush1.msra.mxu0 %v563
  %2235 = vmatprep.subr.mxu0 %v568
  %2236 = vmatpush1.msra.mxu0 %v567
  %2237 = vmatprep.subr.mxu0 %v572
  %2238 = vmatpush1.msra.mxu0 %v571
  %2239 = vmatprep.subr.mxu0 %v576
  %2240 = vmatpush1.msra.mxu0 %v575
  %2241 = vmatprep.subr.mxu0 %v580
  %2242 = vmatpush1.msra.mxu0 %v579
  %2243 = vmatprep.subr.mxu0 %v584
  %2244 = vmatpush1.msra.mxu0 %v583
  %2245 = vmatprep.subr.mxu0 %v588
  %2246 = vmatpush1.msra.mxu0 %v587
  %2247 = vmatprep.subr.mxu0 %v592
  %2248 = vmatpush1.msra.mxu0 %v591
  %2249 = vmatprep.subr.mxu0 %v596
  %2250 = vmatpush1.msra.mxu0 %v595
  %2251 = vmatprep.subr.mxu0 %v600
  %2252 = vmatpush1.msra.mxu0 %v599
  %2253 = vmatprep.subr.mxu0 %v604
  %2254 = vmatpush1.msra.mxu0 %v603
  %2255 = vmatprep.subr.mxu0 %v608
  %2256 = vmatpush1.msra.mxu0 %v607
  %2257 = vmatprep.subr.mxu0 %v612
  %2258 = vmatpush1.msra.mxu0 %v611
  %2259 = vmatprep.subr.mxu0 %v616
  %2260 = vmatpush1.msra.mxu0 %v615
  %2261 = vmatprep.subr.mxu0 %v620
  %2262 = vmatpush1.msra.mxu0 %v619
  %2263 = vmatprep.subr.mxu0 %v624
  %2264 = vmatpush1.msra.mxu0 %v623
  %2265 = vmatprep.subr.mxu0 %v628
  %2266 = vmatpush1.msra.mxu0 %v627
  %2267 = vmatprep.subr.mxu0 %v632
  %2268 = vmatpush1.msra.mxu0 %v631
  %2269 = vmatprep.subr.mxu0 %v636
  %2270 = vmatpush1.msra.mxu0 %v635
  %2271 = vmatprep.subr.mxu0 %v640
  %2272 = vmatpush1.msra.mxu0 %v639
  %2273 = vmatprep.subr.mxu0 %v644
  %2274 = vmatpush1.msra.mxu0 %v643
  %2275 = vmatprep.subr.mxu0 %v648
  %2276 = vmatpush1.msra.mxu0 %v647
  %2277 = vmatprep.subr.mxu0 %v652
  %2278 = vmatpush1.msra.mxu0 %v651
  %2279 = vmatprep.subr.mxu0 %v656
  %2280 = vmatpush1.msra.mxu0 %v655
  %2281 = vmatprep.subr.mxu0 %v660
  %2282 = vmatpush1.msra.mxu0 %v659
  %2283 = vmatprep.subr.mxu0 %v664
  %2284 = vmatpush1.msra.mxu0 %v663
  %2285 = vmatprep.mubr.f32.mxu0 %v1253
  %2286 = vmatmul.mubr.f32.gmra.mrb[0].mxu0 %v1245
  %v2287 = vpop.f32.mrb[0].mxu0
  %v2288 = vadd.f32 %v2217, %v2287
  %v2289 = vpop.f32.mrb[0].mxu0
  %v2290 = vadd.f32 %v2219, %v2289
  %2291 = vdwg.mxu0
  %2292 = vmatprep.subr.mxu0 %v668
  %2293 = vmatpush1.msra.mxu0 %v667
  %2294 = vmatprep.subr.mxu0 %v672
  %2295 = vmatpush1.msra.mxu0 %v671
  %2296 = vmatprep.subr.mxu0 %v676
  %2297 = vmatpush1.msra.mxu0 %v675
  %2298 = vmatprep.subr.mxu0 %v680
  %2299 = vmatpush1.msra.mxu0 %v679
  %2300 = vmatprep.subr.mxu0 %v684
  %2301 = vmatpush1.msra.mxu0 %v683
  %2302 = vmatprep.subr.mxu0 %v688
  %2303 = vmatpush1.msra.mxu0 %v687
  %2304 = vmatprep.subr.mxu0 %v692
  %2305 = vmatpush1.msra.mxu0 %v691
  %2306 = vmatprep.subr.mxu0 %v696
  %2307 = vmatpush1.msra.mxu0 %v695
  %2308 = vmatprep.subr.mxu0 %v700
  %2309 = vmatpush1.msra.mxu0 %v699
  %2310 = vmatprep.subr.mxu0 %v704
  %2311 = vmatpush1.msra.mxu0 %v703
  %2312 = vmatprep.subr.mxu0 %v708
  %2313 = vmatpush1.msra.mxu0 %v707
  %2314 = vmatprep.subr.mxu0 %v712
  %2315 = vmatpush1.msra.mxu0 %v711
  %2316 = vmatprep.subr.mxu0 %v716
  %2317 = vmatpush1.msra.mxu0 %v715
  %2318 = vmatprep.subr.mxu0 %v720
  %2319 = vmatpush1.msra.mxu0 %v719
  %2320 = vmatprep.subr.mxu0 %v724
  %2321 = vmatpush1.msra.mxu0 %v723
  %2322 = vmatprep.subr.mxu0 %v728
  %2323 = vmatpush1.msra.mxu0 %v727
  %2324 = vmatprep.subr.mxu0 %v732
  %2325 = vmatpush1.msra.mxu0 %v731
  %2326 = vmatprep.subr.mxu0 %v736
  %2327 = vmatpush1.msra.mxu0 %v735
  %2328 = vmatprep.subr.mxu0 %v740
  %2329 = vmatpush1.msra.mxu0 %v739
  %2330 = vmatprep.subr.mxu0 %v744
  %2331 = vmatpush1.msra.mxu0 %v743
  %2332 = vmatprep.subr.mxu0 %v748
  %2333 = vmatpush1.msra.mxu0 %v747
  %2334 = vmatprep.subr.mxu0 %v752
  %2335 = vmatpush1.msra.mxu0 %v751
  %2336 = vmatprep.subr.mxu0 %v756
  %2337 = vmatpush1.msra.mxu0 %v755
  %2338 = vmatprep.subr.mxu0 %v760
  %2339 = vmatpush1.msra.mxu0 %v759
  %2340 = vmatprep.subr.mxu0 %v764
  %2341 = vmatpush1.msra.mxu0 %v763
  %2342 = vmatprep.subr.mxu0 %v768
  %2343 = vmatpush1.msra.mxu0 %v767
  %2344 = vmatprep.subr.mxu0 %v772
  %2345 = vmatpush1.msra.mxu0 %v771
  %2346 = vmatprep.subr.mxu0 %v776
  %2347 = vmatpush1.msra.mxu0 %v775
  %2348 = vmatprep.subr.mxu0 %v780
  %2349 = vmatpush1.msra.mxu0 %v779
  %2350 = vmatprep.subr.mxu0 %v784
  %2351 = vmatpush1.msra.mxu0 %v783
  %2352 = vmatprep.subr.mxu0 %v788
  %2353 = vmatpush1.msra.mxu0 %v787
  %2354 = vmatprep.subr.mxu0 %v792
  %2355 = vmatpush1.msra.mxu0 %v791
  %2356 = vmatprep.mubr.f32.mxu0 %v1254
  %2357 = vmatmul.mubr.f32.gmra.mrb[0].mxu0 %v1252
  %v2358 = vpop.f32.mrb[0].mxu0
  %v2359 = vadd.f32 %v2288, %v2358
  %v2360 = vpop.f32.mrb[0].mxu0
  %v2361 = vadd.f32 %v2290, %v2360
  %2362 = vdwg.mxu0
  %2363 = vmatprep.subr.mxu0 %v796
  %2364 = vmatpush1.msra.mxu0 %v795
  %2365 = vmatprep.subr.mxu0 %v800
  %2366 = vmatpush1.msra.mxu0 %v799
  %2367 = vmatprep.subr.mxu0 %v804
  %2368 = vmatpush1.msra.mxu0 %v803
  %2369 = vmatprep.subr.mxu0 %v808
  %2370 = vmatpush1.msra.mxu0 %v807
  %2371 = vmatprep.subr.mxu0 %v812
  %2372 = vmatpush1.msra.mxu0 %v811
  %2373 = vmatprep.subr.mxu0 %v816
  %2374 = vmatpush1.msra.mxu0 %v815
  %2375 = vmatprep.subr.mxu0 %v820
  %2376 = vmatpush1.msra.mxu0 %v819
  %2377 = vmatprep.subr.mxu0 %v824
  %2378 = vmatpush1.msra.mxu0 %v823
  %2379 = vmatprep.subr.mxu0 %v828
  %2380 = vmatpush1.msra.mxu0 %v827
  %2381 = vmatprep.subr.mxu0 %v832
  %2382 = vmatpush1.msra.mxu0 %v831
  %2383 = vmatprep.subr.mxu0 %v836
  %2384 = vmatpush1.msra.mxu0 %v835
  %2385 = vmatprep.subr.mxu0 %v840
  %2386 = vmatpush1.msra.mxu0 %v839
  %2387 = vmatprep.subr.mxu0 %v844
  %2388 = vmatpush1.msra.mxu0 %v843
  %2389 = vmatprep.subr.mxu0 %v848
  %2390 = vmatpush1.msra.mxu0 %v847
  %2391 = vmatprep.subr.mxu0 %v852
  %2392 = vmatpush1.msra.mxu0 %v851
  %2393 = vmatprep.subr.mxu0 %v856
  %2394 = vmatpush1.msra.mxu0 %v855
  %2395 = vmatprep.subr.mxu0 %v860
  %2396 = vmatpush1.msra.mxu0 %v859
  %2397 = vmatprep.subr.mxu0 %v864
  %2398 = vmatpush1.msra.mxu0 %v863
  %2399 = vmatprep.subr.mxu0 %v868
  %2400 = vmatpush1.msra.mxu0 %v867
  %2401 = vmatprep.subr.mxu0 %v872
  %2402 = vmatpush1.msra.mxu0 %v871
  %2403 = vmatprep.subr.mxu0 %v876
  %2404 = vmatpush1.msra.mxu0 %v875
  %2405 = vmatprep.subr.mxu0 %v880
  %2406 = vmatpush1.msra.mxu0 %v879
  %2407 = vmatprep.subr.mxu0 %v884
  %2408 = vmatpush1.msra.mxu0 %v883
  %2409 = vmatprep.subr.mxu0 %v888
  %2410 = vmatpush1.msra.mxu0 %v887
  %2411 = vmatprep.subr.mxu0 %v892
  %2412 = vmatpush1.msra.mxu0 %v891
  %2413 = vmatprep.subr.mxu0 %v896
  %2414 = vmatpush1.msra.mxu0 %v895
  %2415 = vmatprep.subr.mxu0 %v900
  %2416 = vmatpush1.msra.mxu0 %v899
  %2417 = vmatprep.subr.mxu0 %v904
  %2418 = vmatpush1.msra.mxu0 %v903
  %2419 = vmatprep.subr.mxu0 %v908
  %2420 = vmatpush1.msra.mxu0 %v907
  %2421 = vmatprep.subr.mxu0 %v912
  %2422 = vmatpush1.msra.mxu0 %v911
  %2423 = vmatprep.subr.mxu0 %v916
  %2424 = vmatpush1.msra.mxu0 %v915
  %2425 = vmatprep.subr.mxu0 %v920
  %2426 = vmatpush1.msra.mxu0 %v919
  %2427 = vmatprep.mubr.f32.mxu0 %v1270
  %2428 = vmatmul.mubr.f32.gmra.mrb[0].mxu0 %v1262
  %v2429 = vpop.f32.mrb[0].mxu0
  %v2430 = vadd.f32 %v2359, %v2429
  %v2431 = vpop.f32.mrb[0].mxu0
  %v2432 = vadd.f32 %v2361, %v2431
  %2433 = vdwg.mxu0
  %2434 = vmatprep.subr.mxu0 %v924
  %2435 = vmatpush1.msra.mxu0 %v923
  %2436 = vmatprep.subr.mxu0 %v928
  %2437 = vmatpush1.msra.mxu0 %v927
  %2438 = vmatprep.subr.mxu0 %v932
  %2439 = vmatpush1.msra.mxu0 %v931
  %2440 = vmatprep.subr.mxu0 %v936
  %2441 = vmatpush1.msra.mxu0 %v935
  %2442 = vmatprep.subr.mxu0 %v940
  %2443 = vmatpush1.msra.mxu0 %v939
  %2444 = vmatprep.subr.mxu0 %v944
  %2445 = vmatpush1.msra.mxu0 %v943
  %2446 = vmatprep.subr.mxu0 %v948
  %2447 = vmatpush1.msra.mxu0 %v947
  %2448 = vmatprep.subr.mxu0 %v952
  %2449 = vmatpush1.msra.mxu0 %v951
  %2450 = vmatprep.subr.mxu0 %v956
  %2451 = vmatpush1.msra.mxu0 %v955
  %2452 = vmatprep.subr.mxu0 %v960
  %2453 = vmatpush1.msra.mxu0 %v959
  %2454 = vmatprep.subr.mxu0 %v964
  %2455 = vmatpush1.msra.mxu0 %v963
  %2456 = vmatprep.subr.mxu0 %v968
  %2457 = vmatpush1.msra.mxu0 %v967
  %2458 = vmatprep.subr.mxu0 %v972
  %2459 = vmatpush1.msra.mxu0 %v971
  %2460 = vmatprep.subr.mxu0 %v976
  %2461 = vmatpush1.msra.mxu0 %v975
  %2462 = vmatprep.subr.mxu0 %v980
  %2463 = vmatpush1.msra.mxu0 %v979
  %2464 = vmatprep.subr.mxu0 %v984
  %2465 = vmatpush1.msra.mxu0 %v983
  %2466 = vmatprep.subr.mxu0 %v988
  %2467 = vmatpush1.msra.mxu0 %v987
  %2468 = vmatprep.subr.mxu0 %v992
  %2469 = vmatpush1.msra.mxu0 %v991
  %2470 = vmatprep.subr.mxu0 %v996
  %2471 = vmatpush1.msra.mxu0 %v995
  %2472 = vmatprep.subr.mxu0 %v1000
  %2473 = vmatpush1.msra.mxu0 %v999
  %2474 = vmatprep.subr.mxu0 %v1004
  %2475 = vmatpush1.msra.mxu0 %v1003
  %2476 = vmatprep.subr.mxu0 %v1008
  %2477 = vmatpush1.msra.mxu0 %v1007
  %2478 = vmatprep.subr.mxu0 %v1012
  %2479 = vmatpush1.msra.mxu0 %v1011
  %2480 = vmatprep.subr.mxu0 %v1016
  %2481 = vmatpush1.msra.mxu0 %v1015
  %2482 = vmatprep.subr.mxu0 %v1020
  %2483 = vmatpush1.msra.mxu0 %v1019
  %2484 = vmatprep.subr.mxu0 %v1024
  %2485 = vmatpush1.msra.mxu0 %v1023
  %2486 = vmatprep.subr.mxu0 %v1028
  %2487 = vmatpush1.msra.mxu0 %v1027
  %2488 = vmatprep.subr.mxu0 %v1032
  %2489 = vmatpush1.msra.mxu0 %v1031
  %2490 = vmatprep.subr.mxu0 %v1036
  %2491 = vmatpush1.msra.mxu0 %v1035
  %2492 = vmatprep.subr.mxu0 %v1040
  %2493 = vmatpush1.msra.mxu0 %v1039
  %2494 = vmatprep.subr.mxu0 %v1044
  %2495 = vmatpush1.msra.mxu0 %v1043
  %2496 = vmatprep.subr.mxu0 %v1048
  %2497 = vmatpush1.msra.mxu0 %v1047
  %2498 = vmatprep.mubr.f32.mxu0 %v1271
  %2499 = vmatmul.mubr.f32.gmra.mrb[0].mxu0 %v1269
  %v2500 = vpop.f32.mrb[0].mxu0
  %v2501 = vadd.f32 %v2430, %v2500
  %v2502 = vpop.f32.mrb[0].mxu0
  %v2503 = vadd.f32 %v2432, %v2502
  %2504 = vdwg.mxu0
  %2505 = vmatprep.subr.mxu0 %v1052
  %2506 = vmatpush1.msra.mxu0 %v1051
  %2507 = vmatprep.subr.mxu0 %v1056
  %2508 = vmatpush1.msra.mxu0 %v1055
  %2509 = vmatprep.subr.mxu0 %v1060
  %2510 = vmatpush1.msra.mxu0 %v1059
  %2511 = vmatprep.subr.mxu0 %v1064
  %2512 = vmatpush1.msra.mxu0 %v1063
  %2513 = vmatprep.subr.mxu0 %v1068
  %2514 = vmatpush1.msra.mxu0 %v1067
  %2515 = vmatprep.subr.mxu0 %v1072
  %2516 = vmatpush1.msra.mxu0 %v1071
  %2517 = vmatprep.subr.mxu0 %v1076
  %2518 = vmatpush1.msra.mxu0 %v1075
  %2519 = vmatprep.subr.mxu0 %v1080
  %2520 = vmatpush1.msra.mxu0 %v1079
  %2521 = vmatprep.subr.mxu0 %v1084
  %2522 = vmatpush1.msra.mxu0 %v1083
  %2523 = vmatprep.subr.mxu0 %v1088
  %2524 = vmatpush1.msra.mxu0 %v1087
  %2525 = vmatprep.subr.mxu0 %v1092
  %2526 = vmatpush1.msra.mxu0 %v1091
  %2527 = vmatprep.subr.mxu0 %v1096
  %2528 = vmatpush1.msra.mxu0 %v1095
  %2529 = vmatprep.subr.mxu0 %v1100
  %2530 = vmatpush1.msra.mxu0 %v1099
  %2531 = vmatprep.subr.mxu0 %v1104
  %2532 = vmatpush1.msra.mxu0 %v1103
  %2533 = vmatprep.subr.mxu0 %v1108
  %2534 = vmatpush1.msra.mxu0 %v1107
  %2535 = vmatprep.subr.mxu0 %v1112
  %2536 = vmatpush1.msra.mxu0 %v1111
  %2537 = vmatprep.subr.mxu0 %v1116
  %2538 = vmatpush1.msra.mxu0 %v1115
  %2539 = vmatprep.subr.mxu0 %v1120
  %2540 = vmatpush1.msra.mxu0 %v1119
  %2541 = vmatprep.subr.mxu0 %v1124
  %2542 = vmatpush1.msra.mxu0 %v1123
  %2543 = vmatprep.subr.mxu0 %v1128
  %2544 = vmatpush1.msra.mxu0 %v1127
  %2545 = vmatprep.subr.mxu0 %v1132
  %2546 = vmatpush1.msra.mxu0 %v1131
  %2547 = vmatprep.subr.mxu0 %v1136
  %2548 = vmatpush1.msra.mxu0 %v1135
  %2549 = vmatprep.subr.mxu0 %v1140
  %2550 = vmatpush1.msra.mxu0 %v1139
  %2551 = vmatprep.subr.mxu0 %v1144
  %2552 = vmatpush1.msra.mxu0 %v1143
  %2553 = vmatprep.subr.mxu0 %v1148
  %2554 = vmatpush1.msra.mxu0 %v1147
  %2555 = vmatprep.subr.mxu0 %v1152
  %2556 = vmatpush1.msra.mxu0 %v1151
  %2557 = vmatprep.subr.mxu0 %v1156
  %2558 = vmatpush1.msra.mxu0 %v1155
  %2559 = vmatprep.subr.mxu0 %v1160
  %2560 = vmatpush1.msra.mxu0 %v1159
  %2561 = vmatprep.subr.mxu0 %v1164
  %2562 = vmatpush1.msra.mxu0 %v1163
  %2563 = vmatprep.subr.mxu0 %v1168
  %2564 = vmatpush1.msra.mxu0 %v1167
  %2565 = vmatprep.subr.mxu0 %v1172
  %2566 = vmatpush1.msra.mxu0 %v1171
  %2567 = vmatprep.subr.mxu0 %v1176
  %2568 = vmatpush1.msra.mxu0 %v1175
  %2569 = vmatprep.mubr.f32.mxu0 %v1279
  %2570 = vmatmul.mubr.f32.gmra.mrb[0].mxu0 %v1278
  %v2571 = vpop.f32.mrb[0].mxu0
  %v2572 = vadd.f32 %v2501, %v2571
  %v2573 = vpop.f32.mrb[0].mxu0
  %v2574 = vadd.f32 %v2503, %v2573
  %2575 = vdwg.mxu0
  %vm2576 = vcmask 1041408
  %v2577 = vsel %vm2576, %v1933, 0.0
  %v2578 = vrot.slane %v2577, 4
  %v2579 = vadd.f32 %v2577, %v2578
  %v2580 = vrot.slane %v2579, 2
  %v2581 = vadd.f32 %v2579, %v2580
  %v2582 = vrot.slane %v2581, 1
  %v2583 = vadd.f32 %v2581, %v2582
  %v2584 = vsel %vm2576, %v1935, 0.0
  %v2585 = vrot.slane %v2584, 4
  %v2586 = vadd.f32 %v2584, %v2585
  %v2587 = vrot.slane %v2586, 2
  %v2588 = vadd.f32 %v2586, %v2587
  %v2589 = vrot.slane %v2588, 1
  %v2590 = vadd.f32 %v2588, %v2589
  %v2591 = vsel %vm2576, %v2572, 0.0
  %v2592 = vrot.slane %v2591, 4
  %v2593 = vadd.f32 %v2591, %v2592
  %v2594 = vrot.slane %v2593, 2
  %v2595 = vadd.f32 %v2593, %v2594
  %v2596 = vrot.slane %v2595, 1
  %v2597 = vadd.f32 %v2595, %v2596
  %v2598 = vsel %vm2576, %v2574, 0.0
  %v2599 = vrot.slane %v2598, 4
  %v2600 = vadd.f32 %v2598, %v2599
  %v2601 = vrot.slane %v2600, 2
  %v2602 = vadd.f32 %v2600, %v2601
  %v2603 = vrot.slane %v2602, 1
  %v2604 = vadd.f32 %v2602, %v2603
  %v2605 = vmul.f32 %v2583, 0.5
  %v2606 = vmul.f32 %v2590, 0.5
  %v2607 = vmul.f32 %v2597, 0.5
  %v2608 = vmul.f32 %v2604, 0.5
  %v2609 = vsub.f32 %v1933, %v2605
  %v2610 = vsub.f32 %v1935, %v2606
  %v2611 = vsub.f32 %v2572, %v2607
  %v2612 = vsub.f32 %v2574, %v2608
  %v2613 = vmul.f32 %v2609, %v2609
  %v2614 = vmul.f32 %v2610, %v2610
  %v2615 = vmul.f32 %v2611, %v2611
  %v2616 = vmul.f32 %v2612, %v2612
  %v2617 = vsel %vm2576, %v2613, 0.0
  %v2618 = vrot.slane %v2617, 4
  %v2619 = vadd.f32 %v2617, %v2618
  %v2620 = vrot.slane %v2619, 2
  %v2621 = vadd.f32 %v2619, %v2620
  %v2622 = vrot.slane %v2621, 1
  %v2623 = vadd.f32 %v2621, %v2622
  %v2624 = vsel %vm2576, %v2614, 0.0
  %v2625 = vrot.slane %v2624, 4
  %v2626 = vadd.f32 %v2624, %v2625
  %v2627 = vrot.slane %v2626, 2
  %v2628 = vadd.f32 %v2626, %v2627
  %v2629 = vrot.slane %v2628, 1
  %v2630 = vadd.f32 %v2628, %v2629
  %v2631 = vsel %vm2576, %v2615, 0.0
  %v2632 = vrot.slane %v2631, 4
  %v2633 = vadd.f32 %v2631, %v2632
  %v2634 = vrot.slane %v2633, 2
  %v2635 = vadd.f32 %v2633, %v2634
  %v2636 = vrot.slane %v2635, 1
  %v2637 = vadd.f32 %v2635, %v2636
  %v2638 = vsel %vm2576, %v2616, 0.0
  %v2639 = vrot.slane %v2638, 4
  %v2640 = vadd.f32 %v2638, %v2639
  %v2641 = vrot.slane %v2640, 2
  %v2642 = vadd.f32 %v2640, %v2641
  %v2643 = vrot.slane %v2642, 1
  %v2644 = vadd.f32 %v2642, %v2643
  %v2645 = vmul.f32 %v2623, 0.5
  %v2646 = vmul.f32 %v2630, 0.5
  %v2647 = vmul.f32 %v2637, 0.5
  %v2648 = vmul.f32 %v2644, 0.5
  %v2649 = vadd.f32 %v2645, 1e-05
  %v2650 = vadd.f32 %v2646, 1e-05
  %v2651 = vadd.f32 %v2647, 1e-05
  %v2652 = vadd.f32 %v2648, 1e-05
  %v2653 = vrsqrt.pop %v2649
  %v2654 = vrsqrt.pop %v2650
  %v2655 = vrsqrt.pop %v2651
  %v2656 = vrsqrt.pop %v2652
  %v2657 = vmul.f32 %v2609, %v2653
  %v2658 = vmul.f32 %v2610, %v2654
  %v2659 = vmul.f32 %v2611, %v2655
  %v2660 = vmul.f32 %v2612, %v2656
  %v2661 = vld [vmem:[%s3] sm:$0xf]
  %v2663 = vlaneseq
  %v2664 = vshrl.u32 %v2663, 7
  %v2665 = vsub.s32 0, %v2664
  %v2666 = vrot.slane %v2661, %v2665
  %v2667 = vlaneseq
  %v2668 = vshrl.u32 %v2667, 7
  %v2669 = vsub.s32 1, %v2668
  %v2670 = vrot.slane %v2661, %v2669
  %v2671 = vlaneseq
  %v2672 = vshrl.u32 %v2671, 7
  %v2673 = vsub.s32 2, %v2672
  %v2674 = vrot.slane %v2661, %v2673
  %v2675 = vlaneseq
  %v2676 = vshrl.u32 %v2675, 7
  %v2677 = vsub.s32 3, %v2676
  %v2678 = vrot.slane %v2661, %v2677
  %v2683 = vmul.f32 %v2657, %v2666
  %v2684 = vmul.f32 %v2658, %v2670
  %v2685 = vmul.f32 %v2659, %v2674
  %v2686 = vmul.f32 %v2660, %v2678
  %v2687 = vld [vmem:[%s4] sm:$0xf]
  %v2689 = vlaneseq
  %v2690 = vshrl.u32 %v2689, 7
  %v2691 = vsub.s32 0, %v2690
  %v2692 = vrot.slane %v2687, %v2691
  %v2693 = vlaneseq
  %v2694 = vshrl.u32 %v2693, 7
  %v2695 = vsub.s32 1, %v2694
  %v2696 = vrot.slane %v2687, %v2695
  %v2697 = vlaneseq
  %v2698 = vshrl.u32 %v2697, 7
  %v2699 = vsub.s32 2, %v2698
  %v2700 = vrot.slane %v2687, %v2699
  %v2701 = vlaneseq
  %v2702 = vshrl.u32 %v2701, 7
  %v2703 = vsub.s32 3, %v2702
  %v2704 = vrot.slane %v2687, %v2703
  %v2709 = vadd.f32 %v2683, %v2692
  %v2710 = vadd.f32 %v2684, %v2696
  %v2711 = vadd.f32 %v2685, %v2700
  %v2712 = vadd.f32 %v2686, %v2704
  %v2713 = vmax.f32 %v2709, 0.0
  %v2714 = vmax.f32 %v2710, 0.0
  %v2715 = vmax.f32 %v2711, 0.0
  %v2716 = vmax.f32 %v2712, 0.0
  %v2721 = vcombine.low %v2713, %v2714
  %v2722 = vcombine.low %v2715, %v2716
  %v2724 = vunpack.c.l.s4 1983009808
  %v2725 = vunpack.c.0.s8 %v2724
  %v2726 = vlaneseq
  %v2727 = vshrl.u32 %v2726, 7
  %v2728 = vsub.s32 %v2725, %v2727
  %v2729 = vrot.slane %v2721, %v2728
  %v2731 = vunpack.c.l.s4 1983009808
  %v2732 = vunpack.c.0.s8 %v2731
  %v2733 = vlaneseq
  %v2734 = vshrl.u32 %v2733, 7
  %v2735 = vsub.s32 %v2732, %v2734
  %v2736 = vrot.slane %v2722, %v2735
  %v2737 = vcombine.low %v2729, %v2736
  %2739 = vst [vmem:[%s5] sm:$0xff] %v2737
  // Predicated region
  $region22: #{image_encoder_fcn_pallas.7} parent=0 // pred_check
    _
  $region23: #{image_encoder_fcn_pallas.7} parent=0 // pred_check_branch
    %2741 = sbr.rel (0) target = $region25
  $region24: #{image_encoder_fcn_pallas.7} parent=0 // pred_region
    _
  $region25: #{image_encoder_fcn_pallas.7} parent=0 // pred_fallthru
    _
  // Predicated region
  $region26: #{image_encoder_fcn_pallas.7} parent=0 // pred_check
    _
  $region27: #{image_encoder_fcn_pallas.7} parent=0 // pred_check_branch
    %2743 = sbr.rel (0) target = $region29
  $region28: #{image_encoder_fcn_pallas.7} parent=0 // pred_region
    _
  $region29: #{image_encoder_fcn_pallas.7} parent=0 // pred_fallthru
    _

</llo_original>
